<compile_context>
chip_gen: v7x
topology: tpu7x:2x2x1
jax: 0.10.0
libtpu: 0.0.40
codegen_flags: <defaults>
</compile_context>

<pallas_src>
import jax
import jax.numpy as jnp
from jax.experimental import pallas as pl
from jax.experimental.pallas import tpu as pltpu


def relation_gat_kernel(x_ref, nb_ref, wq_ref, wk_ref, wv_ref, out_ref):
    """One batch tile: 3 projections + attention scores + softmax + pooling.

    x_ref  : (B_T, D)    compute dtype (bf16 by default)
    nb_ref : (B_T, N, D) compute dtype
    w*_ref : (D, D)      compute dtype (transposed torch weights, resident)
    out_ref: (B_T, D)    float32
    """
    x = x_ref[...]
    nb = nb_ref[...]
    wq_t = wq_ref[...]
    wk_t = wk_ref[...]
    wv_t = wv_ref[...]

    bt, n, d = nb.shape

    # q = wq(x) -> (B_T, 1, D); bf16 MXU matmul with f32 accumulation.
    q = jnp.dot(x, wq_t, preferred_element_type=jnp.float32)[:, None, :]

    # k = wk(neighbor) as one flat (B_T*N, D) x (D, D) matmul (leading-dim merge
    # reshape, layout-free).
    k = jnp.dot(nb.reshape(bt * n, d), wk_t,
                preferred_element_type=jnp.float32).reshape(bt, n, d)

    # scores[b, n] = <q[b], k[b, n]> : batched contraction over D on the MXU
    # (avoids the (B_T, N, D) broadcast temp and the lane-axis XLU reduce).
    scores = jnp.einsum("bqd,bnd->bqn", q, k,
                        preferred_element_type=jnp.float32)[:, 0, :]   # (B_T, N)

    # Numerically stable softmax over the neighbor axis, f32 throughout;
    # the reciprocal lowers to the EUP (its own VLIW slot -> effectively free).
    m = jnp.max(scores, axis=1, keepdims=True)
    e = jnp.exp(scores - m)
    attn = e * pl.reciprocal(jnp.sum(e, axis=1, keepdims=True), approx=True)

    # pooled[b, :] = sum_n attn[b, n] * k[b, n, :] : batched matmul on the MXU
    # (no attn[:, :, None] broadcast temp).
    pooled = jnp.einsum("bqn,bnd->bqd", attn[:, None, :], k,
                        preferred_element_type=jnp.float32)[:, 0, :]   # (B_T, D)

    # gat_output = wv(pooled); keep pooled in f32 for accuracy.
    out_ref[...] = jnp.dot(pooled, wv_t.astype(jnp.float32),
                           preferred_element_type=jnp.float32).astype(out_ref.dtype)


def _pick_batch_tile(batch, n, d, in_itemsize, budget_bytes=10 * 1024 * 1024):
    """Pick a batch tile so double-buffered inputs plus f32 intermediates stay
    well inside the 32 MiB scoped VMEM limit (sized against v7x's 64 MiB)."""
    weight_bytes = 3 * d * d * in_itemsize * 2          # pessimistic x2
    budget = max(budget_bytes - weight_bytes, 2 * 1024 * 1024)
    per_row = n * d * (2 * in_itemsize + 8) + d * (2 * in_itemsize + 12) + 64
    bt = budget // per_row
    return int(max(1, min(bt, 512, batch)))


def relation_gat(x, neighbor, wq_t, wk_t, wv_t, *, block_b=None,
                 compute_dtype=jnp.bfloat16):
    """Pallas forward for RelationGAT.

    x        : (B, D) float32
    neighbor : (B, N, D) float32
    w*_t     : (D, D) float32  -- torch Linear weight transposed (y = x @ W_t)
    returns  : (B, D) float32
    """
    B, D = x.shape
    _, N, _ = neighbor.shape
    cd = jnp.dtype(compute_dtype)

    # bf16 inputs halve HBM bytes on the dominant neighbor stream and run the
    # projections at the MXU's bf16 rate; accumulation stays f32 in-kernel.
    x_c = x.astype(cd)
    nb_c = neighbor.astype(cd)
    wq_c, wk_c, wv_c = (w.astype(cd) for w in (wq_t, wk_t, wv_t))

    if block_b is None:
        block_b = _pick_batch_tile(B, N, D, cd.itemsize)
    if block_b >= B:
        block_b = B                     # a block equal to the full dim is always legal
    else:
        align = 16 if cd.itemsize == 2 else 8   # sublane alignment (bf16 packs 2/row)
        block_b = max(align, (block_b // align) * align)

    Bp = ((B + block_b - 1) // block_b) * block_b
    if Bp != B:
        pad = Bp - B                    # zero rows -> zero outputs, sliced off below
        x_c = jnp.pad(x_c, ((0, pad), (0, 0)))
        nb_c = jnp.pad(nb_c, ((0, pad), (0, 0), (0, 0)))

    grid = (Bp // block_b,)

    out = pl.pallas_call(
        relation_gat_kernel,
        out_shape=jax.ShapeDtypeStruct((Bp, D), jnp.float32),
        grid_spec=pltpu.PrefetchScalarGridSpec(
            num_scalar_prefetch=0,
            grid=grid,
            in_specs=[
                pl.BlockSpec((block_b, D), lambda i: (i, 0)),
                # NOTE: if the neighbor DMA is still exposed at production sizes,
                # add pipeline_mode=pl.Buffered(3) here (re-check v7x VMEM fit).
                pl.BlockSpec((block_b, N, D), lambda i: (i, 0, 0)),
                pl.BlockSpec((D, D), lambda i: (0, 0)),   # weights stay resident
                pl.BlockSpec((D, D), lambda i: (0, 0)),
                pl.BlockSpec((D, D), lambda i: (0, 0)),
            ],
            out_specs=pl.BlockSpec((block_b, D), lambda i: (i, 0)),
        ),
        compiler_params=pltpu.CompilerParams(
            # Batch tiles are independent -> shard across v7x's 2 TensorCores;
            # harmless on single-TC v5e/v6e.
            dimension_semantics=("parallel",),
            # 32 MiB is the v6e/v7x default and raises v5e's 16 MiB default,
            # while leaving headroom under v7x's 64 MiB physical VMEM.
            vmem_limit_bytes=32 * 1024 * 1024,
        ),
    )(x_c, nb_c, wq_c, wk_c, wv_c)

    return out[:B] if Bp != B else out


def reference_jax(x, neighbor, wq_t, wk_t, wv_t, compute_dtype=jnp.bfloat16):
    """Pure-JAX reference with the same bf16 input quantization / f32 math."""
    cd = jnp.dtype(compute_dtype)
    up = lambda a: a.astype(cd).astype(jnp.float32)
    xf, nbf = up(x), up(neighbor)
    wqf, wkf, wvf = up(wq_t), up(wk_t), up(wv_t)
    q = xf @ wqf                                   # (B, D)
    k = jnp.einsum("bnd,de->bne", nbf, wkf)        # (B, N, D)
    scores = jnp.einsum("bd,bnd->bn", q, k)        # (B, N)
    attn = jax.nn.softmax(scores, axis=1)          # (B, N)
    pooled = jnp.einsum("bn,bnd->bd", attn, k)     # (B, D)
    return pooled @ wvf                            # (B, D)


if __name__ == "__main__":
    # Small but lane-dense demo shapes: D is a multiple of 128 so every matmul
    # and the output store use full vreg lanes; block_b=16 gives a 4-step
    # pipelined grid over the batch (weights resident across steps).
    B, N, D = 64, 16, 128

    key = jax.random.PRNGKey(0)
    kx, kn, kq, kk, kv = jax.random.split(key, 5)

    x = jax.random.normal(kx, (B, D), dtype=jnp.float32)
    neighbor = jax.random.normal(kn, (B, N, D), dtype=jnp.float32)

    # Xavier-normal init: std = sqrt(2 / (fan_in + fan_out)).
    std = (2.0 / (D + D)) ** 0.5
    # torch Linear weight is (out, in); store the transpose so y = x @ W_t.
    wq_t = (std * jax.random.normal(kq, (D, D), dtype=jnp.float32)).T
    wk_t = (std * jax.random.normal(kk, (D, D), dtype=jnp.float32)).T
    wv_t = (std * jax.random.normal(kv, (D, D), dtype=jnp.float32)).T

    out = relation_gat(x, neighbor, wq_t, wk_t, wv_t, block_b=16)
    jax.block_until_ready(out)

    ref = reference_jax(x, neighbor, wq_t, wk_t, wv_t)
    assert out.shape == (B, D)
    max_diff = jnp.max(jnp.abs(out - ref))
    assert jnp.allclose(out, ref, atol=1e-2, rtol=1e-2), (
        f"mismatch: max abs diff {max_diff}")

    print("KERNEL_OK")
</pallas_src>

<mosaic_0001>
module attributes {stable_mosaic.version = 11 : i64} {
  func.func @relation_gat_kernel(%arg0: i32, %arg1: memref<16x128xbf16, #tpu.memory_space<vmem>>, %arg2: memref<16x16x128xbf16, #tpu.memory_space<vmem>>, %arg3: memref<128x128xbf16, #tpu.memory_space<vmem>>, %arg4: memref<128x128xbf16, #tpu.memory_space<vmem>>, %arg5: memref<128x128xbf16, #tpu.memory_space<vmem>>, %arg6: memref<16x128xf32, #tpu.memory_space<vmem>>) attributes {dimension_semantics = [#tpu.dimension_semantics<parallel>], iteration_bounds = array<i64: 4>, scalar_prefetch = 0 : i64, scratch_operands = 0 : i64, tpu.core_type = #tpu.core_type<tc>, window_params = [{transform_indices = @transform_0, window_bounds = array<i64: 16, 128>}, {transform_indices = @transform_1, window_bounds = array<i64: 16, 16, 128>}, {pipeline_mode = #tpu.pipeline_mode<synchronous>, transform_indices = @transform_2, window_bounds = array<i64: 128, 128>}, {pipeline_mode = #tpu.pipeline_mode<synchronous>, transform_indices = @transform_3, window_bounds = array<i64: 128, 128>}, {pipeline_mode = #tpu.pipeline_mode<synchronous>, transform_indices = @transform_4, window_bounds = array<i64: 128, 128>}, {transform_indices = @transform_5, window_bounds = array<i64: 16, 128>}]} {
    %c0 = arith.constant 0 : index
    %c0_0 = arith.constant 0 : index
    %0 = vector.load %arg1[%c0, %c0_0] : memref<16x128xbf16, #tpu.memory_space<vmem>>, vector<16x128xbf16>
    %c0_1 = arith.constant 0 : index
    %c0_2 = arith.constant 0 : index
    %c0_3 = arith.constant 0 : index
    %1 = vector.load %arg2[%c0_1, %c0_2, %c0_3] : memref<16x16x128xbf16, #tpu.memory_space<vmem>>, vector<16x16x128xbf16>
    %c0_4 = arith.constant 0 : index
    %c0_5 = arith.constant 0 : index
    %2 = vector.load %arg3[%c0_4, %c0_5] : memref<128x128xbf16, #tpu.memory_space<vmem>>, vector<128x128xbf16>
    %c0_6 = arith.constant 0 : index
    %c0_7 = arith.constant 0 : index
    %3 = vector.load %arg4[%c0_6, %c0_7] : memref<128x128xbf16, #tpu.memory_space<vmem>>, vector<128x128xbf16>
    %c0_8 = arith.constant 0 : index
    %c0_9 = arith.constant 0 : index
    %4 = vector.load %arg5[%c0_8, %c0_9] : memref<128x128xbf16, #tpu.memory_space<vmem>>, vector<128x128xbf16>
    %cst = arith.constant dense<0.000000e+00> : vector<16x128xf32>
    %5 = tpu.matmul %0, %2, %cst {dimension_numbers = #tpu.dot_dimension_numbers<[1], [0], [0], [1], [0, 0, 1, 1], [], []>} : vector<16x128xbf16>, vector<128x128xbf16>, vector<16x128xf32> -> vector<16x128xf32>
    %6 = vector.shape_cast %5 : vector<16x128xf32> to vector<16x1x128xf32>
    %7 = vector.shape_cast %1 : vector<16x16x128xbf16> to vector<256x128xbf16>
    %cst_10 = arith.constant dense<0.000000e+00> : vector<256x128xf32>
    %8 = tpu.matmul %7, %3, %cst_10 {dimension_numbers = #tpu.dot_dimension_numbers<[1], [0], [0], [1], [0, 0, 1, 1], [], []>} : vector<256x128xbf16>, vector<128x128xbf16>, vector<256x128xf32> -> vector<256x128xf32>
    %9 = vector.shape_cast %8 : vector<256x128xf32> to vector<16x16x128xf32>
    "tpu.trace_start"() <{level = 10 : i32, message = "bqd,bnd->bqn"}> : () -> ()
    %cst_11 = arith.constant dense<0.000000e+00> : vector<16x1x16xf32>
    %10 = tpu.matmul %6, %9, %cst_11 {dimension_numbers = #tpu.dot_dimension_numbers<[2], [2], [1], [1], [0, 0, 0, 1, 1, 1], [0], [0]>} : vector<16x1x128xf32>, vector<16x16x128xf32>, vector<16x1x16xf32> -> vector<16x1x16xf32>
    "tpu.trace_stop"() : () -> ()
    %11 = vector.shape_cast %10 : vector<16x1x16xf32> to vector<16x16xf32>
    %cst_12 = arith.constant dense<0xFF800000> : vector<16xf32>
    %12 = vector.multi_reduction <maximumf>, %11, %cst_12 [1] : vector<16x16xf32> to vector<16xf32>
    %13 = vector.shape_cast %12 : vector<16xf32> to vector<16x1xf32>
    %14 = vector.broadcast %13 : vector<16x1xf32> to vector<16x16xf32>
    %15 = arith.subf %11, %14 : vector<16x16xf32>
    %16 = math.exp %15 : vector<16x16xf32>
    %cst_13 = arith.constant dense<0.000000e+00> : vector<16xf32>
    %17 = vector.multi_reduction <add>, %16, %cst_13 [1] : vector<16x16xf32> to vector<16xf32>
    %18 = vector.shape_cast %17 : vector<16xf32> to vector<16x1xf32>
    %19 = tpu.reciprocal %18 {approx = true} : vector<16x1xf32> -> vector<16x1xf32>
    %20 = vector.broadcast %19 : vector<16x1xf32> to vector<16x16xf32>
    %21 = arith.mulf %16, %20 : vector<16x16xf32>
    %22 = vector.shape_cast %21 : vector<16x16xf32> to vector<16x1x16xf32>
    "tpu.trace_start"() <{level = 10 : i32, message = "bqn,bnd->bqd"}> : () -> ()
    %cst_14 = arith.constant dense<0.000000e+00> : vector<16x1x128xf32>
    %23 = tpu.matmul %22, %9, %cst_14 {dimension_numbers = #tpu.dot_dimension_numbers<[2], [1], [1], [2], [0, 0, 0, 1, 1, 2], [0], [0]>} : vector<16x1x16xf32>, vector<16x16x128xf32>, vector<16x1x128xf32> -> vector<16x1x128xf32>
    "tpu.trace_stop"() : () -> ()
    %24 = vector.shape_cast %23 : vector<16x1x128xf32> to vector<16x128xf32>
    %25 = arith.extf %4 : vector<128x128xbf16> to vector<128x128xf32>
    %cst_15 = arith.constant dense<0.000000e+00> : vector<16x128xf32>
    %26 = tpu.matmul %24, %25, %cst_15 {dimension_numbers = #tpu.dot_dimension_numbers<[1], [0], [0], [1], [0, 0, 1, 1], [], []>} : vector<16x128xf32>, vector<128x128xf32>, vector<16x128xf32> -> vector<16x128xf32>
    %c0_16 = arith.constant 0 : index
    %c0_17 = arith.constant 0 : index
    %27 = vector.load %arg6[%c0_16, %c0_17] : memref<16x128xf32, #tpu.memory_space<vmem>>, vector<16x128xf32>
    tpu.vector_store %arg6[%c0_16, %c0_17], %26 {strides = array<i32>} : memref<16x128xf32, #tpu.memory_space<vmem>>, vector<16x128xf32>,
    return
  }
  func.func @transform_0(%arg0: i32) -> (i32, i32) {
    %c0_i32 = arith.constant 0 : i32
    %c0_i32_0 = arith.constant 0 : i32
    return %arg0, %c0_i32 : i32, i32
  }
  func.func @transform_1(%arg0: i32) -> (i32, i32, i32) {
    %c0_i32 = arith.constant 0 : i32
    %c0_i32_0 = arith.constant 0 : i32
    %c0_i32_1 = arith.constant 0 : i32
    return %arg0, %c0_i32, %c0_i32_0 : i32, i32, i32
  }
  func.func @transform_2(%arg0: i32) -> (i32, i32) {
    %c0_i32 = arith.constant 0 : i32
    %c0_i32_0 = arith.constant 0 : i32
    %c0_i32_1 = arith.constant 0 : i32
    return %c0_i32, %c0_i32_0 : i32, i32
  }
  func.func @transform_3(%arg0: i32) -> (i32, i32) {
    %c0_i32 = arith.constant 0 : i32
    %c0_i32_0 = arith.constant 0 : i32
    %c0_i32_1 = arith.constant 0 : i32
    return %c0_i32, %c0_i32_0 : i32, i32
  }
  func.func @transform_4(%arg0: i32) -> (i32, i32) {
    %c0_i32 = arith.constant 0 : i32
    %c0_i32_0 = arith.constant 0 : i32
    %c0_i32_1 = arith.constant 0 : i32
    return %c0_i32, %c0_i32_0 : i32, i32
  }
  func.func @transform_5(%arg0: i32) -> (i32, i32) {
    %c0_i32 = arith.constant 0 : i32
    %c0_i32_0 = arith.constant 0 : i32
    return %arg0, %c0_i32 : i32, i32
  }
}

</mosaic_0001>

<llo_original>
// kernel: tpu_custom_call.1
$region0: #{tpu_custom_call.1}
  #allocation0 [shape = 'u32[]', space=smem, size = 0x4, offset = 0x4, fixed_abs, tag = 'smem constant byte address 0x4 - core index']
  #allocation1 [shape = 'u32[144,128]{1,0:T(1,128)}', space=vmem, size = 0x12000, scoped, tag = 'internal scratch']
  %s0 = inlined_call_operand.hbm [shape: bf16[64,128], index: 0, kind: input, shape index: {}]
  %s1 = inlined_call_operand.hbm [shape: bf16[64,16,128], index: 1, kind: input, shape index: {}]
  %s2 = inlined_call_operand.hbm [shape: bf16[128,128], index: 2, kind: input, shape index: {}]
  %s3 = inlined_call_operand.hbm [shape: bf16[128,128], index: 3, kind: input, shape index: {}]
  %s4 = inlined_call_operand.hbm [shape: bf16[128,128], index: 4, kind: input, shape index: {}]
  %s5 = inlined_call_operand.hbm [shape: f32[64,128], index: 5, kind: output, shape index: {}]
  %s6 = sld [smem:[#allocation0]]
  $region73: #{tpu_custom_call.1} parent=0
    _
  %s8 = ssub.s32 1, %s6
  %s9 = scalar_select 0, %s8, %s6
  $region1: #{tpu_custom_call.1} parent=0
    #allocation2 [shape = 'u8[8192]{0}', space=vmem, size = 0x2000, scoped, tag = 'input window, operand 0']
    #allocation3 [shape = 's32[2]{0}', space=sflag, size = 0x8, scoped, tag = 'scoped memory for tpu_custom_call.1']
    #allocation4 [shape = 's32[2]{0}', space=sflag, size = 0x8, scoped, tag = 'scoped memory for tpu_custom_call.1']
    #allocation5 [shape = 'u8[131072]{0}', space=vmem, size = 0x20000, scoped, tag = 'input window, operand 1']
    #allocation6 [shape = 's32[2]{0}', space=sflag, size = 0x8, scoped, tag = 'scoped memory for tpu_custom_call.1']
    #allocation7 [shape = 'u8[32768]{0}', space=vmem, size = 0x8000, scoped, tag = 'input window, operand 2, single buffered']
    #allocation8 [shape = 'u8[32768]{0}', space=vmem, size = 0x8000, scoped, tag = 'input window, operand 3, single buffered']
    #allocation9 [shape = 's32[1]{0}', space=sflag, size = 0x4, scoped, tag = 'scoped memory for tpu_custom_call.1']
    #allocation10 [shape = 'u8[32768]{0}', space=vmem, size = 0x8000, scoped, tag = 'input window, operand 4, single buffered']
    #allocation11 [shape = 'u8[16384]{0}', space=vmem, size = 0x4000, scoped, tag = 'output window, operand 0']
    %10 = vsyncpa [#allocation3], 0
    %s11 = scalar_lea.sflag [#allocation3], 1
    %12 = vsyncpa %s11, 0
    %13 = vsyncpa [#allocation6], 0
    %s14 = scalar_lea.sflag [#allocation6], 1
    %15 = vsyncpa %s14, 0
    %16 = vsyncpa [#allocation9], 0
    %17 = vsyncpa [#allocation4], 0
    %s18 = scalar_lea.sflag [#allocation4], 1
    %19 = vsyncpa %s18, 0
    loop: start=0, step=1, limit=6
    $region2: #{tpu_custom_call.1} parent=1 // loop_pre_header
      _
    $region3: #{tpu_custom_call.1} parent=1 // loop_header
      %s21 = sphi 0, %s25
      %p22 = scmp.ge.s32.totalorder %s21, 6
      %s31 = sphi 0, %s33
      %s34 = sphi 0, %s31
      %s35 = sphi 0, %s34
      %s51 = sphi 0, %s35
      %s57 = sphi 0, %s59
      %s60 = sphi 0, %s57
      %s61 = sphi 0, %s60
      %s77 = sphi 0, %s61
      %s81 = sphi 0, %s81
      %s83 = sphi 0, %s81
      %s84 = sphi 0, %s83
      %s98 = sphi 0, %s84
      %s102 = sphi 0, %s102
      %s104 = sphi 0, %s102
      %s105 = sphi 0, %s104
      %s119 = sphi 0, %s105
      %s123 = sphi 0, %s123
      %s125 = sphi 0, %s123
      %s126 = sphi 0, %s125
      %s140 = sphi 0, %s126
      %s146 = sphi 0, %s148
      %s149 = sphi 0, %s146
      %s150 = sphi 0, %s149
      %s166 = sphi 0, %s150
    $region4: #{tpu_custom_call.1} parent=1 // loop_header_branch
      %24 = sbr.rel (%p22) target = $region8
    $region5: #{tpu_custom_call.1} parent=1 // loop_body
      %s26 = ssub.s32 %s21, 1
      %s27 = ssub.s32 %s21, 2
      %s28 = sadd.s32 %s21, 1
      %s29 = ssub.s32 %s21, %s28
      %p30 = scmp.eq.s32.totalorder %s29, 0
      %s32 = sadd.s32 %s31, 1
      %s33 = scalar_select %p30, %s31, %s32
      %p36 = pneg %p30
      %p37 = scmp.eq.s32.totalorder %s21, 3
      %p38 = por %p36, %p37
      %p39 = scmp.ne.s32.totalorder %s31, %s34
      %p40 = scmp.eq.s32.totalorder %s21, 0
      %p41 = por %p39, %p40
      %p42 = scmp.ne.s32.totalorder %s31, %s34
      %p43 = scmp.eq.s32.totalorder %s26, 3
      %p44 = por %p42, %p43
      %p45 = scmp.ne.s32.totalorder %s34, %s35
      %p46 = scmp.eq.s32.totalorder %s26, 0
      %p47 = por %p45, %p46
      %p48 = scmp.ne.s32.totalorder %s34, %s35
      %p49 = scmp.eq.s32.totalorder %s27, 3
      %p50 = por %p48, %p49
      %p52 = scmp.ne.s32.totalorder %s35, %s51
      %p53 = scmp.eq.s32.totalorder %s27, 0
      %p54 = por %p52, %p53
      %s55 = ssub.s32 %s21, %s28
      %p56 = scmp.eq.s32.totalorder %s55, 0
      %s58 = sadd.s32 %s57, 1
      %s59 = scalar_select %p56, %s57, %s58
      %p62 = pneg %p56
      %p63 = scmp.eq.s32.totalorder %s21, 3
      %p64 = por %p62, %p63
      %p65 = scmp.ne.s32.totalorder %s57, %s60
      %p66 = scmp.eq.s32.totalorder %s21, 0
      %p67 = por %p65, %p66
      %p68 = scmp.ne.s32.totalorder %s57, %s60
      %p69 = scmp.eq.s32.totalorder %s26, 3
      %p70 = por %p68, %p69
      %p71 = scmp.ne.s32.totalorder %s60, %s61
      %p72 = scmp.eq.s32.totalorder %s26, 0
      %p73 = por %p71, %p72
      %p74 = scmp.ne.s32.totalorder %s60, %s61
      %p75 = scmp.eq.s32.totalorder %s27, 3
      %p76 = por %p74, %p75
      %p78 = scmp.ne.s32.totalorder %s61, %s77
      %p79 = scmp.eq.s32.totalorder %s27, 0
      %p80 = por %p78, %p79
      %s82 = sadd.s32 %s81, 1
      %p85 = scmp.eq.s32.totalorder %s21, 3
      %p86 = scmp.ne.s32.totalorder %s81, %s83
      %p87 = scmp.eq.s32.totalorder %s21, 0
      %p88 = por %p86, %p87
      %p89 = scmp.ne.s32.totalorder %s81, %s83
      %p90 = scmp.eq.s32.totalorder %s26, 3
      %p91 = por %p89, %p90
      %p92 = scmp.ne.s32.totalorder %s83, %s84
      %p93 = scmp.eq.s32.totalorder %s26, 0
      %p94 = por %p92, %p93
      %p95 = scmp.ne.s32.totalorder %s83, %s84
      %p96 = scmp.eq.s32.totalorder %s27, 3
      %p97 = por %p95, %p96
      %p99 = scmp.ne.s32.totalorder %s84, %s98
      %p100 = scmp.eq.s32.totalorder %s27, 0
      %p101 = por %p99, %p100
      %s103 = sadd.s32 %s102, 1
      %p106 = scmp.eq.s32.totalorder %s21, 3
      %p107 = scmp.ne.s32.totalorder %s102, %s104
      %p108 = scmp.eq.s32.totalorder %s21, 0
      %p109 = por %p107, %p108
      %p110 = scmp.ne.s32.totalorder %s102, %s104
      %p111 = scmp.eq.s32.totalorder %s26, 3
      %p112 = por %p110, %p111
      %p113 = scmp.ne.s32.totalorder %s104, %s105
      %p114 = scmp.eq.s32.totalorder %s26, 0
      %p115 = por %p113, %p114
      %p116 = scmp.ne.s32.totalorder %s104, %s105
      %p117 = scmp.eq.s32.totalorder %s27, 3
      %p118 = por %p116, %p117
      %p120 = scmp.ne.s32.totalorder %s105, %s119
      %p121 = scmp.eq.s32.totalorder %s27, 0
      %p122 = por %p120, %p121
      %s124 = sadd.s32 %s123, 1
      %p127 = scmp.eq.s32.totalorder %s21, 3
      %p128 = scmp.ne.s32.totalorder %s123, %s125
      %p129 = scmp.eq.s32.totalorder %s21, 0
      %p130 = por %p128, %p129
      %p131 = scmp.ne.s32.totalorder %s123, %s125
      %p132 = scmp.eq.s32.totalorder %s26, 3
      %p133 = por %p131, %p132
      %p134 = scmp.ne.s32.totalorder %s125, %s126
      %p135 = scmp.eq.s32.totalorder %s26, 0
      %p136 = por %p134, %p135
      %p137 = scmp.ne.s32.totalorder %s125, %s126
      %p138 = scmp.eq.s32.totalorder %s27, 3
      %p139 = por %p137, %p138
      %p141 = scmp.ne.s32.totalorder %s126, %s140
      %p142 = scmp.eq.s32.totalorder %s27, 0
      %p143 = por %p141, %p142
      %s144 = ssub.s32 %s21, %s28
      %p145 = scmp.eq.s32.totalorder %s144, 0
      %s147 = sadd.s32 %s146, 1
      %s148 = scalar_select %p145, %s146, %s147
      %p151 = pneg %p145
      %p152 = scmp.eq.s32.totalorder %s21, 3
      %p153 = por %p151, %p152
      %p154 = scmp.ne.s32.totalorder %s146, %s149
      %p155 = scmp.eq.s32.totalorder %s21, 0
      %p156 = por %p154, %p155
      %p157 = scmp.ne.s32.totalorder %s146, %s149
      %p158 = scmp.eq.s32.totalorder %s26, 3
      %p159 = por %p157, %p158
      %p160 = scmp.ne.s32.totalorder %s149, %s150
      %p161 = scmp.eq.s32.totalorder %s26, 0
      %p162 = por %p160, %p161
      %p163 = scmp.ne.s32.totalorder %s149, %s150
      %p164 = scmp.eq.s32.totalorder %s27, 3
      %p165 = por %p163, %p164
      %p167 = scmp.ne.s32.totalorder %s150, %s166
      %p168 = scmp.eq.s32.totalorder %s27, 0
      %p169 = por %p167, %p168
      %p170 = scmp.le.s32.totalorder 1, %s21
      %p171 = scmp.lt.s32.totalorder %s21, 5
      %p172 = pnand %p170, %p171
      %p173 = pneg %p172
      // Predicated region
      $region9: #{tpu_custom_call.1} parent=5 // pred_check
        _
      $region10: #{tpu_custom_call.1} parent=5 // pred_check_branch
        %175 = sbr.rel (%p172) target = $region12
      $region11: #{tpu_custom_call.1} parent=5 // pred_region
        %s176 = ssub.s32 %s21, 1
        // Predicated region
        $region13: #{tpu_custom_call.1} parent=11 // pred_check
          %p177 = pneg %p94
        $region14: #{tpu_custom_call.1} parent=11 // pred_check_branch
          %179 = sbr.rel (%p177) target = $region16
        $region15: #{tpu_custom_call.1} parent=11 // pred_region
          %s181 = ssub.s32 1024, 1024
          %182 = vsyncadd [#allocation6], %s181
          %s183 = sshll.u32 [#allocation7], 4
          %s184 = int_to_ptr.vmem [resolvable:$true] %s183
          %189 = dma.hbm_to_vmem [thread:$0]  %s2, 1024, %s184, [#allocation6], 64, 64, 4
        $region16: #{tpu_custom_call.1} parent=11 // pred_fallthru
          _
        // Predicated region
        $region17: #{tpu_custom_call.1} parent=11 // pred_check
          %p190 = pneg %p115
        $region18: #{tpu_custom_call.1} parent=11 // pred_check_branch
          %192 = sbr.rel (%p190) target = $region20
        $region19: #{tpu_custom_call.1} parent=11 // pred_region
          %s194 = ssub.s32 1024, 1024
          %195 = vsyncadd [#allocation9], %s194
          %s196 = sshll.u32 [#allocation8], 4
          %s197 = int_to_ptr.vmem [resolvable:$true] %s196
          %202 = dma.hbm_to_vmem [thread:$0]  %s3, 1024, %s197, [#allocation9], 64, 64, 4
        $region20: #{tpu_custom_call.1} parent=11 // pred_fallthru
          _
        // Predicated region
        $region21: #{tpu_custom_call.1} parent=11 // pred_check
          %p203 = pneg %p136
        $region22: #{tpu_custom_call.1} parent=11 // pred_check_branch
          %205 = sbr.rel (%p203) target = $region24
        $region23: #{tpu_custom_call.1} parent=11 // pred_region
          %s207 = ssub.s32 1024, 1024
          %208 = vsyncadd [#allocation9], %s207
          %s209 = sshll.u32 [#allocation10], 4
          %s210 = int_to_ptr.vmem [resolvable:$true] %s209
          %215 = dma.hbm_to_vmem [thread:$0]  %s4, 1024, %s210, [#allocation9], 64, 64, 4
        $region24: #{tpu_custom_call.1} parent=11 // pred_fallthru
          _
      $region12: #{tpu_custom_call.1} parent=5 // pred_fallthru
        _
      %p216 = scmp.lt.s32.totalorder %s21, 4
      // Predicated region
      $region25: #{tpu_custom_call.1} parent=5 // pred_check
        %p217 = pneg %p216
      $region26: #{tpu_custom_call.1} parent=5 // pred_check_branch
        %219 = sbr.rel (%p217) target = $region28
      $region27: #{tpu_custom_call.1} parent=5 // pred_region
        // Predicated region
        $region29: #{tpu_custom_call.1} parent=27 // pred_check
          %p220 = pneg %p41
        $region30: #{tpu_custom_call.1} parent=27 // pred_check_branch
          %222 = sbr.rel (%p220) target = $region32
        $region31: #{tpu_custom_call.1} parent=27 // pred_region
          %s223 = sand.u32 %s31, 1
          %s224 = scalar_lea.sflag [#allocation3], %s223
          %s225 = sand.u32 %s31, 1
          %s226 = smul.addr %s225, 8
          %s227 = scalar_lea.vmem [#allocation2], %s226
          %s228 = smul.u32 2, %s21
          %s230 = ssub.s32 128, 128
          %231 = vsyncadd %s224, %s230
          %s232 = smul.addr %s228, 64
          %s233 = scalar_lea.hbm %s0, %s232
          %s234 = sshll.u32 %s227, 4
          %s235 = int_to_ptr.vmem [resolvable:$true] %s234
          %240 = dma.hbm_to_vmem [thread:$0]  %s233, 128, %s235, %s224, 64, 64, 4
        $region32: #{tpu_custom_call.1} parent=27 // pred_fallthru
          _
        // Predicated region
        $region33: #{tpu_custom_call.1} parent=27 // pred_check
          %p241 = pneg %p67
        $region34: #{tpu_custom_call.1} parent=27 // pred_check_branch
          %243 = sbr.rel (%p241) target = $region36
        $region35: #{tpu_custom_call.1} parent=27 // pred_region
          %s244 = sand.u32 %s21, 1
          %s245 = scalar_lea.sflag [#allocation6], %s244
          %s246 = sand.u32 %s57, 1
          %s247 = smul.addr %s246, 128
          %s248 = scalar_lea.vmem [#allocation5], %s247
          %s249 = smul.u32 16, %s21
          %s251 = ssub.s32 2048, 2048
          %252 = vsyncadd %s245, %s251
          %s253 = smul.addr %s249, 2
          %s254 = smul.addr %s253, 64
          %s255 = scalar_lea.hbm %s1, %s254
          %s256 = sshll.u32 %s248, 4
          %s257 = int_to_ptr.vmem [resolvable:$true] %s256
          %262 = dma.hbm_to_vmem [thread:$0]  %s255, 2048, %s257, %s245, 64, 64, 4
        $region36: #{tpu_custom_call.1} parent=27 // pred_fallthru
          _
      $region28: #{tpu_custom_call.1} parent=5 // pred_fallthru
        _
      %p263 = scmp.le.s32.totalorder 1, %s21
      %p264 = scmp.lt.s32.totalorder %s21, 5
      %p265 = pnand %p263, %p264
      %p266 = pneg %p265
      // Predicated region
      $region37: #{tpu_custom_call.1} parent=5 // pred_check
        _
      $region38: #{tpu_custom_call.1} parent=5 // pred_check_branch
        %268 = sbr.rel (%p265) target = $region40
      $region39: #{tpu_custom_call.1} parent=5 // pred_region
        %s269 = ssub.s32 %s21, 1
        %s270 = sand.u32 %s34, 1
        %s271 = scalar_lea.sflag [#allocation3], %s270
        %s272 = sand.u32 %s34, 1
        %s273 = smul.addr %s272, 8
        %s274 = scalar_lea.vmem [#allocation2], %s273
        // Predicated region
        $region41: #{tpu_custom_call.1} parent=39 // pred_check
          %p275 = pneg %p47
        $region42: #{tpu_custom_call.1} parent=39 // pred_check_branch
          %277 = sbr.rel (%p275) target = $region44
        $region43: #{tpu_custom_call.1} parent=39 // pred_region
          %278 = dma.done %s271, 128
        $region44: #{tpu_custom_call.1} parent=39 // pred_fallthru
          _
        %s279 = sand.u32 %s26, 1
        %s280 = scalar_lea.sflag [#allocation6], %s279
        %s281 = sand.u32 %s60, 1
        %s282 = smul.addr %s281, 128
        %s283 = scalar_lea.vmem [#allocation5], %s282
        // Predicated region
        $region45: #{tpu_custom_call.1} parent=39 // pred_check
          %p284 = pneg %p73
        $region46: #{tpu_custom_call.1} parent=39 // pred_check_branch
          %286 = sbr.rel (%p284) target = $region48
        $region47: #{tpu_custom_call.1} parent=39 // pred_region
          %287 = dma.done %s280, 2048
        $region48: #{tpu_custom_call.1} parent=39 // pred_fallthru
          _
        // Predicated region
        $region49: #{tpu_custom_call.1} parent=39 // pred_check
          %p288 = pneg %p94
        $region50: #{tpu_custom_call.1} parent=39 // pred_check_branch
          %290 = sbr.rel (%p288) target = $region52
        $region51: #{tpu_custom_call.1} parent=39 // pred_region
          %291 = dma.done [#allocation6], 1024
        $region52: #{tpu_custom_call.1} parent=39 // pred_fallthru
          _
        // Predicated region
        $region53: #{tpu_custom_call.1} parent=39 // pred_check
          %p292 = pneg %p115
        $region54: #{tpu_custom_call.1} parent=39 // pred_check_branch
          %294 = sbr.rel (%p292) target = $region56
        $region55: #{tpu_custom_call.1} parent=39 // pred_region
          %295 = dma.done [#allocation9], 1024
        $region56: #{tpu_custom_call.1} parent=39 // pred_fallthru
          _
        // Predicated region
        $region57: #{tpu_custom_call.1} parent=39 // pred_check
          %p296 = pneg %p136
        $region58: #{tpu_custom_call.1} parent=39 // pred_check_branch
          %298 = sbr.rel (%p296) target = $region60
        $region59: #{tpu_custom_call.1} parent=39 // pred_region
          %299 = dma.done [#allocation9], 1024
        $region60: #{tpu_custom_call.1} parent=39 // pred_fallthru
          _
        %s300 = sand.u32 %s34, 1
        %s301 = scalar_lea.sflag [#allocation3], %s300
        %s302 = sand.u32 %s34, 1
        %s303 = smul.addr %s302, 8
        %s304 = scalar_lea.vmem [#allocation2], %s303
        %p305 = pneg %p47
        %p306 = pneg %p44
        %s307 = sand.u32 %s26, 1
        %s308 = scalar_lea.sflag [#allocation6], %s307
        %s309 = sand.u32 %s60, 1
        %s310 = smul.addr %s309, 128
        %s311 = scalar_lea.vmem [#allocation5], %s310
        %p312 = pneg %p73
        %p313 = pneg %p70
        %p314 = pneg %p94
        %p315 = pneg %p91
        %p316 = pneg %p115
        %p317 = pneg %p112
        %p318 = pneg %p136
        %p319 = pneg %p133
        %p320 = pneg %p162
        %p321 = pneg %p159
        %s322 = sand.u32 %s149, 1
        %s323 = scalar_lea.sflag [#allocation4], %s322
        %s324 = sand.u32 %s149, 1
        %s325 = smul.addr %s324, 16
        %s326 = scalar_lea.vmem [#allocation11], %s325
        %s327 = smul.u32 2, %s26
        %s328 = smul.u32 16, %s26
        %s329 = smul.u32 2, %s26
        %v331 = vld [vmem:[%s274] sm:$0xf]
        %v332 = vld [vmem:[%s274 + $0x4] sm:$0xf]
        %v333 = vld [vmem:[%s283] sm:$0xf]
        %v334 = vld [vmem:[%s283 + $0x4] sm:$0xf]
        %v335 = vld [vmem:[%s283 + $0x8] sm:$0xf]
        %v336 = vld [vmem:[%s283 + $0xc] sm:$0xf]
        %v337 = vld [vmem:[%s283 + $0x10] sm:$0xf]
        %v338 = vld [vmem:[%s283 + $0x14] sm:$0xf]
        %v339 = vld [vmem:[%s283 + $0x18] sm:$0xf]
        %v340 = vld [vmem:[%s283 + $0x1c] sm:$0xf]
        %v341 = vld [vmem:[%s283 + $0x20] sm:$0xf]
        %v342 = vld [vmem:[%s283 + $0x24] sm:$0xf]
        %v343 = vld [vmem:[%s283 + $0x28] sm:$0xf]
        %v344 = vld [vmem:[%s283 + $0x2c] sm:$0xf]
        %v345 = vld [vmem:[%s283 + $0x30] sm:$0xf]
        %v346 = vld [vmem:[%s283 + $0x34] sm:$0xf]
        %v347 = vld [vmem:[%s283 + $0x38] sm:$0xf]
        %v348 = vld [vmem:[%s283 + $0x3c] sm:$0xf]
        %v349 = vld [vmem:[%s283 + $0x40] sm:$0xf]
        %v350 = vld [vmem:[%s283 + $0x44] sm:$0xf]
        %v351 = vld [vmem:[%s283 + $0x48] sm:$0xf]
        %v352 = vld [vmem:[%s283 + $0x4c] sm:$0xf]
        %v353 = vld [vmem:[%s283 + $0x50] sm:$0xf]
        %v354 = vld [vmem:[%s283 + $0x54] sm:$0xf]
        %v355 = vld [vmem:[%s283 + $0x58] sm:$0xf]
        %v356 = vld [vmem:[%s283 + $0x5c] sm:$0xf]
        %v357 = vld [vmem:[%s283 + $0x60] sm:$0xf]
        %v358 = vld [vmem:[%s283 + $0x64] sm:$0xf]
        %v359 = vld [vmem:[%s283 + $0x68] sm:$0xf]
        %v360 = vld [vmem:[%s283 + $0x6c] sm:$0xf]
        %v361 = vld [vmem:[%s283 + $0x70] sm:$0xf]
        %v362 = vld [vmem:[%s283 + $0x74] sm:$0xf]
        %v363 = vld [vmem:[%s283 + $0x78] sm:$0xf]
        %v364 = vld [vmem:[%s283 + $0x7c] sm:$0xf]
        %v365 = vld [vmem:[#allocation7] sm:$0xf]
        %v366 = vld [vmem:[#allocation7 + $0x4] sm:$0xf]
        %v367 = vld [vmem:[#allocation7 + $0x8] sm:$0xf]
        %v368 = vld [vmem:[#allocation7 + $0xc] sm:$0xf]
        %v369 = vld [vmem:[#allocation7 + $0x10] sm:$0xf]
        %v370 = vld [vmem:[#allocation7 + $0x14] sm:$0xf]
        %v371 = vld [vmem:[#allocation7 + $0x18] sm:$0xf]
        %v372 = vld [vmem:[#allocation7 + $0x1c] sm:$0xf]
        %v373 = vld [vmem:[#allocation7 + $0x20] sm:$0xf]
        %v374 = vld [vmem:[#allocation7 + $0x24] sm:$0xf]
        %v375 = vld [vmem:[#allocation7 + $0x28] sm:$0xf]
        %v376 = vld [vmem:[#allocation7 + $0x2c] sm:$0xf]
        %v377 = vld [vmem:[#allocation7 + $0x30] sm:$0xf]
        %v378 = vld [vmem:[#allocation7 + $0x34] sm:$0xf]
        %v379 = vld [vmem:[#allocation7 + $0x38] sm:$0xf]
        %v380 = vld [vmem:[#allocation7 + $0x3c] sm:$0xf]
        %v381 = vld [vmem:[#allocation8] sm:$0xf]
        %v382 = vld [vmem:[#allocation8 + $0x4] sm:$0xf]
        %v383 = vld [vmem:[#allocation8 + $0x8] sm:$0xf]
        %v384 = vld [vmem:[#allocation8 + $0xc] sm:$0xf]
        %v385 = vld [vmem:[#allocation8 + $0x10] sm:$0xf]
        %v386 = vld [vmem:[#allocation8 + $0x14] sm:$0xf]
        %v387 = vld [vmem:[#allocation8 + $0x18] sm:$0xf]
        %v388 = vld [vmem:[#allocation8 + $0x1c] sm:$0xf]
        %v389 = vld [vmem:[#allocation8 + $0x20] sm:$0xf]
        %v390 = vld [vmem:[#allocation8 + $0x24] sm:$0xf]
        %v391 = vld [vmem:[#allocation8 + $0x28] sm:$0xf]
        %v392 = vld [vmem:[#allocation8 + $0x2c] sm:$0xf]
        %v393 = vld [vmem:[#allocation8 + $0x30] sm:$0xf]
        %v394 = vld [vmem:[#allocation8 + $0x34] sm:$0xf]
        %v395 = vld [vmem:[#allocation8 + $0x38] sm:$0xf]
        %v396 = vld [vmem:[#allocation8 + $0x3c] sm:$0xf]
        %v397 = vld [vmem:[#allocation10] sm:$0xf]
        %v398 = vld [vmem:[#allocation10 + $0x4] sm:$0xf]
        %v399 = vld [vmem:[#allocation10 + $0x8] sm:$0xf]
        %v400 = vld [vmem:[#allocation10 + $0xc] sm:$0xf]
        %v401 = vld [vmem:[#allocation10 + $0x10] sm:$0xf]
        %v402 = vld [vmem:[#allocation10 + $0x14] sm:$0xf]
        %v403 = vld [vmem:[#allocation10 + $0x18] sm:$0xf]
        %v404 = vld [vmem:[#allocation10 + $0x1c] sm:$0xf]
        %v405 = vld [vmem:[#allocation10 + $0x20] sm:$0xf]
        %v406 = vld [vmem:[#allocation10 + $0x24] sm:$0xf]
        %v407 = vld [vmem:[#allocation10 + $0x28] sm:$0xf]
        %v408 = vld [vmem:[#allocation10 + $0x2c] sm:$0xf]
        %v409 = vld [vmem:[#allocation10 + $0x30] sm:$0xf]
        %v410 = vld [vmem:[#allocation10 + $0x34] sm:$0xf]
        %v411 = vld [vmem:[#allocation10 + $0x38] sm:$0xf]
        %v412 = vld [vmem:[#allocation10 + $0x3c] sm:$0xf]
        %v415 = vunpack.c.l.b16 %v331
        %v416 = vunpack.c.l.b16 %v332
        %v417 = vpack.c.b16 %v416, %v415
        %v435 = vunpack.c.l.b16 %v365
        %v436 = vunpack.c.l.b16 %v366
        %v437 = vunpack.c.l.b16 %v367
        %v438 = vunpack.c.l.b16 %v368
        %v439 = vunpack.c.l.b16 %v369
        %v440 = vunpack.c.l.b16 %v370
        %v441 = vunpack.c.l.b16 %v371
        %v442 = vunpack.c.l.b16 %v372
        %v443 = vunpack.c.l.b16 %v373
        %v444 = vunpack.c.l.b16 %v374
        %v445 = vunpack.c.l.b16 %v375
        %v446 = vunpack.c.l.b16 %v376
        %v447 = vunpack.c.l.b16 %v377
        %v448 = vunpack.c.l.b16 %v378
        %v449 = vunpack.c.l.b16 %v379
        %v450 = vunpack.c.l.b16 %v380
        %v451 = vpack.c.b16 %v436, %v435
        %v452 = vpack.c.b16 %v438, %v437
        %v453 = vpack.c.b16 %v440, %v439
        %v454 = vpack.c.b16 %v442, %v441
        %v455 = vpack.c.b16 %v444, %v443
        %v456 = vpack.c.b16 %v446, %v445
        %v457 = vpack.c.b16 %v448, %v447
        %v458 = vpack.c.b16 %v450, %v449
        %467 = vmatprep.subr.bf16.mxu0 0
        %468 = vmatpush1.bf16.msra.mxu0 %v451
        %469 = vmatprep.subr.bf16.mxu0 0
        %470 = vmatpush1.bf16.msra.mxu0 %v452
        %471 = vmatprep.subr.bf16.mxu0 0
        %472 = vmatpush1.bf16.msra.mxu0 %v453
        %473 = vmatprep.subr.bf16.mxu0 0
        %474 = vmatpush1.bf16.msra.mxu0 %v454
        %475 = vmatprep.subr.bf16.mxu0 0
        %476 = vmatpush1.bf16.msra.mxu0 %v455
        %477 = vmatprep.subr.bf16.mxu0 0
        %478 = vmatpush1.bf16.msra.mxu0 %v456
        %479 = vmatprep.subr.bf16.mxu0 0
        %480 = vmatpush1.bf16.msra.mxu0 %v457
        %481 = vmatprep.subr.bf16.mxu0 0
        %482 = vmatpush1.bf16.msra.mxu0 %v458
        %483 = vmatprep.subr.bf16.mxu0 0
        %484 = vmatpush1.bf16.msra.mxu0 0
        %485 = vmatprep.subr.bf16.mxu0 0
        %486 = vmatpush1.bf16.msra.mxu0 0
        %487 = vmatprep.subr.bf16.mxu0 0
        %488 = vmatpush1.bf16.msra.mxu0 0
        %489 = vmatprep.subr.bf16.mxu0 0
        %490 = vmatpush1.bf16.msra.mxu0 0
        %491 = vmatprep.subr.bf16.mxu0 0
        %492 = vmatpush1.bf16.msra.mxu0 0
        %493 = vmatprep.subr.bf16.mxu0 0
        %494 = vmatpush1.bf16.msra.mxu0 0
        %495 = vmatprep.subr.bf16.mxu0 0
        %496 = vmatpush1.bf16.msra.mxu0 0
        %497 = vmatprep.subr.bf16.mxu0 0
        %498 = vmatpush1.bf16.msra.mxu0 0
        %499 = vmatprep.mubr.bf16.mxu0 0
        %500 = vmatmul.mubr.bf16.gmra.mrb[0].mxu0 %v417
        %v501 = vpop.f32.mrb[0].mxu0
        %v502 = vadd.f32 0.0, %v501
        %v503 = vpop.f32.mrb[0].mxu0
        %v504 = vpop.f32.mrb[0].mxu0
        %v505 = vadd.f32 0.0, %v504
        %v506 = vpop.f32.mrb[0].mxu0
        %507 = vdwg.mxu0
        %v510 = vcombine.high %v502, %v502
        %v512 = vunpack.c.l.s4 1966171168
        %v513 = vunpack.c.0.s8 %v512
        %v514 = vlaneseq
        %v515 = vshrl.u32 %v514, 7
        %v516 = vsub.s32 %v513, %v515
        %v517 = vrot.slane %v502, %v516
        %v519 = vunpack.c.l.s4 1966171168
        %v520 = vunpack.c.0.s8 %v519
        %v521 = vlaneseq
        %v522 = vshrl.u32 %v521, 7
        %v523 = vsub.s32 %v520, %v522
        %v524 = vrot.slane %v510, %v523
        %v525 = vcombine.high %v517, %v517
        %v526 = vcombine.high %v524, %v524
        %v528 = vunpack.c.l.s4 1966171168
        %v529 = vunpack.c.0.s8 %v528
        %v530 = vlaneseq
        %v531 = vshrl.u32 %v530, 7
        %v532 = vsub.s32 %v529, %v531
        %v533 = vrot.slane %v517, %v532
        %v535 = vunpack.c.l.s4 1966171168
        %v536 = vunpack.c.0.s8 %v535
        %v537 = vlaneseq
        %v538 = vshrl.u32 %v537, 7
        %v539 = vsub.s32 %v536, %v538
        %v540 = vrot.slane %v524, %v539
        %v542 = vunpack.c.l.s4 1966171168
        %v543 = vunpack.c.0.s8 %v542
        %v544 = vlaneseq
        %v545 = vshrl.u32 %v544, 7
        %v546 = vsub.s32 %v543, %v545
        %v547 = vrot.slane %v525, %v546
        %v549 = vunpack.c.l.s4 1966171168
        %v550 = vunpack.c.0.s8 %v549
        %v551 = vlaneseq
        %v552 = vshrl.u32 %v551, 7
        %v553 = vsub.s32 %v550, %v552
        %v554 = vrot.slane %v526, %v553
        %v555 = vcombine.high %v533, %v533
        %v556 = vcombine.high %v540, %v540
        %v557 = vcombine.high %v547, %v547
        %v558 = vcombine.high %v554, %v554
        %v559 = vcombine.high %v505, %v505
        %v561 = vunpack.c.l.s4 1966171168
        %v562 = vunpack.c.0.s8 %v561
        %v563 = vlaneseq
        %v564 = vshrl.u32 %v563, 7
        %v565 = vsub.s32 %v562, %v564
        %v566 = vrot.slane %v505, %v565
        %v568 = vunpack.c.l.s4 1966171168
        %v569 = vunpack.c.0.s8 %v568
        %v570 = vlaneseq
        %v571 = vshrl.u32 %v570, 7
        %v572 = vsub.s32 %v569, %v571
        %v573 = vrot.slane %v559, %v572
        %v574 = vcombine.high %v566, %v566
        %v575 = vcombine.high %v573, %v573
        %v577 = vunpack.c.l.s4 1966171168
        %v578 = vunpack.c.0.s8 %v577
        %v579 = vlaneseq
        %v580 = vshrl.u32 %v579, 7
        %v581 = vsub.s32 %v578, %v580
        %v582 = vrot.slane %v566, %v581
        %v584 = vunpack.c.l.s4 1966171168
        %v585 = vunpack.c.0.s8 %v584
        %v586 = vlaneseq
        %v587 = vshrl.u32 %v586, 7
        %v588 = vsub.s32 %v585, %v587
        %v589 = vrot.slane %v573, %v588
        %v591 = vunpack.c.l.s4 1966171168
        %v592 = vunpack.c.0.s8 %v591
        %v593 = vlaneseq
        %v594 = vshrl.u32 %v593, 7
        %v595 = vsub.s32 %v592, %v594
        %v596 = vrot.slane %v574, %v595
        %v598 = vunpack.c.l.s4 1966171168
        %v599 = vunpack.c.0.s8 %v598
        %v600 = vlaneseq
        %v601 = vshrl.u32 %v600, 7
        %v602 = vsub.s32 %v599, %v601
        %v603 = vrot.slane %v575, %v602
        %v604 = vcombine.high %v582, %v582
        %v605 = vcombine.high %v589, %v589
        %v606 = vcombine.high %v596, %v596
        %v607 = vcombine.high %v603, %v603
        %v656 = vunpack.c.l.b16 %v333
        %v657 = vunpack.c.l.b16 %v334
        %v658 = vunpack.c.l.b16 %v335
        %v659 = vunpack.c.l.b16 %v336
        %v660 = vunpack.c.l.b16 %v337
        %v661 = vunpack.c.l.b16 %v338
        %v662 = vunpack.c.l.b16 %v339
        %v663 = vunpack.c.l.b16 %v340
        %v664 = vunpack.c.l.b16 %v341
        %v665 = vunpack.c.l.b16 %v342
        %v666 = vunpack.c.l.b16 %v343
        %v667 = vunpack.c.l.b16 %v344
        %v668 = vunpack.c.l.b16 %v345
        %v669 = vunpack.c.l.b16 %v346
        %v670 = vunpack.c.l.b16 %v347
        %v671 = vunpack.c.l.b16 %v348
        %v672 = vunpack.c.l.b16 %v349
        %v673 = vunpack.c.l.b16 %v350
        %v674 = vunpack.c.l.b16 %v351
        %v675 = vunpack.c.l.b16 %v352
        %v676 = vunpack.c.l.b16 %v353
        %v677 = vunpack.c.l.b16 %v354
        %v678 = vunpack.c.l.b16 %v355
        %v679 = vunpack.c.l.b16 %v356
        %v680 = vunpack.c.l.b16 %v357
        %v681 = vunpack.c.l.b16 %v358
        %v682 = vunpack.c.l.b16 %v359
        %v683 = vunpack.c.l.b16 %v360
        %v684 = vunpack.c.l.b16 %v361
        %v685 = vunpack.c.l.b16 %v362
        %v686 = vunpack.c.l.b16 %v363
        %v687 = vunpack.c.l.b16 %v364
        %v688 = vpack.c.b16 %v657, %v656
        %v689 = vpack.c.b16 %v659, %v658
        %v690 = vpack.c.b16 %v661, %v660
        %v691 = vpack.c.b16 %v663, %v662
        %v692 = vpack.c.b16 %v665, %v664
        %v693 = vpack.c.b16 %v667, %v666
        %v694 = vpack.c.b16 %v669, %v668
        %v695 = vpack.c.b16 %v671, %v670
        %v696 = vpack.c.b16 %v673, %v672
        %v697 = vpack.c.b16 %v675, %v674
        %v698 = vpack.c.b16 %v677, %v676
        %v699 = vpack.c.b16 %v679, %v678
        %v700 = vpack.c.b16 %v681, %v680
        %v701 = vpack.c.b16 %v683, %v682
        %v702 = vpack.c.b16 %v685, %v684
        %v703 = vpack.c.b16 %v687, %v686
        %v736 = vunpack.c.l.b16 %v381
        %v737 = vunpack.c.l.b16 %v382
        %v738 = vunpack.c.l.b16 %v383
        %v739 = vunpack.c.l.b16 %v384
        %v740 = vunpack.c.l.b16 %v385
        %v741 = vunpack.c.l.b16 %v386
        %v742 = vunpack.c.l.b16 %v387
        %v743 = vunpack.c.l.b16 %v388
        %v744 = vunpack.c.l.b16 %v389
        %v745 = vunpack.c.l.b16 %v390
        %v746 = vunpack.c.l.b16 %v391
        %v747 = vunpack.c.l.b16 %v392
        %v748 = vunpack.c.l.b16 %v393
        %v749 = vunpack.c.l.b16 %v394
        %v750 = vunpack.c.l.b16 %v395
        %v751 = vunpack.c.l.b16 %v396
        %v752 = vpack.c.b16 %v737, %v736
        %v753 = vpack.c.b16 %v739, %v738
        %v754 = vpack.c.b16 %v741, %v740
        %v755 = vpack.c.b16 %v743, %v742
        %v756 = vpack.c.b16 %v745, %v744
        %v757 = vpack.c.b16 %v747, %v746
        %v758 = vpack.c.b16 %v749, %v748
        %v759 = vpack.c.b16 %v751, %v750
        %768 = vmatprep.subr.bf16.mxu0 0
        %769 = vmatpush1.bf16.msra.mxu0 %v752
        %770 = vmatprep.subr.bf16.mxu0 0
        %771 = vmatpush1.bf16.msra.mxu0 %v753
        %772 = vmatprep.subr.bf16.mxu0 0
        %773 = vmatpush1.bf16.msra.mxu0 %v754
        %774 = vmatprep.subr.bf16.mxu0 0
        %775 = vmatpush1.bf16.msra.mxu0 %v755
        %776 = vmatprep.subr.bf16.mxu0 0
        %777 = vmatpush1.bf16.msra.mxu0 %v756
        %778 = vmatprep.subr.bf16.mxu0 0
        %779 = vmatpush1.bf16.msra.mxu0 %v757
        %780 = vmatprep.subr.bf16.mxu0 0
        %781 = vmatpush1.bf16.msra.mxu0 %v758
        %782 = vmatprep.subr.bf16.mxu0 0
        %783 = vmatpush1.bf16.msra.mxu0 %v759
        %784 = vmatprep.subr.bf16.mxu0 0
        %785 = vmatpush1.bf16.msra.mxu0 0
        %786 = vmatprep.subr.bf16.mxu0 0
        %787 = vmatpush1.bf16.msra.mxu0 0
        %788 = vmatprep.subr.bf16.mxu0 0
        %789 = vmatpush1.bf16.msra.mxu0 0
        %790 = vmatprep.subr.bf16.mxu0 0
        %791 = vmatpush1.bf16.msra.mxu0 0
        %792 = vmatprep.subr.bf16.mxu0 0
        %793 = vmatpush1.bf16.msra.mxu0 0
        %794 = vmatprep.subr.bf16.mxu0 0
        %795 = vmatpush1.bf16.msra.mxu0 0
        %796 = vmatprep.subr.bf16.mxu0 0
        %797 = vmatpush1.bf16.msra.mxu0 0
        %798 = vmatprep.subr.bf16.mxu0 0
        %799 = vmatpush1.bf16.msra.mxu0 0
        %800 = vmatprep.mubr.bf16.mxu0 0
        %801 = vmatmul.mubr.bf16.gmra.mrb[0].mxu0 %v688
        %v802 = vpop.f32.mrb[0].mxu0
        %v803 = vadd.f32 0.0, %v802
        %v804 = vpop.f32.mrb[0].mxu0
        %v805 = vpop.f32.mrb[0].mxu0
        %v806 = vadd.f32 0.0, %v805
        %v807 = vpop.f32.mrb[0].mxu0
        %808 = vmatprep.mubr.bf16.mxu0 0
        %809 = vmatmul.mubr.bf16.gmra.mrb[0].mxu0 %v689
        %v810 = vpop.f32.mrb[0].mxu0
        %v811 = vadd.f32 0.0, %v810
        %v812 = vpop.f32.mrb[0].mxu0
        %v813 = vpop.f32.mrb[0].mxu0
        %v814 = vadd.f32 0.0, %v813
        %v815 = vpop.f32.mrb[0].mxu0
        %816 = vmatprep.mubr.bf16.mxu0 0
        %817 = vmatmul.mubr.bf16.gmra.mrb[0].mxu0 %v690
        %v818 = vpop.f32.mrb[0].mxu0
        %v819 = vadd.f32 0.0, %v818
        %v820 = vpop.f32.mrb[0].mxu0
        %v821 = vpop.f32.mrb[0].mxu0
        %v822 = vadd.f32 0.0, %v821
        %v823 = vpop.f32.mrb[0].mxu0
        %824 = vmatprep.mubr.bf16.mxu0 0
        %825 = vmatmul.mubr.bf16.gmra.mrb[0].mxu0 %v691
        %v826 = vpop.f32.mrb[0].mxu0
        %v827 = vadd.f32 0.0, %v826
        %v828 = vpop.f32.mrb[0].mxu0
        %v829 = vpop.f32.mrb[0].mxu0
        %v830 = vadd.f32 0.0, %v829
        %v831 = vpop.f32.mrb[0].mxu0
        %832 = vmatprep.mubr.bf16.mxu0 0
        %833 = vmatmul.mubr.bf16.gmra.mrb[0].mxu0 %v692
        %v834 = vpop.f32.mrb[0].mxu0
        %v835 = vadd.f32 0.0, %v834
        %v836 = vpop.f32.mrb[0].mxu0
        %v837 = vpop.f32.mrb[0].mxu0
        %v838 = vadd.f32 0.0, %v837
        %v839 = vpop.f32.mrb[0].mxu0
        %840 = vmatprep.mubr.bf16.mxu0 0
        %841 = vmatmul.mubr.bf16.gmra.mrb[0].mxu0 %v693
        %v842 = vpop.f32.mrb[0].mxu0
        %v843 = vadd.f32 0.0, %v842
        %v844 = vpop.f32.mrb[0].mxu0
        %v845 = vpop.f32.mrb[0].mxu0
        %v846 = vadd.f32 0.0, %v845
        %v847 = vpop.f32.mrb[0].mxu0
        %848 = vmatprep.mubr.bf16.mxu0 0
        %849 = vmatmul.mubr.bf16.gmra.mrb[0].mxu0 %v694
        %v850 = vpop.f32.mrb[0].mxu0
        %v851 = vadd.f32 0.0, %v850
        %v852 = vpop.f32.mrb[0].mxu0
        %v853 = vpop.f32.mrb[0].mxu0
        %v854 = vadd.f32 0.0, %v853
        %v855 = vpop.f32.mrb[0].mxu0
        %856 = vmatprep.mubr.bf16.mxu0 0
        %857 = vmatmul.mubr.bf16.gmra.mrb[0].mxu0 %v695
        %v858 = vpop.f32.mrb[0].mxu0
        %v859 = vadd.f32 0.0, %v858
        %v860 = vpop.f32.mrb[0].mxu0
        %v861 = vpop.f32.mrb[0].mxu0
        %v862 = vadd.f32 0.0, %v861
        %v863 = vpop.f32.mrb[0].mxu0
        %864 = vmatprep.mubr.bf16.mxu0 0
        %865 = vmatmul.mubr.bf16.gmra.mrb[0].mxu0 %v696
        %v866 = vpop.f32.mrb[0].mxu0
        %v867 = vadd.f32 0.0, %v866
        %v868 = vpop.f32.mrb[0].mxu0
        %v869 = vpop.f32.mrb[0].mxu0
        %v870 = vadd.f32 0.0, %v869
        %v871 = vpop.f32.mrb[0].mxu0
        %872 = vmatprep.mubr.bf16.mxu0 0
        %873 = vmatmul.mubr.bf16.gmra.mrb[0].mxu0 %v697
        %v874 = vpop.f32.mrb[0].mxu0
        %v875 = vadd.f32 0.0, %v874
        %v876 = vpop.f32.mrb[0].mxu0
        %v877 = vpop.f32.mrb[0].mxu0
        %v878 = vadd.f32 0.0, %v877
        %v879 = vpop.f32.mrb[0].mxu0
        %880 = vmatprep.mubr.bf16.mxu0 0
        %881 = vmatmul.mubr.bf16.gmra.mrb[0].mxu0 %v698
        %v882 = vpop.f32.mrb[0].mxu0
        %v883 = vadd.f32 0.0, %v882
        %v884 = vpop.f32.mrb[0].mxu0
        %v885 = vpop.f32.mrb[0].mxu0
        %v886 = vadd.f32 0.0, %v885
        %v887 = vpop.f32.mrb[0].mxu0
        %888 = vmatprep.mubr.bf16.mxu0 0
        %889 = vmatmul.mubr.bf16.gmra.mrb[0].mxu0 %v699
        %v890 = vpop.f32.mrb[0].mxu0
        %v891 = vadd.f32 0.0, %v890
        %v892 = vpop.f32.mrb[0].mxu0
        %v893 = vpop.f32.mrb[0].mxu0
        %v894 = vadd.f32 0.0, %v893
        %v895 = vpop.f32.mrb[0].mxu0
        %896 = vmatprep.mubr.bf16.mxu0 0
        %897 = vmatmul.mubr.bf16.gmra.mrb[0].mxu0 %v700
        %v898 = vpop.f32.mrb[0].mxu0
        %v899 = vadd.f32 0.0, %v898
        %v900 = vpop.f32.mrb[0].mxu0
        %v901 = vpop.f32.mrb[0].mxu0
        %v902 = vadd.f32 0.0, %v901
        %v903 = vpop.f32.mrb[0].mxu0
        %904 = vmatprep.mubr.bf16.mxu0 0
        %905 = vmatmul.mubr.bf16.gmra.mrb[0].mxu0 %v701
        %v906 = vpop.f32.mrb[0].mxu0
        %v907 = vadd.f32 0.0, %v906
        %v908 = vpop.f32.mrb[0].mxu0
        %v909 = vpop.f32.mrb[0].mxu0
        %v910 = vadd.f32 0.0, %v909
        %v911 = vpop.f32.mrb[0].mxu0
        %912 = vmatprep.mubr.bf16.mxu0 0
        %913 = vmatmul.mubr.bf16.gmra.mrb[0].mxu0 %v702
        %v914 = vpop.f32.mrb[0].mxu0
        %v915 = vadd.f32 0.0, %v914
        %v916 = vpop.f32.mrb[0].mxu0
        %v917 = vpop.f32.mrb[0].mxu0
        %v918 = vadd.f32 0.0, %v917
        %v919 = vpop.f32.mrb[0].mxu0
        %920 = vmatprep.mubr.bf16.mxu0 0
        %921 = vmatmul.mubr.bf16.gmra.mrb[0].mxu0 %v703
        %v922 = vpop.f32.mrb[0].mxu0
        %v923 = vadd.f32 0.0, %v922
        %v924 = vpop.f32.mrb[0].mxu0
        %v925 = vpop.f32.mrb[0].mxu0
        %v926 = vadd.f32 0.0, %v925
        %v927 = vpop.f32.mrb[0].mxu0
        %928 = vdwg.mxu0
        %929 = vmatprep.subr.mxu0 0.0
        %930 = vmatpush1.xpose.msra.mxu0 %v803
        %931 = vmatprep.subr.mxu0 0.0
        %932 = vmatpush1.xpose.msra.mxu0 %v806
        %933 = vmatprep.subr.mxu0 0.0
        %934 = vmatpush1.xpose.msra.mxu0 0.0
        %935 = vmatprep.subr.mxu0 0.0
        %936 = vmatpush1.xpose.msra.mxu0 0.0
        %937 = vmatprep.subr.mxu0 0.0
        %938 = vmatpush1.xpose.msra.mxu0 0.0
        %939 = vmatprep.subr.mxu0 0.0
        %940 = vmatpush1.xpose.msra.mxu0 0.0
        %941 = vmatprep.subr.mxu0 0.0
        %942 = vmatpush1.xpose.msra.mxu0 0.0
        %943 = vmatprep.subr.mxu0 0.0
        %944 = vmatpush1.xpose.msra.mxu0 0.0
        %945 = vmatprep.subr.mxu0 0.0
        %946 = vmatpush1.xpose.msra.mxu0 0.0
        %947 = vmatprep.subr.mxu0 0.0
        %948 = vmatpush1.xpose.msra.mxu0 0.0
        %949 = vmatprep.subr.mxu0 0.0
        %950 = vmatpush1.xpose.msra.mxu0 0.0
        %951 = vmatprep.subr.mxu0 0.0
        %952 = vmatpush1.xpose.msra.mxu0 0.0
        %953 = vmatprep.subr.mxu0 0.0
        %954 = vmatpush1.xpose.msra.mxu0 0.0
        %955 = vmatprep.subr.mxu0 0.0
        %956 = vmatpush1.xpose.msra.mxu0 0.0
        %957 = vmatprep.subr.mxu0 0.0
        %958 = vmatpush1.xpose.msra.mxu0 0.0
        %959 = vmatprep.subr.mxu0 0.0
        %960 = vmatpush1.xpose.msra.mxu0 0.0
        %961 = vmatprep.subr.mxu0 0.0
        %962 = vmatpush1.xpose.msra.mxu0 0.0
        %963 = vmatprep.subr.mxu0 0.0
        %964 = vmatpush1.xpose.msra.mxu0 0.0
        %965 = vmatprep.subr.mxu0 0.0
        %966 = vmatpush1.xpose.msra.mxu0 0.0
        %967 = vmatprep.subr.mxu0 0.0
        %968 = vmatpush1.xpose.msra.mxu0 0.0
        %969 = vmatprep.subr.mxu0 0.0
        %970 = vmatpush1.xpose.msra.mxu0 0.0
        %971 = vmatprep.subr.mxu0 0.0
        %972 = vmatpush1.xpose.msra.mxu0 0.0
        %973 = vmatprep.subr.mxu0 0.0
        %974 = vmatpush1.xpose.msra.mxu0 0.0
        %975 = vmatprep.subr.mxu0 0.0
        %976 = vmatpush1.xpose.msra.mxu0 0.0
        %977 = vmatprep.subr.mxu0 0.0
        %978 = vmatpush1.xpose.msra.mxu0 0.0
        %979 = vmatprep.subr.mxu0 0.0
        %980 = vmatpush1.xpose.msra.mxu0 0.0
        %981 = vmatprep.subr.mxu0 0.0
        %982 = vmatpush1.xpose.msra.mxu0 0.0
        %983 = vmatprep.subr.mxu0 0.0
        %984 = vmatpush1.xpose.msra.mxu0 0.0
        %985 = vmatprep.subr.mxu0 0.0
        %986 = vmatpush1.xpose.msra.mxu0 0.0
        %987 = vmatprep.subr.mxu0 0.0
        %988 = vmatpush1.xpose.msra.mxu0 0.0
        %989 = vmatprep.subr.mxu0 0.0
        %990 = vmatpush1.xpose.msra.mxu0 0.0
        %991 = vmatprep.subr.mxu0 0.0
        %992 = vmatpush1.xpose.msra.mxu0 0.0
        %993 = vmatprep.mubr.f32.mxu0 0.0
        %994 = vmatmul.mubr.f32.gmra.mrb[0].mxu0 %v533
        %v995 = vpop.f32.mrb[0].mxu0
        %v996 = vadd.f32 0.0, %v995
        %v997 = vpop.f32.mrb[0].mxu0
        %998 = vdwg.mxu0
        %999 = vmatprep.subr.mxu0 0.0
        %1000 = vmatpush1.xpose.msra.mxu0 %v811
        %1001 = vmatprep.subr.mxu0 0.0
        %1002 = vmatpush1.xpose.msra.mxu0 %v814
        %1003 = vmatprep.subr.mxu0 0.0
        %1004 = vmatpush1.xpose.msra.mxu0 0.0
        %1005 = vmatprep.subr.mxu0 0.0
        %1006 = vmatpush1.xpose.msra.mxu0 0.0
        %1007 = vmatprep.subr.mxu0 0.0
        %1008 = vmatpush1.xpose.msra.mxu0 0.0
        %1009 = vmatprep.subr.mxu0 0.0
        %1010 = vmatpush1.xpose.msra.mxu0 0.0
        %1011 = vmatprep.subr.mxu0 0.0
        %1012 = vmatpush1.xpose.msra.mxu0 0.0
        %1013 = vmatprep.subr.mxu0 0.0
        %1014 = vmatpush1.xpose.msra.mxu0 0.0
        %1015 = vmatprep.subr.mxu0 0.0
        %1016 = vmatpush1.xpose.msra.mxu0 0.0
        %1017 = vmatprep.subr.mxu0 0.0
        %1018 = vmatpush1.xpose.msra.mxu0 0.0
        %1019 = vmatprep.subr.mxu0 0.0
        %1020 = vmatpush1.xpose.msra.mxu0 0.0
        %1021 = vmatprep.subr.mxu0 0.0
        %1022 = vmatpush1.xpose.msra.mxu0 0.0
        %1023 = vmatprep.subr.mxu0 0.0
        %1024 = vmatpush1.xpose.msra.mxu0 0.0
        %1025 = vmatprep.subr.mxu0 0.0
        %1026 = vmatpush1.xpose.msra.mxu0 0.0
        %1027 = vmatprep.subr.mxu0 0.0
        %1028 = vmatpush1.xpose.msra.mxu0 0.0
        %1029 = vmatprep.subr.mxu0 0.0
        %1030 = vmatpush1.xpose.msra.mxu0 0.0
        %1031 = vmatprep.subr.mxu0 0.0
        %1032 = vmatpush1.xpose.msra.mxu0 0.0
        %1033 = vmatprep.subr.mxu0 0.0
        %1034 = vmatpush1.xpose.msra.mxu0 0.0
        %1035 = vmatprep.subr.mxu0 0.0
        %1036 = vmatpush1.xpose.msra.mxu0 0.0
        %1037 = vmatprep.subr.mxu0 0.0
        %1038 = vmatpush1.xpose.msra.mxu0 0.0
        %1039 = vmatprep.subr.mxu0 0.0
        %1040 = vmatpush1.xpose.msra.mxu0 0.0
        %1041 = vmatprep.subr.mxu0 0.0
        %1042 = vmatpush1.xpose.msra.mxu0 0.0
        %1043 = vmatprep.subr.mxu0 0.0
        %1044 = vmatpush1.xpose.msra.mxu0 0.0
        %1045 = vmatprep.subr.mxu0 0.0
        %1046 = vmatpush1.xpose.msra.mxu0 0.0
        %1047 = vmatprep.subr.mxu0 0.0
        %1048 = vmatpush1.xpose.msra.mxu0 0.0
        %1049 = vmatprep.subr.mxu0 0.0
        %1050 = vmatpush1.xpose.msra.mxu0 0.0
        %1051 = vmatprep.subr.mxu0 0.0
        %1052 = vmatpush1.xpose.msra.mxu0 0.0
        %1053 = vmatprep.subr.mxu0 0.0
        %1054 = vmatpush1.xpose.msra.mxu0 0.0
        %1055 = vmatprep.subr.mxu0 0.0
        %1056 = vmatpush1.xpose.msra.mxu0 0.0
        %1057 = vmatprep.subr.mxu0 0.0
        %1058 = vmatpush1.xpose.msra.mxu0 0.0
        %1059 = vmatprep.subr.mxu0 0.0
        %1060 = vmatpush1.xpose.msra.mxu0 0.0
        %1061 = vmatprep.subr.mxu0 0.0
        %1062 = vmatpush1.xpose.msra.mxu0 0.0
        %1063 = vmatprep.mubr.f32.mxu0 0.0
        %1064 = vmatmul.mubr.f32.gmra.mrb[0].mxu0 %v547
        %v1065 = vpop.f32.mrb[0].mxu0
        %v1066 = vadd.f32 0.0, %v1065
        %v1067 = vpop.f32.mrb[0].mxu0
        %1068 = vdwg.mxu0
        %1069 = vmatprep.subr.mxu0 0.0
        %1070 = vmatpush1.xpose.msra.mxu0 %v819
        %1071 = vmatprep.subr.mxu0 0.0
        %1072 = vmatpush1.xpose.msra.mxu0 %v822
        %1073 = vmatprep.subr.mxu0 0.0
        %1074 = vmatpush1.xpose.msra.mxu0 0.0
        %1075 = vmatprep.subr.mxu0 0.0
        %1076 = vmatpush1.xpose.msra.mxu0 0.0
        %1077 = vmatprep.subr.mxu0 0.0
        %1078 = vmatpush1.xpose.msra.mxu0 0.0
        %1079 = vmatprep.subr.mxu0 0.0
        %1080 = vmatpush1.xpose.msra.mxu0 0.0
        %1081 = vmatprep.subr.mxu0 0.0
        %1082 = vmatpush1.xpose.msra.mxu0 0.0
        %1083 = vmatprep.subr.mxu0 0.0
        %1084 = vmatpush1.xpose.msra.mxu0 0.0
        %1085 = vmatprep.subr.mxu0 0.0
        %1086 = vmatpush1.xpose.msra.mxu0 0.0
        %1087 = vmatprep.subr.mxu0 0.0
        %1088 = vmatpush1.xpose.msra.mxu0 0.0
        %1089 = vmatprep.subr.mxu0 0.0
        %1090 = vmatpush1.xpose.msra.mxu0 0.0
        %1091 = vmatprep.subr.mxu0 0.0
        %1092 = vmatpush1.xpose.msra.mxu0 0.0
        %1093 = vmatprep.subr.mxu0 0.0
        %1094 = vmatpush1.xpose.msra.mxu0 0.0
        %1095 = vmatprep.subr.mxu0 0.0
        %1096 = vmatpush1.xpose.msra.mxu0 0.0
        %1097 = vmatprep.subr.mxu0 0.0
        %1098 = vmatpush1.xpose.msra.mxu0 0.0
        %1099 = vmatprep.subr.mxu0 0.0
        %1100 = vmatpush1.xpose.msra.mxu0 0.0
        %1101 = vmatprep.subr.mxu0 0.0
        %1102 = vmatpush1.xpose.msra.mxu0 0.0
        %1103 = vmatprep.subr.mxu0 0.0
        %1104 = vmatpush1.xpose.msra.mxu0 0.0
        %1105 = vmatprep.subr.mxu0 0.0
        %1106 = vmatpush1.xpose.msra.mxu0 0.0
        %1107 = vmatprep.subr.mxu0 0.0
        %1108 = vmatpush1.xpose.msra.mxu0 0.0
        %1109 = vmatprep.subr.mxu0 0.0
        %1110 = vmatpush1.xpose.msra.mxu0 0.0
        %1111 = vmatprep.subr.mxu0 0.0
        %1112 = vmatpush1.xpose.msra.mxu0 0.0
        %1113 = vmatprep.subr.mxu0 0.0
        %1114 = vmatpush1.xpose.msra.mxu0 0.0
        %1115 = vmatprep.subr.mxu0 0.0
        %1116 = vmatpush1.xpose.msra.mxu0 0.0
        %1117 = vmatprep.subr.mxu0 0.0
        %1118 = vmatpush1.xpose.msra.mxu0 0.0
        %1119 = vmatprep.subr.mxu0 0.0
        %1120 = vmatpush1.xpose.msra.mxu0 0.0
        %1121 = vmatprep.subr.mxu0 0.0
        %1122 = vmatpush1.xpose.msra.mxu0 0.0
        %1123 = vmatprep.subr.mxu0 0.0
        %1124 = vmatpush1.xpose.msra.mxu0 0.0
        %1125 = vmatprep.subr.mxu0 0.0
        %1126 = vmatpush1.xpose.msra.mxu0 0.0
        %1127 = vmatprep.subr.mxu0 0.0
        %1128 = vmatpush1.xpose.msra.mxu0 0.0
        %1129 = vmatprep.subr.mxu0 0.0
        %1130 = vmatpush1.xpose.msra.mxu0 0.0
        %1131 = vmatprep.subr.mxu0 0.0
        %1132 = vmatpush1.xpose.msra.mxu0 0.0
        %1133 = vmatprep.mubr.f32.mxu0 0.0
        %1134 = vmatmul.mubr.f32.gmra.mrb[0].mxu0 %v555
        %v1135 = vpop.f32.mrb[0].mxu0
        %v1136 = vadd.f32 0.0, %v1135
        %v1137 = vpop.f32.mrb[0].mxu0
        %1138 = vdwg.mxu0
        %1139 = vmatprep.subr.mxu0 0.0
        %1140 = vmatpush1.xpose.msra.mxu0 %v827
        %1141 = vmatprep.subr.mxu0 0.0
        %1142 = vmatpush1.xpose.msra.mxu0 %v830
        %1143 = vmatprep.subr.mxu0 0.0
        %1144 = vmatpush1.xpose.msra.mxu0 0.0
        %1145 = vmatprep.subr.mxu0 0.0
        %1146 = vmatpush1.xpose.msra.mxu0 0.0
        %1147 = vmatprep.subr.mxu0 0.0
        %1148 = vmatpush1.xpose.msra.mxu0 0.0
        %1149 = vmatprep.subr.mxu0 0.0
        %1150 = vmatpush1.xpose.msra.mxu0 0.0
        %1151 = vmatprep.subr.mxu0 0.0
        %1152 = vmatpush1.xpose.msra.mxu0 0.0
        %1153 = vmatprep.subr.mxu0 0.0
        %1154 = vmatpush1.xpose.msra.mxu0 0.0
        %1155 = vmatprep.subr.mxu0 0.0
        %1156 = vmatpush1.xpose.msra.mxu0 0.0
        %1157 = vmatprep.subr.mxu0 0.0
        %1158 = vmatpush1.xpose.msra.mxu0 0.0
        %1159 = vmatprep.subr.mxu0 0.0
        %1160 = vmatpush1.xpose.msra.mxu0 0.0
        %1161 = vmatprep.subr.mxu0 0.0
        %1162 = vmatpush1.xpose.msra.mxu0 0.0
        %1163 = vmatprep.subr.mxu0 0.0
        %1164 = vmatpush1.xpose.msra.mxu0 0.0
        %1165 = vmatprep.subr.mxu0 0.0
        %1166 = vmatpush1.xpose.msra.mxu0 0.0
        %1167 = vmatprep.subr.mxu0 0.0
        %1168 = vmatpush1.xpose.msra.mxu0 0.0
        %1169 = vmatprep.subr.mxu0 0.0
        %1170 = vmatpush1.xpose.msra.mxu0 0.0
        %1171 = vmatprep.subr.mxu0 0.0
        %1172 = vmatpush1.xpose.msra.mxu0 0.0
        %1173 = vmatprep.subr.mxu0 0.0
        %1174 = vmatpush1.xpose.msra.mxu0 0.0
        %1175 = vmatprep.subr.mxu0 0.0
        %1176 = vmatpush1.xpose.msra.mxu0 0.0
        %1177 = vmatprep.subr.mxu0 0.0
        %1178 = vmatpush1.xpose.msra.mxu0 0.0
        %1179 = vmatprep.subr.mxu0 0.0
        %1180 = vmatpush1.xpose.msra.mxu0 0.0
        %1181 = vmatprep.subr.mxu0 0.0
        %1182 = vmatpush1.xpose.msra.mxu0 0.0
        %1183 = vmatprep.subr.mxu0 0.0
        %1184 = vmatpush1.xpose.msra.mxu0 0.0
        %1185 = vmatprep.subr.mxu0 0.0
        %1186 = vmatpush1.xpose.msra.mxu0 0.0
        %1187 = vmatprep.subr.mxu0 0.0
        %1188 = vmatpush1.xpose.msra.mxu0 0.0
        %1189 = vmatprep.subr.mxu0 0.0
        %1190 = vmatpush1.xpose.msra.mxu0 0.0
        %1191 = vmatprep.subr.mxu0 0.0
        %1192 = vmatpush1.xpose.msra.mxu0 0.0
        %1193 = vmatprep.subr.mxu0 0.0
        %1194 = vmatpush1.xpose.msra.mxu0 0.0
        %1195 = vmatprep.subr.mxu0 0.0
        %1196 = vmatpush1.xpose.msra.mxu0 0.0
        %1197 = vmatprep.subr.mxu0 0.0
        %1198 = vmatpush1.xpose.msra.mxu0 0.0
        %1199 = vmatprep.subr.mxu0 0.0
        %1200 = vmatpush1.xpose.msra.mxu0 0.0
        %1201 = vmatprep.subr.mxu0 0.0
        %1202 = vmatpush1.xpose.msra.mxu0 0.0
        %1203 = vmatprep.mubr.f32.mxu0 0.0
        %1204 = vmatmul.mubr.f32.gmra.mrb[0].mxu0 %v557
        %v1205 = vpop.f32.mrb[0].mxu0
        %v1206 = vadd.f32 0.0, %v1205
        %v1207 = vpop.f32.mrb[0].mxu0
        %1208 = vdwg.mxu0
        %1209 = vmatprep.subr.mxu0 0.0
        %1210 = vmatpush1.xpose.msra.mxu0 %v835
        %1211 = vmatprep.subr.mxu0 0.0
        %1212 = vmatpush1.xpose.msra.mxu0 %v838
        %1213 = vmatprep.subr.mxu0 0.0
        %1214 = vmatpush1.xpose.msra.mxu0 0.0
        %1215 = vmatprep.subr.mxu0 0.0
        %1216 = vmatpush1.xpose.msra.mxu0 0.0
        %1217 = vmatprep.subr.mxu0 0.0
        %1218 = vmatpush1.xpose.msra.mxu0 0.0
        %1219 = vmatprep.subr.mxu0 0.0
        %1220 = vmatpush1.xpose.msra.mxu0 0.0
        %1221 = vmatprep.subr.mxu0 0.0
        %1222 = vmatpush1.xpose.msra.mxu0 0.0
        %1223 = vmatprep.subr.mxu0 0.0
        %1224 = vmatpush1.xpose.msra.mxu0 0.0
        %1225 = vmatprep.subr.mxu0 0.0
        %1226 = vmatpush1.xpose.msra.mxu0 0.0
        %1227 = vmatprep.subr.mxu0 0.0
        %1228 = vmatpush1.xpose.msra.mxu0 0.0
        %1229 = vmatprep.subr.mxu0 0.0
        %1230 = vmatpush1.xpose.msra.mxu0 0.0
        %1231 = vmatprep.subr.mxu0 0.0
        %1232 = vmatpush1.xpose.msra.mxu0 0.0
        %1233 = vmatprep.subr.mxu0 0.0
        %1234 = vmatpush1.xpose.msra.mxu0 0.0
        %1235 = vmatprep.subr.mxu0 0.0
        %1236 = vmatpush1.xpose.msra.mxu0 0.0
        %1237 = vmatprep.subr.mxu0 0.0
        %1238 = vmatpush1.xpose.msra.mxu0 0.0
        %1239 = vmatprep.subr.mxu0 0.0
        %1240 = vmatpush1.xpose.msra.mxu0 0.0
        %1241 = vmatprep.subr.mxu0 0.0
        %1242 = vmatpush1.xpose.msra.mxu0 0.0
        %1243 = vmatprep.subr.mxu0 0.0
        %1244 = vmatpush1.xpose.msra.mxu0 0.0
        %1245 = vmatprep.subr.mxu0 0.0
        %1246 = vmatpush1.xpose.msra.mxu0 0.0
        %1247 = vmatprep.subr.mxu0 0.0
        %1248 = vmatpush1.xpose.msra.mxu0 0.0
        %1249 = vmatprep.subr.mxu0 0.0
        %1250 = vmatpush1.xpose.msra.mxu0 0.0
        %1251 = vmatprep.subr.mxu0 0.0
        %1252 = vmatpush1.xpose.msra.mxu0 0.0
        %1253 = vmatprep.subr.mxu0 0.0
        %1254 = vmatpush1.xpose.msra.mxu0 0.0
        %1255 = vmatprep.subr.mxu0 0.0
        %1256 = vmatpush1.xpose.msra.mxu0 0.0
        %1257 = vmatprep.subr.mxu0 0.0
        %1258 = vmatpush1.xpose.msra.mxu0 0.0
        %1259 = vmatprep.subr.mxu0 0.0
        %1260 = vmatpush1.xpose.msra.mxu0 0.0
        %1261 = vmatprep.subr.mxu0 0.0
        %1262 = vmatpush1.xpose.msra.mxu0 0.0
        %1263 = vmatprep.subr.mxu0 0.0
        %1264 = vmatpush1.xpose.msra.mxu0 0.0
        %1265 = vmatprep.subr.mxu0 0.0
        %1266 = vmatpush1.xpose.msra.mxu0 0.0
        %1267 = vmatprep.subr.mxu0 0.0
        %1268 = vmatpush1.xpose.msra.mxu0 0.0
        %1269 = vmatprep.subr.mxu0 0.0
        %1270 = vmatpush1.xpose.msra.mxu0 0.0
        %1271 = vmatprep.subr.mxu0 0.0
        %1272 = vmatpush1.xpose.msra.mxu0 0.0
        %1273 = vmatprep.mubr.f32.mxu0 0.0
        %1274 = vmatmul.mubr.f32.gmra.mrb[0].mxu0 %v540
        %v1275 = vpop.f32.mrb[0].mxu0
        %v1276 = vadd.f32 0.0, %v1275
        %v1277 = vpop.f32.mrb[0].mxu0
        %1278 = vdwg.mxu0
        %1279 = vmatprep.subr.mxu0 0.0
        %1280 = vmatpush1.xpose.msra.mxu0 %v843
        %1281 = vmatprep.subr.mxu0 0.0
        %1282 = vmatpush1.xpose.msra.mxu0 %v846
        %1283 = vmatprep.subr.mxu0 0.0
        %1284 = vmatpush1.xpose.msra.mxu0 0.0
        %1285 = vmatprep.subr.mxu0 0.0
        %1286 = vmatpush1.xpose.msra.mxu0 0.0
        %1287 = vmatprep.subr.mxu0 0.0
        %1288 = vmatpush1.xpose.msra.mxu0 0.0
        %1289 = vmatprep.subr.mxu0 0.0
        %1290 = vmatpush1.xpose.msra.mxu0 0.0
        %1291 = vmatprep.subr.mxu0 0.0
        %1292 = vmatpush1.xpose.msra.mxu0 0.0
        %1293 = vmatprep.subr.mxu0 0.0
        %1294 = vmatpush1.xpose.msra.mxu0 0.0
        %1295 = vmatprep.subr.mxu0 0.0
        %1296 = vmatpush1.xpose.msra.mxu0 0.0
        %1297 = vmatprep.subr.mxu0 0.0
        %1298 = vmatpush1.xpose.msra.mxu0 0.0
        %1299 = vmatprep.subr.mxu0 0.0
        %1300 = vmatpush1.xpose.msra.mxu0 0.0
        %1301 = vmatprep.subr.mxu0 0.0
        %1302 = vmatpush1.xpose.msra.mxu0 0.0
        %1303 = vmatprep.subr.mxu0 0.0
        %1304 = vmatpush1.xpose.msra.mxu0 0.0
        %1305 = vmatprep.subr.mxu0 0.0
        %1306 = vmatpush1.xpose.msra.mxu0 0.0
        %1307 = vmatprep.subr.mxu0 0.0
        %1308 = vmatpush1.xpose.msra.mxu0 0.0
        %1309 = vmatprep.subr.mxu0 0.0
        %1310 = vmatpush1.xpose.msra.mxu0 0.0
        %1311 = vmatprep.subr.mxu0 0.0
        %1312 = vmatpush1.xpose.msra.mxu0 0.0
        %1313 = vmatprep.subr.mxu0 0.0
        %1314 = vmatpush1.xpose.msra.mxu0 0.0
        %1315 = vmatprep.subr.mxu0 0.0
        %1316 = vmatpush1.xpose.msra.mxu0 0.0
        %1317 = vmatprep.subr.mxu0 0.0
        %1318 = vmatpush1.xpose.msra.mxu0 0.0
        %1319 = vmatprep.subr.mxu0 0.0
        %1320 = vmatpush1.xpose.msra.mxu0 0.0
        %1321 = vmatprep.subr.mxu0 0.0
        %1322 = vmatpush1.xpose.msra.mxu0 0.0
        %1323 = vmatprep.subr.mxu0 0.0
        %1324 = vmatpush1.xpose.msra.mxu0 0.0
        %1325 = vmatprep.subr.mxu0 0.0
        %1326 = vmatpush1.xpose.msra.mxu0 0.0
        %1327 = vmatprep.subr.mxu0 0.0
        %1328 = vmatpush1.xpose.msra.mxu0 0.0
        %1329 = vmatprep.subr.mxu0 0.0
        %1330 = vmatpush1.xpose.msra.mxu0 0.0
        %1331 = vmatprep.subr.mxu0 0.0
        %1332 = vmatpush1.xpose.msra.mxu0 0.0
        %1333 = vmatprep.subr.mxu0 0.0
        %1334 = vmatpush1.xpose.msra.mxu0 0.0
        %1335 = vmatprep.subr.mxu0 0.0
        %1336 = vmatpush1.xpose.msra.mxu0 0.0
        %1337 = vmatprep.subr.mxu0 0.0
        %1338 = vmatpush1.xpose.msra.mxu0 0.0
        %1339 = vmatprep.subr.mxu0 0.0
        %1340 = vmatpush1.xpose.msra.mxu0 0.0
        %1341 = vmatprep.subr.mxu0 0.0
        %1342 = vmatpush1.xpose.msra.mxu0 0.0
        %1343 = vmatprep.mubr.f32.mxu0 0.0
        %1344 = vmatmul.mubr.f32.gmra.mrb[0].mxu0 %v554
        %v1345 = vpop.f32.mrb[0].mxu0
        %v1346 = vadd.f32 0.0, %v1345
        %v1347 = vpop.f32.mrb[0].mxu0
        %1348 = vdwg.mxu0
        %1349 = vmatprep.subr.mxu0 0.0
        %1350 = vmatpush1.xpose.msra.mxu0 %v851
        %1351 = vmatprep.subr.mxu0 0.0
        %1352 = vmatpush1.xpose.msra.mxu0 %v854
        %1353 = vmatprep.subr.mxu0 0.0
        %1354 = vmatpush1.xpose.msra.mxu0 0.0
        %1355 = vmatprep.subr.mxu0 0.0
        %1356 = vmatpush1.xpose.msra.mxu0 0.0
        %1357 = vmatprep.subr.mxu0 0.0
        %1358 = vmatpush1.xpose.msra.mxu0 0.0
        %1359 = vmatprep.subr.mxu0 0.0
        %1360 = vmatpush1.xpose.msra.mxu0 0.0
        %1361 = vmatprep.subr.mxu0 0.0
        %1362 = vmatpush1.xpose.msra.mxu0 0.0
        %1363 = vmatprep.subr.mxu0 0.0
        %1364 = vmatpush1.xpose.msra.mxu0 0.0
        %1365 = vmatprep.subr.mxu0 0.0
        %1366 = vmatpush1.xpose.msra.mxu0 0.0
        %1367 = vmatprep.subr.mxu0 0.0
        %1368 = vmatpush1.xpose.msra.mxu0 0.0
        %1369 = vmatprep.subr.mxu0 0.0
        %1370 = vmatpush1.xpose.msra.mxu0 0.0
        %1371 = vmatprep.subr.mxu0 0.0
        %1372 = vmatpush1.xpose.msra.mxu0 0.0
        %1373 = vmatprep.subr.mxu0 0.0
        %1374 = vmatpush1.xpose.msra.mxu0 0.0
        %1375 = vmatprep.subr.mxu0 0.0
        %1376 = vmatpush1.xpose.msra.mxu0 0.0
        %1377 = vmatprep.subr.mxu0 0.0
        %1378 = vmatpush1.xpose.msra.mxu0 0.0
        %1379 = vmatprep.subr.mxu0 0.0
        %1380 = vmatpush1.xpose.msra.mxu0 0.0
        %1381 = vmatprep.subr.mxu0 0.0
        %1382 = vmatpush1.xpose.msra.mxu0 0.0
        %1383 = vmatprep.subr.mxu0 0.0
        %1384 = vmatpush1.xpose.msra.mxu0 0.0
        %1385 = vmatprep.subr.mxu0 0.0
        %1386 = vmatpush1.xpose.msra.mxu0 0.0
        %1387 = vmatprep.subr.mxu0 0.0
        %1388 = vmatpush1.xpose.msra.mxu0 0.0
        %1389 = vmatprep.subr.mxu0 0.0
        %1390 = vmatpush1.xpose.msra.mxu0 0.0
        %1391 = vmatprep.subr.mxu0 0.0
        %1392 = vmatpush1.xpose.msra.mxu0 0.0
        %1393 = vmatprep.subr.mxu0 0.0
        %1394 = vmatpush1.xpose.msra.mxu0 0.0
        %1395 = vmatprep.subr.mxu0 0.0
        %1396 = vmatpush1.xpose.msra.mxu0 0.0
        %1397 = vmatprep.subr.mxu0 0.0
        %1398 = vmatpush1.xpose.msra.mxu0 0.0
        %1399 = vmatprep.subr.mxu0 0.0
        %1400 = vmatpush1.xpose.msra.mxu0 0.0
        %1401 = vmatprep.subr.mxu0 0.0
        %1402 = vmatpush1.xpose.msra.mxu0 0.0
        %1403 = vmatprep.subr.mxu0 0.0
        %1404 = vmatpush1.xpose.msra.mxu0 0.0
        %1405 = vmatprep.subr.mxu0 0.0
        %1406 = vmatpush1.xpose.msra.mxu0 0.0
        %1407 = vmatprep.subr.mxu0 0.0
        %1408 = vmatpush1.xpose.msra.mxu0 0.0
        %1409 = vmatprep.subr.mxu0 0.0
        %1410 = vmatpush1.xpose.msra.mxu0 0.0
        %1411 = vmatprep.subr.mxu0 0.0
        %1412 = vmatpush1.xpose.msra.mxu0 0.0
        %1413 = vmatprep.mubr.f32.mxu0 0.0
        %1414 = vmatmul.mubr.f32.gmra.mrb[0].mxu0 %v556
        %v1415 = vpop.f32.mrb[0].mxu0
        %v1416 = vadd.f32 0.0, %v1415
        %v1417 = vpop.f32.mrb[0].mxu0
        %1418 = vdwg.mxu0
        %1419 = vmatprep.subr.mxu0 0.0
        %1420 = vmatpush1.xpose.msra.mxu0 %v859
        %1421 = vmatprep.subr.mxu0 0.0
        %1422 = vmatpush1.xpose.msra.mxu0 %v862
        %1423 = vmatprep.subr.mxu0 0.0
        %1424 = vmatpush1.xpose.msra.mxu0 0.0
        %1425 = vmatprep.subr.mxu0 0.0
        %1426 = vmatpush1.xpose.msra.mxu0 0.0
        %1427 = vmatprep.subr.mxu0 0.0
        %1428 = vmatpush1.xpose.msra.mxu0 0.0
        %1429 = vmatprep.subr.mxu0 0.0
        %1430 = vmatpush1.xpose.msra.mxu0 0.0
        %1431 = vmatprep.subr.mxu0 0.0
        %1432 = vmatpush1.xpose.msra.mxu0 0.0
        %1433 = vmatprep.subr.mxu0 0.0
        %1434 = vmatpush1.xpose.msra.mxu0 0.0
        %1435 = vmatprep.subr.mxu0 0.0
        %1436 = vmatpush1.xpose.msra.mxu0 0.0
        %1437 = vmatprep.subr.mxu0 0.0
        %1438 = vmatpush1.xpose.msra.mxu0 0.0
        %1439 = vmatprep.subr.mxu0 0.0
        %1440 = vmatpush1.xpose.msra.mxu0 0.0
        %1441 = vmatprep.subr.mxu0 0.0
        %1442 = vmatpush1.xpose.msra.mxu0 0.0
        %1443 = vmatprep.subr.mxu0 0.0
        %1444 = vmatpush1.xpose.msra.mxu0 0.0
        %1445 = vmatprep.subr.mxu0 0.0
        %1446 = vmatpush1.xpose.msra.mxu0 0.0
        %1447 = vmatprep.subr.mxu0 0.0
        %1448 = vmatpush1.xpose.msra.mxu0 0.0
        %1449 = vmatprep.subr.mxu0 0.0
        %1450 = vmatpush1.xpose.msra.mxu0 0.0
        %1451 = vmatprep.subr.mxu0 0.0
        %1452 = vmatpush1.xpose.msra.mxu0 0.0
        %1453 = vmatprep.subr.mxu0 0.0
        %1454 = vmatpush1.xpose.msra.mxu0 0.0
        %1455 = vmatprep.subr.mxu0 0.0
        %1456 = vmatpush1.xpose.msra.mxu0 0.0
        %1457 = vmatprep.subr.mxu0 0.0
        %1458 = vmatpush1.xpose.msra.mxu0 0.0
        %1459 = vmatprep.subr.mxu0 0.0
        %1460 = vmatpush1.xpose.msra.mxu0 0.0
        %1461 = vmatprep.subr.mxu0 0.0
        %1462 = vmatpush1.xpose.msra.mxu0 0.0
        %1463 = vmatprep.subr.mxu0 0.0
        %1464 = vmatpush1.xpose.msra.mxu0 0.0
        %1465 = vmatprep.subr.mxu0 0.0
        %1466 = vmatpush1.xpose.msra.mxu0 0.0
        %1467 = vmatprep.subr.mxu0 0.0
        %1468 = vmatpush1.xpose.msra.mxu0 0.0
        %1469 = vmatprep.subr.mxu0 0.0
        %1470 = vmatpush1.xpose.msra.mxu0 0.0
        %1471 = vmatprep.subr.mxu0 0.0
        %1472 = vmatpush1.xpose.msra.mxu0 0.0
        %1473 = vmatprep.subr.mxu0 0.0
        %1474 = vmatpush1.xpose.msra.mxu0 0.0
        %1475 = vmatprep.subr.mxu0 0.0
        %1476 = vmatpush1.xpose.msra.mxu0 0.0
        %1477 = vmatprep.subr.mxu0 0.0
        %1478 = vmatpush1.xpose.msra.mxu0 0.0
        %1479 = vmatprep.subr.mxu0 0.0
        %1480 = vmatpush1.xpose.msra.mxu0 0.0
        %1481 = vmatprep.subr.mxu0 0.0
        %1482 = vmatpush1.xpose.msra.mxu0 0.0
        %1483 = vmatprep.mubr.f32.mxu0 0.0
        %1484 = vmatmul.mubr.f32.gmra.mrb[0].mxu0 %v558
        %v1485 = vpop.f32.mrb[0].mxu0
        %v1486 = vadd.f32 0.0, %v1485
        %v1487 = vpop.f32.mrb[0].mxu0
        %1488 = vdwg.mxu0
        %1489 = vmatprep.subr.mxu0 0.0
        %1490 = vmatpush1.xpose.msra.mxu0 %v867
        %1491 = vmatprep.subr.mxu0 0.0
        %1492 = vmatpush1.xpose.msra.mxu0 %v870
        %1493 = vmatprep.subr.mxu0 0.0
        %1494 = vmatpush1.xpose.msra.mxu0 0.0
        %1495 = vmatprep.subr.mxu0 0.0
        %1496 = vmatpush1.xpose.msra.mxu0 0.0
        %1497 = vmatprep.subr.mxu0 0.0
        %1498 = vmatpush1.xpose.msra.mxu0 0.0
        %1499 = vmatprep.subr.mxu0 0.0
        %1500 = vmatpush1.xpose.msra.mxu0 0.0
        %1501 = vmatprep.subr.mxu0 0.0
        %1502 = vmatpush1.xpose.msra.mxu0 0.0
        %1503 = vmatprep.subr.mxu0 0.0
        %1504 = vmatpush1.xpose.msra.mxu0 0.0
        %1505 = vmatprep.subr.mxu0 0.0
        %1506 = vmatpush1.xpose.msra.mxu0 0.0
        %1507 = vmatprep.subr.mxu0 0.0
        %1508 = vmatpush1.xpose.msra.mxu0 0.0
        %1509 = vmatprep.subr.mxu0 0.0
        %1510 = vmatpush1.xpose.msra.mxu0 0.0
        %1511 = vmatprep.subr.mxu0 0.0
        %1512 = vmatpush1.xpose.msra.mxu0 0.0
        %1513 = vmatprep.subr.mxu0 0.0
        %1514 = vmatpush1.xpose.msra.mxu0 0.0
        %1515 = vmatprep.subr.mxu0 0.0
        %1516 = vmatpush1.xpose.msra.mxu0 0.0
        %1517 = vmatprep.subr.mxu0 0.0
        %1518 = vmatpush1.xpose.msra.mxu0 0.0
        %1519 = vmatprep.subr.mxu0 0.0
        %1520 = vmatpush1.xpose.msra.mxu0 0.0
        %1521 = vmatprep.subr.mxu0 0.0
        %1522 = vmatpush1.xpose.msra.mxu0 0.0
        %1523 = vmatprep.subr.mxu0 0.0
        %1524 = vmatpush1.xpose.msra.mxu0 0.0
        %1525 = vmatprep.subr.mxu0 0.0
        %1526 = vmatpush1.xpose.msra.mxu0 0.0
        %1527 = vmatprep.subr.mxu0 0.0
        %1528 = vmatpush1.xpose.msra.mxu0 0.0
        %1529 = vmatprep.subr.mxu0 0.0
        %1530 = vmatpush1.xpose.msra.mxu0 0.0
        %1531 = vmatprep.subr.mxu0 0.0
        %1532 = vmatpush1.xpose.msra.mxu0 0.0
        %1533 = vmatprep.subr.mxu0 0.0
        %1534 = vmatpush1.xpose.msra.mxu0 0.0
        %1535 = vmatprep.subr.mxu0 0.0
        %1536 = vmatpush1.xpose.msra.mxu0 0.0
        %1537 = vmatprep.subr.mxu0 0.0
        %1538 = vmatpush1.xpose.msra.mxu0 0.0
        %1539 = vmatprep.subr.mxu0 0.0
        %1540 = vmatpush1.xpose.msra.mxu0 0.0
        %1541 = vmatprep.subr.mxu0 0.0
        %1542 = vmatpush1.xpose.msra.mxu0 0.0
        %1543 = vmatprep.subr.mxu0 0.0
        %1544 = vmatpush1.xpose.msra.mxu0 0.0
        %1545 = vmatprep.subr.mxu0 0.0
        %1546 = vmatpush1.xpose.msra.mxu0 0.0
        %1547 = vmatprep.subr.mxu0 0.0
        %1548 = vmatpush1.xpose.msra.mxu0 0.0
        %1549 = vmatprep.subr.mxu0 0.0
        %1550 = vmatpush1.xpose.msra.mxu0 0.0
        %1551 = vmatprep.subr.mxu0 0.0
        %1552 = vmatpush1.xpose.msra.mxu0 0.0
        %1553 = vmatprep.mubr.f32.mxu0 0.0
        %1554 = vmatmul.mubr.f32.gmra.mrb[0].mxu0 %v582
        %v1555 = vpop.f32.mrb[0].mxu0
        %v1556 = vadd.f32 0.0, %v1555
        %v1557 = vpop.f32.mrb[0].mxu0
        %1558 = vdwg.mxu0
        %1559 = vmatprep.subr.mxu0 0.0
        %1560 = vmatpush1.xpose.msra.mxu0 %v875
        %1561 = vmatprep.subr.mxu0 0.0
        %1562 = vmatpush1.xpose.msra.mxu0 %v878
        %1563 = vmatprep.subr.mxu0 0.0
        %1564 = vmatpush1.xpose.msra.mxu0 0.0
        %1565 = vmatprep.subr.mxu0 0.0
        %1566 = vmatpush1.xpose.msra.mxu0 0.0
        %1567 = vmatprep.subr.mxu0 0.0
        %1568 = vmatpush1.xpose.msra.mxu0 0.0
        %1569 = vmatprep.subr.mxu0 0.0
        %1570 = vmatpush1.xpose.msra.mxu0 0.0
        %1571 = vmatprep.subr.mxu0 0.0
        %1572 = vmatpush1.xpose.msra.mxu0 0.0
        %1573 = vmatprep.subr.mxu0 0.0
        %1574 = vmatpush1.xpose.msra.mxu0 0.0
        %1575 = vmatprep.subr.mxu0 0.0
        %1576 = vmatpush1.xpose.msra.mxu0 0.0
        %1577 = vmatprep.subr.mxu0 0.0
        %1578 = vmatpush1.xpose.msra.mxu0 0.0
        %1579 = vmatprep.subr.mxu0 0.0
        %1580 = vmatpush1.xpose.msra.mxu0 0.0
        %1581 = vmatprep.subr.mxu0 0.0
        %1582 = vmatpush1.xpose.msra.mxu0 0.0
        %1583 = vmatprep.subr.mxu0 0.0
        %1584 = vmatpush1.xpose.msra.mxu0 0.0
        %1585 = vmatprep.subr.mxu0 0.0
        %1586 = vmatpush1.xpose.msra.mxu0 0.0
        %1587 = vmatprep.subr.mxu0 0.0
        %1588 = vmatpush1.xpose.msra.mxu0 0.0
        %1589 = vmatprep.subr.mxu0 0.0
        %1590 = vmatpush1.xpose.msra.mxu0 0.0
        %1591 = vmatprep.subr.mxu0 0.0
        %1592 = vmatpush1.xpose.msra.mxu0 0.0
        %1593 = vmatprep.subr.mxu0 0.0
        %1594 = vmatpush1.xpose.msra.mxu0 0.0
        %1595 = vmatprep.subr.mxu0 0.0
        %1596 = vmatpush1.xpose.msra.mxu0 0.0
        %1597 = vmatprep.subr.mxu0 0.0
        %1598 = vmatpush1.xpose.msra.mxu0 0.0
        %1599 = vmatprep.subr.mxu0 0.0
        %1600 = vmatpush1.xpose.msra.mxu0 0.0
        %1601 = vmatprep.subr.mxu0 0.0
        %1602 = vmatpush1.xpose.msra.mxu0 0.0
        %1603 = vmatprep.subr.mxu0 0.0
        %1604 = vmatpush1.xpose.msra.mxu0 0.0
        %1605 = vmatprep.subr.mxu0 0.0
        %1606 = vmatpush1.xpose.msra.mxu0 0.0
        %1607 = vmatprep.subr.mxu0 0.0
        %1608 = vmatpush1.xpose.msra.mxu0 0.0
        %1609 = vmatprep.subr.mxu0 0.0
        %1610 = vmatpush1.xpose.msra.mxu0 0.0
        %1611 = vmatprep.subr.mxu0 0.0
        %1612 = vmatpush1.xpose.msra.mxu0 0.0
        %1613 = vmatprep.subr.mxu0 0.0
        %1614 = vmatpush1.xpose.msra.mxu0 0.0
        %1615 = vmatprep.subr.mxu0 0.0
        %1616 = vmatpush1.xpose.msra.mxu0 0.0
        %1617 = vmatprep.subr.mxu0 0.0
        %1618 = vmatpush1.xpose.msra.mxu0 0.0
        %1619 = vmatprep.subr.mxu0 0.0
        %1620 = vmatpush1.xpose.msra.mxu0 0.0
        %1621 = vmatprep.subr.mxu0 0.0
        %1622 = vmatpush1.xpose.msra.mxu0 0.0
        %1623 = vmatprep.mubr.f32.mxu0 0.0
        %1624 = vmatmul.mubr.f32.gmra.mrb[0].mxu0 %v596
        %v1625 = vpop.f32.mrb[0].mxu0
        %v1626 = vadd.f32 0.0, %v1625
        %v1627 = vpop.f32.mrb[0].mxu0
        %1628 = vdwg.mxu0
        %1629 = vmatprep.subr.mxu0 0.0
        %1630 = vmatpush1.xpose.msra.mxu0 %v883
        %1631 = vmatprep.subr.mxu0 0.0
        %1632 = vmatpush1.xpose.msra.mxu0 %v886
        %1633 = vmatprep.subr.mxu0 0.0
        %1634 = vmatpush1.xpose.msra.mxu0 0.0
        %1635 = vmatprep.subr.mxu0 0.0
        %1636 = vmatpush1.xpose.msra.mxu0 0.0
        %1637 = vmatprep.subr.mxu0 0.0
        %1638 = vmatpush1.xpose.msra.mxu0 0.0
        %1639 = vmatprep.subr.mxu0 0.0
        %1640 = vmatpush1.xpose.msra.mxu0 0.0
        %1641 = vmatprep.subr.mxu0 0.0
        %1642 = vmatpush1.xpose.msra.mxu0 0.0
        %1643 = vmatprep.subr.mxu0 0.0
        %1644 = vmatpush1.xpose.msra.mxu0 0.0
        %1645 = vmatprep.subr.mxu0 0.0
        %1646 = vmatpush1.xpose.msra.mxu0 0.0
        %1647 = vmatprep.subr.mxu0 0.0
        %1648 = vmatpush1.xpose.msra.mxu0 0.0
        %1649 = vmatprep.subr.mxu0 0.0
        %1650 = vmatpush1.xpose.msra.mxu0 0.0
        %1651 = vmatprep.subr.mxu0 0.0
        %1652 = vmatpush1.xpose.msra.mxu0 0.0
        %1653 = vmatprep.subr.mxu0 0.0
        %1654 = vmatpush1.xpose.msra.mxu0 0.0
        %1655 = vmatprep.subr.mxu0 0.0
        %1656 = vmatpush1.xpose.msra.mxu0 0.0
        %1657 = vmatprep.subr.mxu0 0.0
        %1658 = vmatpush1.xpose.msra.mxu0 0.0
        %1659 = vmatprep.subr.mxu0 0.0
        %1660 = vmatpush1.xpose.msra.mxu0 0.0
        %1661 = vmatprep.subr.mxu0 0.0
        %1662 = vmatpush1.xpose.msra.mxu0 0.0
        %1663 = vmatprep.subr.mxu0 0.0
        %1664 = vmatpush1.xpose.msra.mxu0 0.0
        %1665 = vmatprep.subr.mxu0 0.0
        %1666 = vmatpush1.xpose.msra.mxu0 0.0
        %1667 = vmatprep.subr.mxu0 0.0
        %1668 = vmatpush1.xpose.msra.mxu0 0.0
        %1669 = vmatprep.subr.mxu0 0.0
        %1670 = vmatpush1.xpose.msra.mxu0 0.0
        %1671 = vmatprep.subr.mxu0 0.0
        %1672 = vmatpush1.xpose.msra.mxu0 0.0
        %1673 = vmatprep.subr.mxu0 0.0
        %1674 = vmatpush1.xpose.msra.mxu0 0.0
        %1675 = vmatprep.subr.mxu0 0.0
        %1676 = vmatpush1.xpose.msra.mxu0 0.0
        %1677 = vmatprep.subr.mxu0 0.0
        %1678 = vmatpush1.xpose.msra.mxu0 0.0
        %1679 = vmatprep.subr.mxu0 0.0
        %1680 = vmatpush1.xpose.msra.mxu0 0.0
        %1681 = vmatprep.subr.mxu0 0.0
        %1682 = vmatpush1.xpose.msra.mxu0 0.0
        %1683 = vmatprep.subr.mxu0 0.0
        %1684 = vmatpush1.xpose.msra.mxu0 0.0
        %1685 = vmatprep.subr.mxu0 0.0
        %1686 = vmatpush1.xpose.msra.mxu0 0.0
        %1687 = vmatprep.subr.mxu0 0.0
        %1688 = vmatpush1.xpose.msra.mxu0 0.0
        %1689 = vmatprep.subr.mxu0 0.0
        %1690 = vmatpush1.xpose.msra.mxu0 0.0
        %1691 = vmatprep.subr.mxu0 0.0
        %1692 = vmatpush1.xpose.msra.mxu0 0.0
        %1693 = vmatprep.mubr.f32.mxu0 0.0
        %1694 = vmatmul.mubr.f32.gmra.mrb[0].mxu0 %v604
        %v1695 = vpop.f32.mrb[0].mxu0
        %v1696 = vadd.f32 0.0, %v1695
        %v1697 = vpop.f32.mrb[0].mxu0
        %1698 = vdwg.mxu0
        %1699 = vmatprep.subr.mxu0 0.0
        %1700 = vmatpush1.xpose.msra.mxu0 %v891
        %1701 = vmatprep.subr.mxu0 0.0
        %1702 = vmatpush1.xpose.msra.mxu0 %v894
        %1703 = vmatprep.subr.mxu0 0.0
        %1704 = vmatpush1.xpose.msra.mxu0 0.0
        %1705 = vmatprep.subr.mxu0 0.0
        %1706 = vmatpush1.xpose.msra.mxu0 0.0
        %1707 = vmatprep.subr.mxu0 0.0
        %1708 = vmatpush1.xpose.msra.mxu0 0.0
        %1709 = vmatprep.subr.mxu0 0.0
        %1710 = vmatpush1.xpose.msra.mxu0 0.0
        %1711 = vmatprep.subr.mxu0 0.0
        %1712 = vmatpush1.xpose.msra.mxu0 0.0
        %1713 = vmatprep.subr.mxu0 0.0
        %1714 = vmatpush1.xpose.msra.mxu0 0.0
        %1715 = vmatprep.subr.mxu0 0.0
        %1716 = vmatpush1.xpose.msra.mxu0 0.0
        %1717 = vmatprep.subr.mxu0 0.0
        %1718 = vmatpush1.xpose.msra.mxu0 0.0
        %1719 = vmatprep.subr.mxu0 0.0
        %1720 = vmatpush1.xpose.msra.mxu0 0.0
        %1721 = vmatprep.subr.mxu0 0.0
        %1722 = vmatpush1.xpose.msra.mxu0 0.0
        %1723 = vmatprep.subr.mxu0 0.0
        %1724 = vmatpush1.xpose.msra.mxu0 0.0
        %1725 = vmatprep.subr.mxu0 0.0
        %1726 = vmatpush1.xpose.msra.mxu0 0.0
        %1727 = vmatprep.subr.mxu0 0.0
        %1728 = vmatpush1.xpose.msra.mxu0 0.0
        %1729 = vmatprep.subr.mxu0 0.0
        %1730 = vmatpush1.xpose.msra.mxu0 0.0
        %1731 = vmatprep.subr.mxu0 0.0
        %1732 = vmatpush1.xpose.msra.mxu0 0.0
        %1733 = vmatprep.subr.mxu0 0.0
        %1734 = vmatpush1.xpose.msra.mxu0 0.0
        %1735 = vmatprep.subr.mxu0 0.0
        %1736 = vmatpush1.xpose.msra.mxu0 0.0
        %1737 = vmatprep.subr.mxu0 0.0
        %1738 = vmatpush1.xpose.msra.mxu0 0.0
        %1739 = vmatprep.subr.mxu0 0.0
        %1740 = vmatpush1.xpose.msra.mxu0 0.0
        %1741 = vmatprep.subr.mxu0 0.0
        %1742 = vmatpush1.xpose.msra.mxu0 0.0
        %1743 = vmatprep.subr.mxu0 0.0
        %1744 = vmatpush1.xpose.msra.mxu0 0.0
        %1745 = vmatprep.subr.mxu0 0.0
        %1746 = vmatpush1.xpose.msra.mxu0 0.0
        %1747 = vmatprep.subr.mxu0 0.0
        %1748 = vmatpush1.xpose.msra.mxu0 0.0
        %1749 = vmatprep.subr.mxu0 0.0
        %1750 = vmatpush1.xpose.msra.mxu0 0.0
        %1751 = vmatprep.subr.mxu0 0.0
        %1752 = vmatpush1.xpose.msra.mxu0 0.0
        %1753 = vmatprep.subr.mxu0 0.0
        %1754 = vmatpush1.xpose.msra.mxu0 0.0
        %1755 = vmatprep.subr.mxu0 0.0
        %1756 = vmatpush1.xpose.msra.mxu0 0.0
        %1757 = vmatprep.subr.mxu0 0.0
        %1758 = vmatpush1.xpose.msra.mxu0 0.0
        %1759 = vmatprep.subr.mxu0 0.0
        %1760 = vmatpush1.xpose.msra.mxu0 0.0
        %1761 = vmatprep.subr.mxu0 0.0
        %1762 = vmatpush1.xpose.msra.mxu0 0.0
        %1763 = vmatprep.mubr.f32.mxu0 0.0
        %1764 = vmatmul.mubr.f32.gmra.mrb[0].mxu0 %v606
        %v1765 = vpop.f32.mrb[0].mxu0
        %v1766 = vadd.f32 0.0, %v1765
        %v1767 = vpop.f32.mrb[0].mxu0
        %1768 = vdwg.mxu0
        %1769 = vmatprep.subr.mxu0 0.0
        %1770 = vmatpush1.xpose.msra.mxu0 %v899
        %1771 = vmatprep.subr.mxu0 0.0
        %1772 = vmatpush1.xpose.msra.mxu0 %v902
        %1773 = vmatprep.subr.mxu0 0.0
        %1774 = vmatpush1.xpose.msra.mxu0 0.0
        %1775 = vmatprep.subr.mxu0 0.0
        %1776 = vmatpush1.xpose.msra.mxu0 0.0
        %1777 = vmatprep.subr.mxu0 0.0
        %1778 = vmatpush1.xpose.msra.mxu0 0.0
        %1779 = vmatprep.subr.mxu0 0.0
        %1780 = vmatpush1.xpose.msra.mxu0 0.0
        %1781 = vmatprep.subr.mxu0 0.0
        %1782 = vmatpush1.xpose.msra.mxu0 0.0
        %1783 = vmatprep.subr.mxu0 0.0
        %1784 = vmatpush1.xpose.msra.mxu0 0.0
        %1785 = vmatprep.subr.mxu0 0.0
        %1786 = vmatpush1.xpose.msra.mxu0 0.0
        %1787 = vmatprep.subr.mxu0 0.0
        %1788 = vmatpush1.xpose.msra.mxu0 0.0
        %1789 = vmatprep.subr.mxu0 0.0
        %1790 = vmatpush1.xpose.msra.mxu0 0.0
        %1791 = vmatprep.subr.mxu0 0.0
        %1792 = vmatpush1.xpose.msra.mxu0 0.0
        %1793 = vmatprep.subr.mxu0 0.0
        %1794 = vmatpush1.xpose.msra.mxu0 0.0
        %1795 = vmatprep.subr.mxu0 0.0
        %1796 = vmatpush1.xpose.msra.mxu0 0.0
        %1797 = vmatprep.subr.mxu0 0.0
        %1798 = vmatpush1.xpose.msra.mxu0 0.0
        %1799 = vmatprep.subr.mxu0 0.0
        %1800 = vmatpush1.xpose.msra.mxu0 0.0
        %1801 = vmatprep.subr.mxu0 0.0
        %1802 = vmatpush1.xpose.msra.mxu0 0.0
        %1803 = vmatprep.subr.mxu0 0.0
        %1804 = vmatpush1.xpose.msra.mxu0 0.0
        %1805 = vmatprep.subr.mxu0 0.0
        %1806 = vmatpush1.xpose.msra.mxu0 0.0
        %1807 = vmatprep.subr.mxu0 0.0
        %1808 = vmatpush1.xpose.msra.mxu0 0.0
        %1809 = vmatprep.subr.mxu0 0.0
        %1810 = vmatpush1.xpose.msra.mxu0 0.0
        %1811 = vmatprep.subr.mxu0 0.0
        %1812 = vmatpush1.xpose.msra.mxu0 0.0
        %1813 = vmatprep.subr.mxu0 0.0
        %1814 = vmatpush1.xpose.msra.mxu0 0.0
        %1815 = vmatprep.subr.mxu0 0.0
        %1816 = vmatpush1.xpose.msra.mxu0 0.0
        %1817 = vmatprep.subr.mxu0 0.0
        %1818 = vmatpush1.xpose.msra.mxu0 0.0
        %1819 = vmatprep.subr.mxu0 0.0
        %1820 = vmatpush1.xpose.msra.mxu0 0.0
        %1821 = vmatprep.subr.mxu0 0.0
        %1822 = vmatpush1.xpose.msra.mxu0 0.0
        %1823 = vmatprep.subr.mxu0 0.0
        %1824 = vmatpush1.xpose.msra.mxu0 0.0
        %1825 = vmatprep.subr.mxu0 0.0
        %1826 = vmatpush1.xpose.msra.mxu0 0.0
        %1827 = vmatprep.subr.mxu0 0.0
        %1828 = vmatpush1.xpose.msra.mxu0 0.0
        %1829 = vmatprep.subr.mxu0 0.0
        %1830 = vmatpush1.xpose.msra.mxu0 0.0
        %1831 = vmatprep.subr.mxu0 0.0
        %1832 = vmatpush1.xpose.msra.mxu0 0.0
        %1833 = vmatprep.mubr.f32.mxu0 0.0
        %1834 = vmatmul.mubr.f32.gmra.mrb[0].mxu0 %v589
        %v1835 = vpop.f32.mrb[0].mxu0
        %v1836 = vadd.f32 0.0, %v1835
        %v1837 = vpop.f32.mrb[0].mxu0
        %1838 = vdwg.mxu0
        %1839 = vmatprep.subr.mxu0 0.0
        %1840 = vmatpush1.xpose.msra.mxu0 %v907
        %1841 = vmatprep.subr.mxu0 0.0
        %1842 = vmatpush1.xpose.msra.mxu0 %v910
        %1843 = vmatprep.subr.mxu0 0.0
        %1844 = vmatpush1.xpose.msra.mxu0 0.0
        %1845 = vmatprep.subr.mxu0 0.0
        %1846 = vmatpush1.xpose.msra.mxu0 0.0
        %1847 = vmatprep.subr.mxu0 0.0
        %1848 = vmatpush1.xpose.msra.mxu0 0.0
        %1849 = vmatprep.subr.mxu0 0.0
        %1850 = vmatpush1.xpose.msra.mxu0 0.0
        %1851 = vmatprep.subr.mxu0 0.0
        %1852 = vmatpush1.xpose.msra.mxu0 0.0
        %1853 = vmatprep.subr.mxu0 0.0
        %1854 = vmatpush1.xpose.msra.mxu0 0.0
        %1855 = vmatprep.subr.mxu0 0.0
        %1856 = vmatpush1.xpose.msra.mxu0 0.0
        %1857 = vmatprep.subr.mxu0 0.0
        %1858 = vmatpush1.xpose.msra.mxu0 0.0
        %1859 = vmatprep.subr.mxu0 0.0
        %1860 = vmatpush1.xpose.msra.mxu0 0.0
        %1861 = vmatprep.subr.mxu0 0.0
        %1862 = vmatpush1.xpose.msra.mxu0 0.0
        %1863 = vmatprep.subr.mxu0 0.0
        %1864 = vmatpush1.xpose.msra.mxu0 0.0
        %1865 = vmatprep.subr.mxu0 0.0
        %1866 = vmatpush1.xpose.msra.mxu0 0.0
        %1867 = vmatprep.subr.mxu0 0.0
        %1868 = vmatpush1.xpose.msra.mxu0 0.0
        %1869 = vmatprep.subr.mxu0 0.0
        %1870 = vmatpush1.xpose.msra.mxu0 0.0
        %1871 = vmatprep.subr.mxu0 0.0
        %1872 = vmatpush1.xpose.msra.mxu0 0.0
        %1873 = vmatprep.subr.mxu0 0.0
        %1874 = vmatpush1.xpose.msra.mxu0 0.0
        %1875 = vmatprep.subr.mxu0 0.0
        %1876 = vmatpush1.xpose.msra.mxu0 0.0
        %1877 = vmatprep.subr.mxu0 0.0
        %1878 = vmatpush1.xpose.msra.mxu0 0.0
        %1879 = vmatprep.subr.mxu0 0.0
        %1880 = vmatpush1.xpose.msra.mxu0 0.0
        %1881 = vmatprep.subr.mxu0 0.0
        %1882 = vmatpush1.xpose.msra.mxu0 0.0
        %1883 = vmatprep.subr.mxu0 0.0
        %1884 = vmatpush1.xpose.msra.mxu0 0.0
        %1885 = vmatprep.subr.mxu0 0.0
        %1886 = vmatpush1.xpose.msra.mxu0 0.0
        %1887 = vmatprep.subr.mxu0 0.0
        %1888 = vmatpush1.xpose.msra.mxu0 0.0
        %1889 = vmatprep.subr.mxu0 0.0
        %1890 = vmatpush1.xpose.msra.mxu0 0.0
        %1891 = vmatprep.subr.mxu0 0.0
        %1892 = vmatpush1.xpose.msra.mxu0 0.0
        %1893 = vmatprep.subr.mxu0 0.0
        %1894 = vmatpush1.xpose.msra.mxu0 0.0
        %1895 = vmatprep.subr.mxu0 0.0
        %1896 = vmatpush1.xpose.msra.mxu0 0.0
        %1897 = vmatprep.subr.mxu0 0.0
        %1898 = vmatpush1.xpose.msra.mxu0 0.0
        %1899 = vmatprep.subr.mxu0 0.0
        %1900 = vmatpush1.xpose.msra.mxu0 0.0
        %1901 = vmatprep.subr.mxu0 0.0
        %1902 = vmatpush1.xpose.msra.mxu0 0.0
        %1903 = vmatprep.mubr.f32.mxu0 0.0
        %1904 = vmatmul.mubr.f32.gmra.mrb[0].mxu0 %v603
        %v1905 = vpop.f32.mrb[0].mxu0
        %v1906 = vadd.f32 0.0, %v1905
        %v1907 = vpop.f32.mrb[0].mxu0
        %1908 = vdwg.mxu0
        %1909 = vmatprep.subr.mxu0 0.0
        %1910 = vmatpush1.xpose.msra.mxu0 %v915
        %1911 = vmatprep.subr.mxu0 0.0
        %1912 = vmatpush1.xpose.msra.mxu0 %v918
        %1913 = vmatprep.subr.mxu0 0.0
        %1914 = vmatpush1.xpose.msra.mxu0 0.0
        %1915 = vmatprep.subr.mxu0 0.0
        %1916 = vmatpush1.xpose.msra.mxu0 0.0
        %1917 = vmatprep.subr.mxu0 0.0
        %1918 = vmatpush1.xpose.msra.mxu0 0.0
        %1919 = vmatprep.subr.mxu0 0.0
        %1920 = vmatpush1.xpose.msra.mxu0 0.0
        %1921 = vmatprep.subr.mxu0 0.0
        %1922 = vmatpush1.xpose.msra.mxu0 0.0
        %1923 = vmatprep.subr.mxu0 0.0
        %1924 = vmatpush1.xpose.msra.mxu0 0.0
        %1925 = vmatprep.subr.mxu0 0.0
        %1926 = vmatpush1.xpose.msra.mxu0 0.0
        %1927 = vmatprep.subr.mxu0 0.0
        %1928 = vmatpush1.xpose.msra.mxu0 0.0
        %1929 = vmatprep.subr.mxu0 0.0
        %1930 = vmatpush1.xpose.msra.mxu0 0.0
        %1931 = vmatprep.subr.mxu0 0.0
        %1932 = vmatpush1.xpose.msra.mxu0 0.0
        %1933 = vmatprep.subr.mxu0 0.0
        %1934 = vmatpush1.xpose.msra.mxu0 0.0
        %1935 = vmatprep.subr.mxu0 0.0
        %1936 = vmatpush1.xpose.msra.mxu0 0.0
        %1937 = vmatprep.subr.mxu0 0.0
        %1938 = vmatpush1.xpose.msra.mxu0 0.0
        %1939 = vmatprep.subr.mxu0 0.0
        %1940 = vmatpush1.xpose.msra.mxu0 0.0
        %1941 = vmatprep.subr.mxu0 0.0
        %1942 = vmatpush1.xpose.msra.mxu0 0.0
        %1943 = vmatprep.subr.mxu0 0.0
        %1944 = vmatpush1.xpose.msra.mxu0 0.0
        %1945 = vmatprep.subr.mxu0 0.0
        %1946 = vmatpush1.xpose.msra.mxu0 0.0
        %1947 = vmatprep.subr.mxu0 0.0
        %1948 = vmatpush1.xpose.msra.mxu0 0.0
        %1949 = vmatprep.subr.mxu0 0.0
        %1950 = vmatpush1.xpose.msra.mxu0 0.0
        %1951 = vmatprep.subr.mxu0 0.0
        %1952 = vmatpush1.xpose.msra.mxu0 0.0
        %1953 = vmatprep.subr.mxu0 0.0
        %1954 = vmatpush1.xpose.msra.mxu0 0.0
        %1955 = vmatprep.subr.mxu0 0.0
        %1956 = vmatpush1.xpose.msra.mxu0 0.0
        %1957 = vmatprep.subr.mxu0 0.0
        %1958 = vmatpush1.xpose.msra.mxu0 0.0
        %1959 = vmatprep.subr.mxu0 0.0
        %1960 = vmatpush1.xpose.msra.mxu0 0.0
        %1961 = vmatprep.subr.mxu0 0.0
        %1962 = vmatpush1.xpose.msra.mxu0 0.0
        %1963 = vmatprep.subr.mxu0 0.0
        %1964 = vmatpush1.xpose.msra.mxu0 0.0
        %1965 = vmatprep.subr.mxu0 0.0
        %1966 = vmatpush1.xpose.msra.mxu0 0.0
        %1967 = vmatprep.subr.mxu0 0.0
        %1968 = vmatpush1.xpose.msra.mxu0 0.0
        %1969 = vmatprep.subr.mxu0 0.0
        %1970 = vmatpush1.xpose.msra.mxu0 0.0
        %1971 = vmatprep.subr.mxu0 0.0
        %1972 = vmatpush1.xpose.msra.mxu0 0.0
        %1973 = vmatprep.mubr.f32.mxu0 0.0
        %1974 = vmatmul.mubr.f32.gmra.mrb[0].mxu0 %v605
        %v1975 = vpop.f32.mrb[0].mxu0
        %v1976 = vadd.f32 0.0, %v1975
        %v1977 = vpop.f32.mrb[0].mxu0
        %1978 = vdwg.mxu0
        %1979 = vmatprep.subr.mxu0 0.0
        %1980 = vmatpush1.xpose.msra.mxu0 %v923
        %1981 = vmatprep.subr.mxu0 0.0
        %1982 = vmatpush1.xpose.msra.mxu0 %v926
        %1983 = vmatprep.subr.mxu0 0.0
        %1984 = vmatpush1.xpose.msra.mxu0 0.0
        %1985 = vmatprep.subr.mxu0 0.0
        %1986 = vmatpush1.xpose.msra.mxu0 0.0
        %1987 = vmatprep.subr.mxu0 0.0
        %1988 = vmatpush1.xpose.msra.mxu0 0.0
        %1989 = vmatprep.subr.mxu0 0.0
        %1990 = vmatpush1.xpose.msra.mxu0 0.0
        %1991 = vmatprep.subr.mxu0 0.0
        %1992 = vmatpush1.xpose.msra.mxu0 0.0
        %1993 = vmatprep.subr.mxu0 0.0
        %1994 = vmatpush1.xpose.msra.mxu0 0.0
        %1995 = vmatprep.subr.mxu0 0.0
        %1996 = vmatpush1.xpose.msra.mxu0 0.0
        %1997 = vmatprep.subr.mxu0 0.0
        %1998 = vmatpush1.xpose.msra.mxu0 0.0
        %1999 = vmatprep.subr.mxu0 0.0
        %2000 = vmatpush1.xpose.msra.mxu0 0.0
        %2001 = vmatprep.subr.mxu0 0.0
        %2002 = vmatpush1.xpose.msra.mxu0 0.0
        %2003 = vmatprep.subr.mxu0 0.0
        %2004 = vmatpush1.xpose.msra.mxu0 0.0
        %2005 = vmatprep.subr.mxu0 0.0
        %2006 = vmatpush1.xpose.msra.mxu0 0.0
        %2007 = vmatprep.subr.mxu0 0.0
        %2008 = vmatpush1.xpose.msra.mxu0 0.0
        %2009 = vmatprep.subr.mxu0 0.0
        %2010 = vmatpush1.xpose.msra.mxu0 0.0
        %2011 = vmatprep.subr.mxu0 0.0
        %2012 = vmatpush1.xpose.msra.mxu0 0.0
        %2013 = vmatprep.subr.mxu0 0.0
        %2014 = vmatpush1.xpose.msra.mxu0 0.0
        %2015 = vmatprep.subr.mxu0 0.0
        %2016 = vmatpush1.xpose.msra.mxu0 0.0
        %2017 = vmatprep.subr.mxu0 0.0
        %2018 = vmatpush1.xpose.msra.mxu0 0.0
        %2019 = vmatprep.subr.mxu0 0.0
        %2020 = vmatpush1.xpose.msra.mxu0 0.0
        %2021 = vmatprep.subr.mxu0 0.0
        %2022 = vmatpush1.xpose.msra.mxu0 0.0
        %2023 = vmatprep.subr.mxu0 0.0
        %2024 = vmatpush1.xpose.msra.mxu0 0.0
        %2025 = vmatprep.subr.mxu0 0.0
        %2026 = vmatpush1.xpose.msra.mxu0 0.0
        %2027 = vmatprep.subr.mxu0 0.0
        %2028 = vmatpush1.xpose.msra.mxu0 0.0
        %2029 = vmatprep.subr.mxu0 0.0
        %2030 = vmatpush1.xpose.msra.mxu0 0.0
        %2031 = vmatprep.subr.mxu0 0.0
        %2032 = vmatpush1.xpose.msra.mxu0 0.0
        %2033 = vmatprep.subr.mxu0 0.0
        %2034 = vmatpush1.xpose.msra.mxu0 0.0
        %2035 = vmatprep.subr.mxu0 0.0
        %2036 = vmatpush1.xpose.msra.mxu0 0.0
        %2037 = vmatprep.subr.mxu0 0.0
        %2038 = vmatpush1.xpose.msra.mxu0 0.0
        %2039 = vmatprep.subr.mxu0 0.0
        %2040 = vmatpush1.xpose.msra.mxu0 0.0
        %2041 = vmatprep.subr.mxu0 0.0
        %2042 = vmatpush1.xpose.msra.mxu0 0.0
        %2043 = vmatprep.mubr.f32.mxu0 0.0
        %2044 = vmatmul.mubr.f32.gmra.mrb[0].mxu0 %v607
        %v2045 = vpop.f32.mrb[0].mxu0
        %v2046 = vadd.f32 0.0, %v2045
        %v2047 = vpop.f32.mrb[0].mxu0
        %2048 = vdwg.mxu0
        %v2065 = vrot.slane %v1066, 7
        %vm2066 = vcmask 1041409
        %v2067 = vsel %vm2066, %v2065, %v996
        %v2068 = vrot.slane %v1136, 6
        %vm2069 = vcmask 1042434
        %v2070 = vsel %vm2069, %v2068, %v2067
        %v2071 = vrot.slane %v1206, 5
        %vm2072 = vcmask 1043459
        %v2073 = vsel %vm2072, %v2071, %v2070
        %v2074 = vrot.slane %v1276, 4
        %vm2075 = vcmask 1044484
        %v2076 = vsel %vm2075, %v2074, %v2073
        %v2077 = vrot.slane %v1346, 3
        %vm2078 = vcmask 1045509
        %v2079 = vsel %vm2078, %v2077, %v2076
        %v2080 = vrot.slane %v1416, 2
        %vm2081 = vcmask 1046534
        %v2082 = vsel %vm2081, %v2080, %v2079
        %v2083 = vrot.slane %v1486, 1
        %vm2084 = vcmask 1047559
        %v2085 = vsel %vm2084, %v2083, %v2082
        %v2086 = vrot.slane %v1626, 7
        %v2087 = vsel %vm2066, %v2086, %v1556
        %v2088 = vrot.slane %v1696, 6
        %v2089 = vsel %vm2069, %v2088, %v2087
        %v2090 = vrot.slane %v1766, 5
        %v2091 = vsel %vm2072, %v2090, %v2089
        %v2092 = vrot.slane %v1836, 4
        %v2093 = vsel %vm2075, %v2092, %v2091
        %v2094 = vrot.slane %v1906, 3
        %v2095 = vsel %vm2078, %v2094, %v2093
        %v2096 = vrot.slane %v1976, 2
        %v2097 = vsel %vm2081, %v2096, %v2095
        %v2098 = vrot.slane %v2046, 1
        %v2099 = vsel %vm2084, %v2098, %v2097
        %vm2102 = vcmask 130048
        %v2103 = vsel %vm2102, %v2085, -inf
        %2104 = vmax.xlane.f32.xlu0 %v2103
        %v2105 = vpop.xlane.xlu0 %2104
        %v2106 = vsel %vm2102, %v2099, -inf
        %2107 = vmax.xlane.f32.xlu0 %v2106
        %v2108 = vpop.xlane.xlu0 %2107
        %v2111 = vrot.slane %v2105, 1
        %v2112 = vrot.slane %v2105, 2
        %v2113 = vrot.slane %v2105, 3
        %v2114 = vrot.slane %v2105, 4
        %v2115 = vrot.slane %v2105, 5
        %v2116 = vrot.slane %v2105, 6
        %v2117 = vrot.slane %v2105, 7
        %v2118 = vrot.slane %v2108, 1
        %v2119 = vrot.slane %v2108, 2
        %v2120 = vrot.slane %v2108, 3
        %v2121 = vrot.slane %v2108, 4
        %v2122 = vrot.slane %v2108, 5
        %v2123 = vrot.slane %v2108, 6
        %v2124 = vrot.slane %v2108, 7
        %v2141 = vsub.f32 %v996, %v2105
        %v2142 = vsub.f32 %v1066, %v2111
        %v2143 = vsub.f32 %v1136, %v2112
        %v2144 = vsub.f32 %v1206, %v2113
        %v2145 = vsub.f32 %v1276, %v2114
        %v2146 = vsub.f32 %v1346, %v2115
        %v2147 = vsub.f32 %v1416, %v2116
        %v2148 = vsub.f32 %v1486, %v2117
        %v2149 = vsub.f32 %v1556, %v2108
        %v2150 = vsub.f32 %v1626, %v2118
        %v2151 = vsub.f32 %v1696, %v2119
        %v2152 = vsub.f32 %v1766, %v2120
        %v2153 = vsub.f32 %v1836, %v2121
        %v2154 = vsub.f32 %v1906, %v2122
        %v2155 = vsub.f32 %v1976, %v2123
        %v2156 = vsub.f32 %v2046, %v2124
        %v2157 = vmul.f32 %v2141, 1.442695
        %v2158 = vpow.pop %v2157
        %v2159 = vmul.f32 %v2142, 1.442695
        %v2160 = vpow.pop %v2159
        %v2161 = vmul.f32 %v2143, 1.442695
        %v2162 = vpow.pop %v2161
        %v2163 = vmul.f32 %v2144, 1.442695
        %v2164 = vpow.pop %v2163
        %v2165 = vmul.f32 %v2145, 1.442695
        %v2166 = vpow.pop %v2165
        %v2167 = vmul.f32 %v2146, 1.442695
        %v2168 = vpow.pop %v2167
        %v2169 = vmul.f32 %v2147, 1.442695
        %v2170 = vpow.pop %v2169
        %v2171 = vmul.f32 %v2148, 1.442695
        %v2172 = vpow.pop %v2171
        %v2173 = vmul.f32 %v2149, 1.442695
        %v2174 = vpow.pop %v2173
        %v2175 = vmul.f32 %v2150, 1.442695
        %v2176 = vpow.pop %v2175
        %v2177 = vmul.f32 %v2151, 1.442695
        %v2178 = vpow.pop %v2177
        %v2179 = vmul.f32 %v2152, 1.442695
        %v2180 = vpow.pop %v2179
        %v2181 = vmul.f32 %v2153, 1.442695
        %v2182 = vpow.pop %v2181
        %v2183 = vmul.f32 %v2154, 1.442695
        %v2184 = vpow.pop %v2183
        %v2185 = vmul.f32 %v2155, 1.442695
        %v2186 = vpow.pop %v2185
        %v2187 = vmul.f32 %v2156, 1.442695
        %v2188 = vpow.pop %v2187
        %v2205 = vrot.slane %v2160, 7
        %v2206 = vsel %vm2066, %v2205, %v2158
        %v2207 = vrot.slane %v2162, 6
        %v2208 = vsel %vm2069, %v2207, %v2206
        %v2209 = vrot.slane %v2164, 5
        %v2210 = vsel %vm2072, %v2209, %v2208
        %v2211 = vrot.slane %v2166, 4
        %v2212 = vsel %vm2075, %v2211, %v2210
        %v2213 = vrot.slane %v2168, 3
        %v2214 = vsel %vm2078, %v2213, %v2212
        %v2215 = vrot.slane %v2170, 2
        %v2216 = vsel %vm2081, %v2215, %v2214
        %v2217 = vrot.slane %v2172, 1
        %v2218 = vsel %vm2084, %v2217, %v2216
        %v2219 = vrot.slane %v2176, 7
        %v2220 = vsel %vm2066, %v2219, %v2174
        %v2221 = vrot.slane %v2178, 6
        %v2222 = vsel %vm2069, %v2221, %v2220
        %v2223 = vrot.slane %v2180, 5
        %v2224 = vsel %vm2072, %v2223, %v2222
        %v2225 = vrot.slane %v2182, 4
        %v2226 = vsel %vm2075, %v2225, %v2224
        %v2227 = vrot.slane %v2184, 3
        %v2228 = vsel %vm2078, %v2227, %v2226
        %v2229 = vrot.slane %v2186, 2
        %v2230 = vsel %vm2081, %v2229, %v2228
        %v2231 = vrot.slane %v2188, 1
        %v2232 = vsel %vm2084, %v2231, %v2230
        %v2235 = vsel %vm2102, %v2218, 0.0
        %2236 = vadd.xlane.f32.xlu0 %v2235
        %v2237 = vpop.xlane.xlu0 %2236
        %v2238 = vsel %vm2102, %v2232, 0.0
        %2239 = vadd.xlane.f32.xlu0 %v2238
        %v2240 = vpop.xlane.xlu0 %2239
        %v2241 = vrcp.pop %v2237
        %v2242 = vrcp.pop %v2240
        %v2245 = vrot.slane %v2241, 1
        %v2246 = vrot.slane %v2241, 2
        %v2247 = vrot.slane %v2241, 3
        %v2248 = vrot.slane %v2241, 4
        %v2249 = vrot.slane %v2241, 5
        %v2250 = vrot.slane %v2241, 6
        %v2251 = vrot.slane %v2241, 7
        %v2252 = vrot.slane %v2242, 1
        %v2253 = vrot.slane %v2242, 2
        %v2254 = vrot.slane %v2242, 3
        %v2255 = vrot.slane %v2242, 4
        %v2256 = vrot.slane %v2242, 5
        %v2257 = vrot.slane %v2242, 6
        %v2258 = vrot.slane %v2242, 7
        %v2275 = vmul.f32 %v2158, %v2241
        %v2276 = vmul.f32 %v2160, %v2245
        %v2277 = vmul.f32 %v2162, %v2246
        %v2278 = vmul.f32 %v2164, %v2247
        %v2279 = vmul.f32 %v2166, %v2248
        %v2280 = vmul.f32 %v2168, %v2249
        %v2281 = vmul.f32 %v2170, %v2250
        %v2282 = vmul.f32 %v2172, %v2251
        %v2283 = vmul.f32 %v2174, %v2242
        %v2284 = vmul.f32 %v2176, %v2252
        %v2285 = vmul.f32 %v2178, %v2253
        %v2286 = vmul.f32 %v2180, %v2254
        %v2287 = vmul.f32 %v2182, %v2255
        %v2288 = vmul.f32 %v2184, %v2256
        %v2289 = vmul.f32 %v2186, %v2257
        %v2290 = vmul.f32 %v2188, %v2258
        %v2292 = vsel %vm2102, %v2275, 0
        %2294 = vmatprep.subr.mxu0 0.0
        %2295 = vmatpush1.msra.mxu0 %v803
        %2296 = vmatprep.subr.mxu0 0.0
        %2297 = vmatpush1.msra.mxu0 %v806
        %2298 = vmatprep.subr.mxu0 0.0
        %2299 = vmatpush1.msra.mxu0 0.0
        %2300 = vmatprep.subr.mxu0 0.0
        %2301 = vmatpush1.msra.mxu0 0.0
        %2302 = vmatprep.subr.mxu0 0.0
        %2303 = vmatpush1.msra.mxu0 0.0
        %2304 = vmatprep.subr.mxu0 0.0
        %2305 = vmatpush1.msra.mxu0 0.0
        %2306 = vmatprep.subr.mxu0 0.0
        %2307 = vmatpush1.msra.mxu0 0.0
        %2308 = vmatprep.subr.mxu0 0.0
        %2309 = vmatpush1.msra.mxu0 0.0
        %2310 = vmatprep.subr.mxu0 0.0
        %2311 = vmatpush1.msra.mxu0 0.0
        %2312 = vmatprep.subr.mxu0 0.0
        %2313 = vmatpush1.msra.mxu0 0.0
        %2314 = vmatprep.subr.mxu0 0.0
        %2315 = vmatpush1.msra.mxu0 0.0
        %2316 = vmatprep.subr.mxu0 0.0
        %2317 = vmatpush1.msra.mxu0 0.0
        %2318 = vmatprep.subr.mxu0 0.0
        %2319 = vmatpush1.msra.mxu0 0.0
        %2320 = vmatprep.subr.mxu0 0.0
        %2321 = vmatpush1.msra.mxu0 0.0
        %2322 = vmatprep.subr.mxu0 0.0
        %2323 = vmatpush1.msra.mxu0 0.0
        %2324 = vmatprep.subr.mxu0 0.0
        %2325 = vmatpush1.msra.mxu0 0.0
        %2326 = vmatprep.subr.mxu0 0.0
        %2327 = vmatpush1.msra.mxu0 0.0
        %2328 = vmatprep.subr.mxu0 0.0
        %2329 = vmatpush1.msra.mxu0 0.0
        %2330 = vmatprep.subr.mxu0 0.0
        %2331 = vmatpush1.msra.mxu0 0.0
        %2332 = vmatprep.subr.mxu0 0.0
        %2333 = vmatpush1.msra.mxu0 0.0
        %2334 = vmatprep.subr.mxu0 0.0
        %2335 = vmatpush1.msra.mxu0 0.0
        %2336 = vmatprep.subr.mxu0 0.0
        %2337 = vmatpush1.msra.mxu0 0.0
        %2338 = vmatprep.subr.mxu0 0.0
        %2339 = vmatpush1.msra.mxu0 0.0
        %2340 = vmatprep.subr.mxu0 0.0
        %2341 = vmatpush1.msra.mxu0 0.0
        %2342 = vmatprep.subr.mxu0 0.0
        %2343 = vmatpush1.msra.mxu0 0.0
        %2344 = vmatprep.subr.mxu0 0.0
        %2345 = vmatpush1.msra.mxu0 0.0
        %2346 = vmatprep.subr.mxu0 0.0
        %2347 = vmatpush1.msra.mxu0 0.0
        %2348 = vmatprep.subr.mxu0 0.0
        %2349 = vmatpush1.msra.mxu0 0.0
        %2350 = vmatprep.subr.mxu0 0.0
        %2351 = vmatpush1.msra.mxu0 0.0
        %2352 = vmatprep.subr.mxu0 0.0
        %2353 = vmatpush1.msra.mxu0 0.0
        %2354 = vmatprep.subr.mxu0 0.0
        %2355 = vmatpush1.msra.mxu0 0.0
        %2356 = vmatprep.subr.mxu0 0.0
        %2357 = vmatpush1.msra.mxu0 0.0
        %2358 = vmatprep.mubr.f32.mxu0 0.0
        %2359 = vmatmul.mubr.f32.gmra.mrb[0].mxu0 %v2292
        %v2360 = vpop.f32.mrb[0].mxu0
        %v2361 = vadd.f32 0.0, %v2360
        %v2362 = vpop.f32.mrb[0].mxu0
        %2363 = vdwg.mxu0
        %v2365 = vsel %vm2102, %v2276, 0
        %2367 = vmatprep.subr.mxu0 0.0
        %2368 = vmatpush1.msra.mxu0 %v811
        %2369 = vmatprep.subr.mxu0 0.0
        %2370 = vmatpush1.msra.mxu0 %v814
        %2371 = vmatprep.subr.mxu0 0.0
        %2372 = vmatpush1.msra.mxu0 0.0
        %2373 = vmatprep.subr.mxu0 0.0
        %2374 = vmatpush1.msra.mxu0 0.0
        %2375 = vmatprep.subr.mxu0 0.0
        %2376 = vmatpush1.msra.mxu0 0.0
        %2377 = vmatprep.subr.mxu0 0.0
        %2378 = vmatpush1.msra.mxu0 0.0
        %2379 = vmatprep.subr.mxu0 0.0
        %2380 = vmatpush1.msra.mxu0 0.0
        %2381 = vmatprep.subr.mxu0 0.0
        %2382 = vmatpush1.msra.mxu0 0.0
        %2383 = vmatprep.subr.mxu0 0.0
        %2384 = vmatpush1.msra.mxu0 0.0
        %2385 = vmatprep.subr.mxu0 0.0
        %2386 = vmatpush1.msra.mxu0 0.0
        %2387 = vmatprep.subr.mxu0 0.0
        %2388 = vmatpush1.msra.mxu0 0.0
        %2389 = vmatprep.subr.mxu0 0.0
        %2390 = vmatpush1.msra.mxu0 0.0
        %2391 = vmatprep.subr.mxu0 0.0
        %2392 = vmatpush1.msra.mxu0 0.0
        %2393 = vmatprep.subr.mxu0 0.0
        %2394 = vmatpush1.msra.mxu0 0.0
        %2395 = vmatprep.subr.mxu0 0.0
        %2396 = vmatpush1.msra.mxu0 0.0
        %2397 = vmatprep.subr.mxu0 0.0
        %2398 = vmatpush1.msra.mxu0 0.0
        %2399 = vmatprep.subr.mxu0 0.0
        %2400 = vmatpush1.msra.mxu0 0.0
        %2401 = vmatprep.subr.mxu0 0.0
        %2402 = vmatpush1.msra.mxu0 0.0
        %2403 = vmatprep.subr.mxu0 0.0
        %2404 = vmatpush1.msra.mxu0 0.0
        %2405 = vmatprep.subr.mxu0 0.0
        %2406 = vmatpush1.msra.mxu0 0.0
        %2407 = vmatprep.subr.mxu0 0.0
        %2408 = vmatpush1.msra.mxu0 0.0
        %2409 = vmatprep.subr.mxu0 0.0
        %2410 = vmatpush1.msra.mxu0 0.0
        %2411 = vmatprep.subr.mxu0 0.0
        %2412 = vmatpush1.msra.mxu0 0.0
        %2413 = vmatprep.subr.mxu0 0.0
        %2414 = vmatpush1.msra.mxu0 0.0
        %2415 = vmatprep.subr.mxu0 0.0
        %2416 = vmatpush1.msra.mxu0 0.0
        %2417 = vmatprep.subr.mxu0 0.0
        %2418 = vmatpush1.msra.mxu0 0.0
        %2419 = vmatprep.subr.mxu0 0.0
        %2420 = vmatpush1.msra.mxu0 0.0
        %2421 = vmatprep.subr.mxu0 0.0
        %2422 = vmatpush1.msra.mxu0 0.0
        %2423 = vmatprep.subr.mxu0 0.0
        %2424 = vmatpush1.msra.mxu0 0.0
        %2425 = vmatprep.subr.mxu0 0.0
        %2426 = vmatpush1.msra.mxu0 0.0
        %2427 = vmatprep.subr.mxu0 0.0
        %2428 = vmatpush1.msra.mxu0 0.0
        %2429 = vmatprep.subr.mxu0 0.0
        %2430 = vmatpush1.msra.mxu0 0.0
        %2431 = vmatprep.mubr.f32.mxu0 0.0
        %2432 = vmatmul.mubr.f32.gmra.mrb[0].mxu0 %v2365
        %v2433 = vpop.f32.mrb[0].mxu0
        %v2434 = vadd.f32 0.0, %v2433
        %v2435 = vpop.f32.mrb[0].mxu0
        %2436 = vdwg.mxu0
        %v2438 = vsel %vm2102, %v2277, 0
        %2440 = vmatprep.subr.mxu0 0.0
        %2441 = vmatpush1.msra.mxu0 %v819
        %2442 = vmatprep.subr.mxu0 0.0
        %2443 = vmatpush1.msra.mxu0 %v822
        %2444 = vmatprep.subr.mxu0 0.0
        %2445 = vmatpush1.msra.mxu0 0.0
        %2446 = vmatprep.subr.mxu0 0.0
        %2447 = vmatpush1.msra.mxu0 0.0
        %2448 = vmatprep.subr.mxu0 0.0
        %2449 = vmatpush1.msra.mxu0 0.0
        %2450 = vmatprep.subr.mxu0 0.0
        %2451 = vmatpush1.msra.mxu0 0.0
        %2452 = vmatprep.subr.mxu0 0.0
        %2453 = vmatpush1.msra.mxu0 0.0
        %2454 = vmatprep.subr.mxu0 0.0
        %2455 = vmatpush1.msra.mxu0 0.0
        %2456 = vmatprep.subr.mxu0 0.0
        %2457 = vmatpush1.msra.mxu0 0.0
        %2458 = vmatprep.subr.mxu0 0.0
        %2459 = vmatpush1.msra.mxu0 0.0
        %2460 = vmatprep.subr.mxu0 0.0
        %2461 = vmatpush1.msra.mxu0 0.0
        %2462 = vmatprep.subr.mxu0 0.0
        %2463 = vmatpush1.msra.mxu0 0.0
        %2464 = vmatprep.subr.mxu0 0.0
        %2465 = vmatpush1.msra.mxu0 0.0
        %2466 = vmatprep.subr.mxu0 0.0
        %2467 = vmatpush1.msra.mxu0 0.0
        %2468 = vmatprep.subr.mxu0 0.0
        %2469 = vmatpush1.msra.mxu0 0.0
        %2470 = vmatprep.subr.mxu0 0.0
        %2471 = vmatpush1.msra.mxu0 0.0
        %2472 = vmatprep.subr.mxu0 0.0
        %2473 = vmatpush1.msra.mxu0 0.0
        %2474 = vmatprep.subr.mxu0 0.0
        %2475 = vmatpush1.msra.mxu0 0.0
        %2476 = vmatprep.subr.mxu0 0.0
        %2477 = vmatpush1.msra.mxu0 0.0
        %2478 = vmatprep.subr.mxu0 0.0
        %2479 = vmatpush1.msra.mxu0 0.0
        %2480 = vmatprep.subr.mxu0 0.0
        %2481 = vmatpush1.msra.mxu0 0.0
        %2482 = vmatprep.subr.mxu0 0.0
        %2483 = vmatpush1.msra.mxu0 0.0
        %2484 = vmatprep.subr.mxu0 0.0
        %2485 = vmatpush1.msra.mxu0 0.0
        %2486 = vmatprep.subr.mxu0 0.0
        %2487 = vmatpush1.msra.mxu0 0.0
        %2488 = vmatprep.subr.mxu0 0.0
        %2489 = vmatpush1.msra.mxu0 0.0
        %2490 = vmatprep.subr.mxu0 0.0
        %2491 = vmatpush1.msra.mxu0 0.0
        %2492 = vmatprep.subr.mxu0 0.0
        %2493 = vmatpush1.msra.mxu0 0.0
        %2494 = vmatprep.subr.mxu0 0.0
        %2495 = vmatpush1.msra.mxu0 0.0
        %2496 = vmatprep.subr.mxu0 0.0
        %2497 = vmatpush1.msra.mxu0 0.0
        %2498 = vmatprep.subr.mxu0 0.0
        %2499 = vmatpush1.msra.mxu0 0.0
        %2500 = vmatprep.subr.mxu0 0.0
        %2501 = vmatpush1.msra.mxu0 0.0
        %2502 = vmatprep.subr.mxu0 0.0
        %2503 = vmatpush1.msra.mxu0 0.0
        %2504 = vmatprep.mubr.f32.mxu0 0.0
        %2505 = vmatmul.mubr.f32.gmra.mrb[0].mxu0 %v2438
        %v2506 = vpop.f32.mrb[0].mxu0
        %v2507 = vadd.f32 0.0, %v2506
        %v2508 = vpop.f32.mrb[0].mxu0
        %2509 = vdwg.mxu0
        %v2511 = vsel %vm2102, %v2278, 0
        %2513 = vmatprep.subr.mxu0 0.0
        %2514 = vmatpush1.msra.mxu0 %v827
        %2515 = vmatprep.subr.mxu0 0.0
        %2516 = vmatpush1.msra.mxu0 %v830
        %2517 = vmatprep.subr.mxu0 0.0
        %2518 = vmatpush1.msra.mxu0 0.0
        %2519 = vmatprep.subr.mxu0 0.0
        %2520 = vmatpush1.msra.mxu0 0.0
        %2521 = vmatprep.subr.mxu0 0.0
        %2522 = vmatpush1.msra.mxu0 0.0
        %2523 = vmatprep.subr.mxu0 0.0
        %2524 = vmatpush1.msra.mxu0 0.0
        %2525 = vmatprep.subr.mxu0 0.0
        %2526 = vmatpush1.msra.mxu0 0.0
        %2527 = vmatprep.subr.mxu0 0.0
        %2528 = vmatpush1.msra.mxu0 0.0
        %2529 = vmatprep.subr.mxu0 0.0
        %2530 = vmatpush1.msra.mxu0 0.0
        %2531 = vmatprep.subr.mxu0 0.0
        %2532 = vmatpush1.msra.mxu0 0.0
        %2533 = vmatprep.subr.mxu0 0.0
        %2534 = vmatpush1.msra.mxu0 0.0
        %2535 = vmatprep.subr.mxu0 0.0
        %2536 = vmatpush1.msra.mxu0 0.0
        %2537 = vmatprep.subr.mxu0 0.0
        %2538 = vmatpush1.msra.mxu0 0.0
        %2539 = vmatprep.subr.mxu0 0.0
        %2540 = vmatpush1.msra.mxu0 0.0
        %2541 = vmatprep.subr.mxu0 0.0
        %2542 = vmatpush1.msra.mxu0 0.0
        %2543 = vmatprep.subr.mxu0 0.0
        %2544 = vmatpush1.msra.mxu0 0.0
        %2545 = vmatprep.subr.mxu0 0.0
        %2546 = vmatpush1.msra.mxu0 0.0
        %2547 = vmatprep.subr.mxu0 0.0
        %2548 = vmatpush1.msra.mxu0 0.0
        %2549 = vmatprep.subr.mxu0 0.0
        %2550 = vmatpush1.msra.mxu0 0.0
        %2551 = vmatprep.subr.mxu0 0.0
        %2552 = vmatpush1.msra.mxu0 0.0
        %2553 = vmatprep.subr.mxu0 0.0
        %2554 = vmatpush1.msra.mxu0 0.0
        %2555 = vmatprep.subr.mxu0 0.0
        %2556 = vmatpush1.msra.mxu0 0.0
        %2557 = vmatprep.subr.mxu0 0.0
        %2558 = vmatpush1.msra.mxu0 0.0
        %2559 = vmatprep.subr.mxu0 0.0
        %2560 = vmatpush1.msra.mxu0 0.0
        %2561 = vmatprep.subr.mxu0 0.0
        %2562 = vmatpush1.msra.mxu0 0.0
        %2563 = vmatprep.subr.mxu0 0.0
        %2564 = vmatpush1.msra.mxu0 0.0
        %2565 = vmatprep.subr.mxu0 0.0
        %2566 = vmatpush1.msra.mxu0 0.0
        %2567 = vmatprep.subr.mxu0 0.0
        %2568 = vmatpush1.msra.mxu0 0.0
        %2569 = vmatprep.subr.mxu0 0.0
        %2570 = vmatpush1.msra.mxu0 0.0
        %2571 = vmatprep.subr.mxu0 0.0
        %2572 = vmatpush1.msra.mxu0 0.0
        %2573 = vmatprep.subr.mxu0 0.0
        %2574 = vmatpush1.msra.mxu0 0.0
        %2575 = vmatprep.subr.mxu0 0.0
        %2576 = vmatpush1.msra.mxu0 0.0
        %2577 = vmatprep.mubr.f32.mxu0 0.0
        %2578 = vmatmul.mubr.f32.gmra.mrb[0].mxu0 %v2511
        %v2579 = vpop.f32.mrb[0].mxu0
        %v2580 = vadd.f32 0.0, %v2579
        %v2581 = vpop.f32.mrb[0].mxu0
        %2582 = vdwg.mxu0
        %v2584 = vsel %vm2102, %v2279, 0
        %2586 = vmatprep.subr.mxu0 0.0
        %2587 = vmatpush1.msra.mxu0 %v835
        %2588 = vmatprep.subr.mxu0 0.0
        %2589 = vmatpush1.msra.mxu0 %v838
        %2590 = vmatprep.subr.mxu0 0.0
        %2591 = vmatpush1.msra.mxu0 0.0
        %2592 = vmatprep.subr.mxu0 0.0
        %2593 = vmatpush1.msra.mxu0 0.0
        %2594 = vmatprep.subr.mxu0 0.0
        %2595 = vmatpush1.msra.mxu0 0.0
        %2596 = vmatprep.subr.mxu0 0.0
        %2597 = vmatpush1.msra.mxu0 0.0
        %2598 = vmatprep.subr.mxu0 0.0
        %2599 = vmatpush1.msra.mxu0 0.0
        %2600 = vmatprep.subr.mxu0 0.0
        %2601 = vmatpush1.msra.mxu0 0.0
        %2602 = vmatprep.subr.mxu0 0.0
        %2603 = vmatpush1.msra.mxu0 0.0
        %2604 = vmatprep.subr.mxu0 0.0
        %2605 = vmatpush1.msra.mxu0 0.0
        %2606 = vmatprep.subr.mxu0 0.0
        %2607 = vmatpush1.msra.mxu0 0.0
        %2608 = vmatprep.subr.mxu0 0.0
        %2609 = vmatpush1.msra.mxu0 0.0
        %2610 = vmatprep.subr.mxu0 0.0
        %2611 = vmatpush1.msra.mxu0 0.0
        %2612 = vmatprep.subr.mxu0 0.0
        %2613 = vmatpush1.msra.mxu0 0.0
        %2614 = vmatprep.subr.mxu0 0.0
        %2615 = vmatpush1.msra.mxu0 0.0
        %2616 = vmatprep.subr.mxu0 0.0
        %2617 = vmatpush1.msra.mxu0 0.0
        %2618 = vmatprep.subr.mxu0 0.0
        %2619 = vmatpush1.msra.mxu0 0.0
        %2620 = vmatprep.subr.mxu0 0.0
        %2621 = vmatpush1.msra.mxu0 0.0
        %2622 = vmatprep.subr.mxu0 0.0
        %2623 = vmatpush1.msra.mxu0 0.0
        %2624 = vmatprep.subr.mxu0 0.0
        %2625 = vmatpush1.msra.mxu0 0.0
        %2626 = vmatprep.subr.mxu0 0.0
        %2627 = vmatpush1.msra.mxu0 0.0
        %2628 = vmatprep.subr.mxu0 0.0
        %2629 = vmatpush1.msra.mxu0 0.0
        %2630 = vmatprep.subr.mxu0 0.0
        %2631 = vmatpush1.msra.mxu0 0.0
        %2632 = vmatprep.subr.mxu0 0.0
        %2633 = vmatpush1.msra.mxu0 0.0
        %2634 = vmatprep.subr.mxu0 0.0
        %2635 = vmatpush1.msra.mxu0 0.0
        %2636 = vmatprep.subr.mxu0 0.0
        %2637 = vmatpush1.msra.mxu0 0.0
        %2638 = vmatprep.subr.mxu0 0.0
        %2639 = vmatpush1.msra.mxu0 0.0
        %2640 = vmatprep.subr.mxu0 0.0
        %2641 = vmatpush1.msra.mxu0 0.0
        %2642 = vmatprep.subr.mxu0 0.0
        %2643 = vmatpush1.msra.mxu0 0.0
        %2644 = vmatprep.subr.mxu0 0.0
        %2645 = vmatpush1.msra.mxu0 0.0
        %2646 = vmatprep.subr.mxu0 0.0
        %2647 = vmatpush1.msra.mxu0 0.0
        %2648 = vmatprep.subr.mxu0 0.0
        %2649 = vmatpush1.msra.mxu0 0.0
        %2650 = vmatprep.mubr.f32.mxu0 0.0
        %2651 = vmatmul.mubr.f32.gmra.mrb[0].mxu0 %v2584
        %v2652 = vpop.f32.mrb[0].mxu0
        %v2653 = vadd.f32 0.0, %v2652
        %v2654 = vpop.f32.mrb[0].mxu0
        %2655 = vdwg.mxu0
        %v2657 = vsel %vm2102, %v2280, 0
        %2659 = vmatprep.subr.mxu0 0.0
        %2660 = vmatpush1.msra.mxu0 %v843
        %2661 = vmatprep.subr.mxu0 0.0
        %2662 = vmatpush1.msra.mxu0 %v846
        %2663 = vmatprep.subr.mxu0 0.0
        %2664 = vmatpush1.msra.mxu0 0.0
        %2665 = vmatprep.subr.mxu0 0.0
        %2666 = vmatpush1.msra.mxu0 0.0
        %2667 = vmatprep.subr.mxu0 0.0
        %2668 = vmatpush1.msra.mxu0 0.0
        %2669 = vmatprep.subr.mxu0 0.0
        %2670 = vmatpush1.msra.mxu0 0.0
        %2671 = vmatprep.subr.mxu0 0.0
        %2672 = vmatpush1.msra.mxu0 0.0
        %2673 = vmatprep.subr.mxu0 0.0
        %2674 = vmatpush1.msra.mxu0 0.0
        %2675 = vmatprep.subr.mxu0 0.0
        %2676 = vmatpush1.msra.mxu0 0.0
        %2677 = vmatprep.subr.mxu0 0.0
        %2678 = vmatpush1.msra.mxu0 0.0
        %2679 = vmatprep.subr.mxu0 0.0
        %2680 = vmatpush1.msra.mxu0 0.0
        %2681 = vmatprep.subr.mxu0 0.0
        %2682 = vmatpush1.msra.mxu0 0.0
        %2683 = vmatprep.subr.mxu0 0.0
        %2684 = vmatpush1.msra.mxu0 0.0
        %2685 = vmatprep.subr.mxu0 0.0
        %2686 = vmatpush1.msra.mxu0 0.0
        %2687 = vmatprep.subr.mxu0 0.0
        %2688 = vmatpush1.msra.mxu0 0.0
        %2689 = vmatprep.subr.mxu0 0.0
        %2690 = vmatpush1.msra.mxu0 0.0
        %2691 = vmatprep.subr.mxu0 0.0
        %2692 = vmatpush1.msra.mxu0 0.0
        %2693 = vmatprep.subr.mxu0 0.0
        %2694 = vmatpush1.msra.mxu0 0.0
        %2695 = vmatprep.subr.mxu0 0.0
        %2696 = vmatpush1.msra.mxu0 0.0
        %2697 = vmatprep.subr.mxu0 0.0
        %2698 = vmatpush1.msra.mxu0 0.0
        %2699 = vmatprep.subr.mxu0 0.0
        %2700 = vmatpush1.msra.mxu0 0.0
        %2701 = vmatprep.subr.mxu0 0.0
        %2702 = vmatpush1.msra.mxu0 0.0
        %2703 = vmatprep.subr.mxu0 0.0
        %2704 = vmatpush1.msra.mxu0 0.0
        %2705 = vmatprep.subr.mxu0 0.0
        %2706 = vmatpush1.msra.mxu0 0.0
        %2707 = vmatprep.subr.mxu0 0.0
        %2708 = vmatpush1.msra.mxu0 0.0
        %2709 = vmatprep.subr.mxu0 0.0
        %2710 = vmatpush1.msra.mxu0 0.0
        %2711 = vmatprep.subr.mxu0 0.0
        %2712 = vmatpush1.msra.mxu0 0.0
        %2713 = vmatprep.subr.mxu0 0.0
        %2714 = vmatpush1.msra.mxu0 0.0
        %2715 = vmatprep.subr.mxu0 0.0
        %2716 = vmatpush1.msra.mxu0 0.0
        %2717 = vmatprep.subr.mxu0 0.0
        %2718 = vmatpush1.msra.mxu0 0.0
        %2719 = vmatprep.subr.mxu0 0.0
        %2720 = vmatpush1.msra.mxu0 0.0
        %2721 = vmatprep.subr.mxu0 0.0
        %2722 = vmatpush1.msra.mxu0 0.0
        %2723 = vmatprep.mubr.f32.mxu0 0.0
        %2724 = vmatmul.mubr.f32.gmra.mrb[0].mxu0 %v2657
        %v2725 = vpop.f32.mrb[0].mxu0
        %v2726 = vadd.f32 0.0, %v2725
        %v2727 = vpop.f32.mrb[0].mxu0
        %2728 = vdwg.mxu0
        %v2730 = vsel %vm2102, %v2281, 0
        %2732 = vmatprep.subr.mxu0 0.0
        %2733 = vmatpush1.msra.mxu0 %v851
        %2734 = vmatprep.subr.mxu0 0.0
        %2735 = vmatpush1.msra.mxu0 %v854
        %2736 = vmatprep.subr.mxu0 0.0
        %2737 = vmatpush1.msra.mxu0 0.0
        %2738 = vmatprep.subr.mxu0 0.0
        %2739 = vmatpush1.msra.mxu0 0.0
        %2740 = vmatprep.subr.mxu0 0.0
        %2741 = vmatpush1.msra.mxu0 0.0
        %2742 = vmatprep.subr.mxu0 0.0
        %2743 = vmatpush1.msra.mxu0 0.0
        %2744 = vmatprep.subr.mxu0 0.0
        %2745 = vmatpush1.msra.mxu0 0.0
        %2746 = vmatprep.subr.mxu0 0.0
        %2747 = vmatpush1.msra.mxu0 0.0
        %2748 = vmatprep.subr.mxu0 0.0
        %2749 = vmatpush1.msra.mxu0 0.0
        %2750 = vmatprep.subr.mxu0 0.0
        %2751 = vmatpush1.msra.mxu0 0.0
        %2752 = vmatprep.subr.mxu0 0.0
        %2753 = vmatpush1.msra.mxu0 0.0
        %2754 = vmatprep.subr.mxu0 0.0
        %2755 = vmatpush1.msra.mxu0 0.0
        %2756 = vmatprep.subr.mxu0 0.0
        %2757 = vmatpush1.msra.mxu0 0.0
        %2758 = vmatprep.subr.mxu0 0.0
        %2759 = vmatpush1.msra.mxu0 0.0
        %2760 = vmatprep.subr.mxu0 0.0
        %2761 = vmatpush1.msra.mxu0 0.0
        %2762 = vmatprep.subr.mxu0 0.0
        %2763 = vmatpush1.msra.mxu0 0.0
        %2764 = vmatprep.subr.mxu0 0.0
        %2765 = vmatpush1.msra.mxu0 0.0
        %2766 = vmatprep.subr.mxu0 0.0
        %2767 = vmatpush1.msra.mxu0 0.0
        %2768 = vmatprep.subr.mxu0 0.0
        %2769 = vmatpush1.msra.mxu0 0.0
        %2770 = vmatprep.subr.mxu0 0.0
        %2771 = vmatpush1.msra.mxu0 0.0
        %2772 = vmatprep.subr.mxu0 0.0
        %2773 = vmatpush1.msra.mxu0 0.0
        %2774 = vmatprep.subr.mxu0 0.0
        %2775 = vmatpush1.msra.mxu0 0.0
        %2776 = vmatprep.subr.mxu0 0.0
        %2777 = vmatpush1.msra.mxu0 0.0
        %2778 = vmatprep.subr.mxu0 0.0
        %2779 = vmatpush1.msra.mxu0 0.0
        %2780 = vmatprep.subr.mxu0 0.0
        %2781 = vmatpush1.msra.mxu0 0.0
        %2782 = vmatprep.subr.mxu0 0.0
        %2783 = vmatpush1.msra.mxu0 0.0
        %2784 = vmatprep.subr.mxu0 0.0
        %2785 = vmatpush1.msra.mxu0 0.0
        %2786 = vmatprep.subr.mxu0 0.0
        %2787 = vmatpush1.msra.mxu0 0.0
        %2788 = vmatprep.subr.mxu0 0.0
        %2789 = vmatpush1.msra.mxu0 0.0
        %2790 = vmatprep.subr.mxu0 0.0
        %2791 = vmatpush1.msra.mxu0 0.0
        %2792 = vmatprep.subr.mxu0 0.0
        %2793 = vmatpush1.msra.mxu0 0.0
        %2794 = vmatprep.subr.mxu0 0.0
        %2795 = vmatpush1.msra.mxu0 0.0
        %2796 = vmatprep.mubr.f32.mxu0 0.0
        %2797 = vmatmul.mubr.f32.gmra.mrb[0].mxu0 %v2730
        %v2798 = vpop.f32.mrb[0].mxu0
        %v2799 = vadd.f32 0.0, %v2798
        %v2800 = vpop.f32.mrb[0].mxu0
        %2801 = vdwg.mxu0
        %v2803 = vsel %vm2102, %v2282, 0
        %2805 = vmatprep.subr.mxu0 0.0
        %2806 = vmatpush1.msra.mxu0 %v859
        %2807 = vmatprep.subr.mxu0 0.0
        %2808 = vmatpush1.msra.mxu0 %v862
        %2809 = vmatprep.subr.mxu0 0.0
        %2810 = vmatpush1.msra.mxu0 0.0
        %2811 = vmatprep.subr.mxu0 0.0
        %2812 = vmatpush1.msra.mxu0 0.0
        %2813 = vmatprep.subr.mxu0 0.0
        %2814 = vmatpush1.msra.mxu0 0.0
        %2815 = vmatprep.subr.mxu0 0.0
        %2816 = vmatpush1.msra.mxu0 0.0
        %2817 = vmatprep.subr.mxu0 0.0
        %2818 = vmatpush1.msra.mxu0 0.0
        %2819 = vmatprep.subr.mxu0 0.0
        %2820 = vmatpush1.msra.mxu0 0.0
        %2821 = vmatprep.subr.mxu0 0.0
        %2822 = vmatpush1.msra.mxu0 0.0
        %2823 = vmatprep.subr.mxu0 0.0
        %2824 = vmatpush1.msra.mxu0 0.0
        %2825 = vmatprep.subr.mxu0 0.0
        %2826 = vmatpush1.msra.mxu0 0.0
        %2827 = vmatprep.subr.mxu0 0.0
        %2828 = vmatpush1.msra.mxu0 0.0
        %2829 = vmatprep.subr.mxu0 0.0
        %2830 = vmatpush1.msra.mxu0 0.0
        %2831 = vmatprep.subr.mxu0 0.0
        %2832 = vmatpush1.msra.mxu0 0.0
        %2833 = vmatprep.subr.mxu0 0.0
        %2834 = vmatpush1.msra.mxu0 0.0
        %2835 = vmatprep.subr.mxu0 0.0
        %2836 = vmatpush1.msra.mxu0 0.0
        %2837 = vmatprep.subr.mxu0 0.0
        %2838 = vmatpush1.msra.mxu0 0.0
        %2839 = vmatprep.subr.mxu0 0.0
        %2840 = vmatpush1.msra.mxu0 0.0
        %2841 = vmatprep.subr.mxu0 0.0
        %2842 = vmatpush1.msra.mxu0 0.0
        %2843 = vmatprep.subr.mxu0 0.0
        %2844 = vmatpush1.msra.mxu0 0.0
        %2845 = vmatprep.subr.mxu0 0.0
        %2846 = vmatpush1.msra.mxu0 0.0
        %2847 = vmatprep.subr.mxu0 0.0
        %2848 = vmatpush1.msra.mxu0 0.0
        %2849 = vmatprep.subr.mxu0 0.0
        %2850 = vmatpush1.msra.mxu0 0.0
        %2851 = vmatprep.subr.mxu0 0.0
        %2852 = vmatpush1.msra.mxu0 0.0
        %2853 = vmatprep.subr.mxu0 0.0
        %2854 = vmatpush1.msra.mxu0 0.0
        %2855 = vmatprep.subr.mxu0 0.0
        %2856 = vmatpush1.msra.mxu0 0.0
        %2857 = vmatprep.subr.mxu0 0.0
        %2858 = vmatpush1.msra.mxu0 0.0
        %2859 = vmatprep.subr.mxu0 0.0
        %2860 = vmatpush1.msra.mxu0 0.0
        %2861 = vmatprep.subr.mxu0 0.0
        %2862 = vmatpush1.msra.mxu0 0.0
        %2863 = vmatprep.subr.mxu0 0.0
        %2864 = vmatpush1.msra.mxu0 0.0
        %2865 = vmatprep.subr.mxu0 0.0
        %2866 = vmatpush1.msra.mxu0 0.0
        %2867 = vmatprep.subr.mxu0 0.0
        %2868 = vmatpush1.msra.mxu0 0.0
        %2869 = vmatprep.mubr.f32.mxu0 0.0
        %2870 = vmatmul.mubr.f32.gmra.mrb[0].mxu0 %v2803
        %v2871 = vpop.f32.mrb[0].mxu0
        %v2872 = vadd.f32 0.0, %v2871
        %v2873 = vpop.f32.mrb[0].mxu0
        %2874 = vdwg.mxu0
        %v2876 = vsel %vm2102, %v2283, 0
        %2878 = vmatprep.subr.mxu0 0.0
        %2879 = vmatpush1.msra.mxu0 %v867
        %2880 = vmatprep.subr.mxu0 0.0
        %2881 = vmatpush1.msra.mxu0 %v870
        %2882 = vmatprep.subr.mxu0 0.0
        %2883 = vmatpush1.msra.mxu0 0.0
        %2884 = vmatprep.subr.mxu0 0.0
        %2885 = vmatpush1.msra.mxu0 0.0
        %2886 = vmatprep.subr.mxu0 0.0
        %2887 = vmatpush1.msra.mxu0 0.0
        %2888 = vmatprep.subr.mxu0 0.0
        %2889 = vmatpush1.msra.mxu0 0.0
        %2890 = vmatprep.subr.mxu0 0.0
        %2891 = vmatpush1.msra.mxu0 0.0
        %2892 = vmatprep.subr.mxu0 0.0
        %2893 = vmatpush1.msra.mxu0 0.0
        %2894 = vmatprep.subr.mxu0 0.0
        %2895 = vmatpush1.msra.mxu0 0.0
        %2896 = vmatprep.subr.mxu0 0.0
        %2897 = vmatpush1.msra.mxu0 0.0
        %2898 = vmatprep.subr.mxu0 0.0
        %2899 = vmatpush1.msra.mxu0 0.0
        %2900 = vmatprep.subr.mxu0 0.0
        %2901 = vmatpush1.msra.mxu0 0.0
        %2902 = vmatprep.subr.mxu0 0.0
        %2903 = vmatpush1.msra.mxu0 0.0
        %2904 = vmatprep.subr.mxu0 0.0
        %2905 = vmatpush1.msra.mxu0 0.0
        %2906 = vmatprep.subr.mxu0 0.0
        %2907 = vmatpush1.msra.mxu0 0.0
        %2908 = vmatprep.subr.mxu0 0.0
        %2909 = vmatpush1.msra.mxu0 0.0
        %2910 = vmatprep.subr.mxu0 0.0
        %2911 = vmatpush1.msra.mxu0 0.0
        %2912 = vmatprep.subr.mxu0 0.0
        %2913 = vmatpush1.msra.mxu0 0.0
        %2914 = vmatprep.subr.mxu0 0.0
        %2915 = vmatpush1.msra.mxu0 0.0
        %2916 = vmatprep.subr.mxu0 0.0
        %2917 = vmatpush1.msra.mxu0 0.0
        %2918 = vmatprep.subr.mxu0 0.0
        %2919 = vmatpush1.msra.mxu0 0.0
        %2920 = vmatprep.subr.mxu0 0.0
        %2921 = vmatpush1.msra.mxu0 0.0
        %2922 = vmatprep.subr.mxu0 0.0
        %2923 = vmatpush1.msra.mxu0 0.0
        %2924 = vmatprep.subr.mxu0 0.0
        %2925 = vmatpush1.msra.mxu0 0.0
        %2926 = vmatprep.subr.mxu0 0.0
        %2927 = vmatpush1.msra.mxu0 0.0
        %2928 = vmatprep.subr.mxu0 0.0
        %2929 = vmatpush1.msra.mxu0 0.0
        %2930 = vmatprep.subr.mxu0 0.0
        %2931 = vmatpush1.msra.mxu0 0.0
        %2932 = vmatprep.subr.mxu0 0.0
        %2933 = vmatpush1.msra.mxu0 0.0
        %2934 = vmatprep.subr.mxu0 0.0
        %2935 = vmatpush1.msra.mxu0 0.0
        %2936 = vmatprep.subr.mxu0 0.0
        %2937 = vmatpush1.msra.mxu0 0.0
        %2938 = vmatprep.subr.mxu0 0.0
        %2939 = vmatpush1.msra.mxu0 0.0
        %2940 = vmatprep.subr.mxu0 0.0
        %2941 = vmatpush1.msra.mxu0 0.0
        %2942 = vmatprep.mubr.f32.mxu0 0.0
        %2943 = vmatmul.mubr.f32.gmra.mrb[0].mxu0 %v2876
        %v2944 = vpop.f32.mrb[0].mxu0
        %v2945 = vadd.f32 0.0, %v2944
        %v2946 = vpop.f32.mrb[0].mxu0
        %2947 = vdwg.mxu0
        %v2949 = vsel %vm2102, %v2284, 0
        %2951 = vmatprep.subr.mxu0 0.0
        %2952 = vmatpush1.msra.mxu0 %v875
        %2953 = vmatprep.subr.mxu0 0.0
        %2954 = vmatpush1.msra.mxu0 %v878
        %2955 = vmatprep.subr.mxu0 0.0
        %2956 = vmatpush1.msra.mxu0 0.0
        %2957 = vmatprep.subr.mxu0 0.0
        %2958 = vmatpush1.msra.mxu0 0.0
        %2959 = vmatprep.subr.mxu0 0.0
        %2960 = vmatpush1.msra.mxu0 0.0
        %2961 = vmatprep.subr.mxu0 0.0
        %2962 = vmatpush1.msra.mxu0 0.0
        %2963 = vmatprep.subr.mxu0 0.0
        %2964 = vmatpush1.msra.mxu0 0.0
        %2965 = vmatprep.subr.mxu0 0.0
        %2966 = vmatpush1.msra.mxu0 0.0
        %2967 = vmatprep.subr.mxu0 0.0
        %2968 = vmatpush1.msra.mxu0 0.0
        %2969 = vmatprep.subr.mxu0 0.0
        %2970 = vmatpush1.msra.mxu0 0.0
        %2971 = vmatprep.subr.mxu0 0.0
        %2972 = vmatpush1.msra.mxu0 0.0
        %2973 = vmatprep.subr.mxu0 0.0
        %2974 = vmatpush1.msra.mxu0 0.0
        %2975 = vmatprep.subr.mxu0 0.0
        %2976 = vmatpush1.msra.mxu0 0.0
        %2977 = vmatprep.subr.mxu0 0.0
        %2978 = vmatpush1.msra.mxu0 0.0
        %2979 = vmatprep.subr.mxu0 0.0
        %2980 = vmatpush1.msra.mxu0 0.0
        %2981 = vmatprep.subr.mxu0 0.0
        %2982 = vmatpush1.msra.mxu0 0.0
        %2983 = vmatprep.subr.mxu0 0.0
        %2984 = vmatpush1.msra.mxu0 0.0
        %2985 = vmatprep.subr.mxu0 0.0
        %2986 = vmatpush1.msra.mxu0 0.0
        %2987 = vmatprep.subr.mxu0 0.0
        %2988 = vmatpush1.msra.mxu0 0.0
        %2989 = vmatprep.subr.mxu0 0.0
        %2990 = vmatpush1.msra.mxu0 0.0
        %2991 = vmatprep.subr.mxu0 0.0
        %2992 = vmatpush1.msra.mxu0 0.0
        %2993 = vmatprep.subr.mxu0 0.0
        %2994 = vmatpush1.msra.mxu0 0.0
        %2995 = vmatprep.subr.mxu0 0.0
        %2996 = vmatpush1.msra.mxu0 0.0
        %2997 = vmatprep.subr.mxu0 0.0
        %2998 = vmatpush1.msra.mxu0 0.0
        %2999 = vmatprep.subr.mxu0 0.0
        %3000 = vmatpush1.msra.mxu0 0.0
        %3001 = vmatprep.subr.mxu0 0.0
        %3002 = vmatpush1.msra.mxu0 0.0
        %3003 = vmatprep.subr.mxu0 0.0
        %3004 = vmatpush1.msra.mxu0 0.0
        %3005 = vmatprep.subr.mxu0 0.0
        %3006 = vmatpush1.msra.mxu0 0.0
        %3007 = vmatprep.subr.mxu0 0.0
        %3008 = vmatpush1.msra.mxu0 0.0
        %3009 = vmatprep.subr.mxu0 0.0
        %3010 = vmatpush1.msra.mxu0 0.0
        %3011 = vmatprep.subr.mxu0 0.0
        %3012 = vmatpush1.msra.mxu0 0.0
        %3013 = vmatprep.subr.mxu0 0.0
        %3014 = vmatpush1.msra.mxu0 0.0
        %3015 = vmatprep.mubr.f32.mxu0 0.0
        %3016 = vmatmul.mubr.f32.gmra.mrb[0].mxu0 %v2949
        %v3017 = vpop.f32.mrb[0].mxu0
        %v3018 = vadd.f32 0.0, %v3017
        %v3019 = vpop.f32.mrb[0].mxu0
        %3020 = vdwg.mxu0
        %v3022 = vsel %vm2102, %v2285, 0
        %3024 = vmatprep.subr.mxu0 0.0
        %3025 = vmatpush1.msra.mxu0 %v883
        %3026 = vmatprep.subr.mxu0 0.0
        %3027 = vmatpush1.msra.mxu0 %v886
        %3028 = vmatprep.subr.mxu0 0.0
        %3029 = vmatpush1.msra.mxu0 0.0
        %3030 = vmatprep.subr.mxu0 0.0
        %3031 = vmatpush1.msra.mxu0 0.0
        %3032 = vmatprep.subr.mxu0 0.0
        %3033 = vmatpush1.msra.mxu0 0.0
        %3034 = vmatprep.subr.mxu0 0.0
        %3035 = vmatpush1.msra.mxu0 0.0
        %3036 = vmatprep.subr.mxu0 0.0
        %3037 = vmatpush1.msra.mxu0 0.0
        %3038 = vmatprep.subr.mxu0 0.0
        %3039 = vmatpush1.msra.mxu0 0.0
        %3040 = vmatprep.subr.mxu0 0.0
        %3041 = vmatpush1.msra.mxu0 0.0
        %3042 = vmatprep.subr.mxu0 0.0
        %3043 = vmatpush1.msra.mxu0 0.0
        %3044 = vmatprep.subr.mxu0 0.0
        %3045 = vmatpush1.msra.mxu0 0.0
        %3046 = vmatprep.subr.mxu0 0.0
        %3047 = vmatpush1.msra.mxu0 0.0
        %3048 = vmatprep.subr.mxu0 0.0
        %3049 = vmatpush1.msra.mxu0 0.0
        %3050 = vmatprep.subr.mxu0 0.0
        %3051 = vmatpush1.msra.mxu0 0.0
        %3052 = vmatprep.subr.mxu0 0.0
        %3053 = vmatpush1.msra.mxu0 0.0
        %3054 = vmatprep.subr.mxu0 0.0
        %3055 = vmatpush1.msra.mxu0 0.0
        %3056 = vmatprep.subr.mxu0 0.0
        %3057 = vmatpush1.msra.mxu0 0.0
        %3058 = vmatprep.subr.mxu0 0.0
        %3059 = vmatpush1.msra.mxu0 0.0
        %3060 = vmatprep.subr.mxu0 0.0
        %3061 = vmatpush1.msra.mxu0 0.0
        %3062 = vmatprep.subr.mxu0 0.0
        %3063 = vmatpush1.msra.mxu0 0.0
        %3064 = vmatprep.subr.mxu0 0.0
        %3065 = vmatpush1.msra.mxu0 0.0
        %3066 = vmatprep.subr.mxu0 0.0
        %3067 = vmatpush1.msra.mxu0 0.0
        %3068 = vmatprep.subr.mxu0 0.0
        %3069 = vmatpush1.msra.mxu0 0.0
        %3070 = vmatprep.subr.mxu0 0.0
        %3071 = vmatpush1.msra.mxu0 0.0
        %3072 = vmatprep.subr.mxu0 0.0
        %3073 = vmatpush1.msra.mxu0 0.0
        %3074 = vmatprep.subr.mxu0 0.0
        %3075 = vmatpush1.msra.mxu0 0.0
        %3076 = vmatprep.subr.mxu0 0.0
        %3077 = vmatpush1.msra.mxu0 0.0
        %3078 = vmatprep.subr.mxu0 0.0
        %3079 = vmatpush1.msra.mxu0 0.0
        %3080 = vmatprep.subr.mxu0 0.0
        %3081 = vmatpush1.msra.mxu0 0.0
        %3082 = vmatprep.subr.mxu0 0.0
        %3083 = vmatpush1.msra.mxu0 0.0
        %3084 = vmatprep.subr.mxu0 0.0
        %3085 = vmatpush1.msra.mxu0 0.0
        %3086 = vmatprep.subr.mxu0 0.0
        %3087 = vmatpush1.msra.mxu0 0.0
        %3088 = vmatprep.mubr.f32.mxu0 0.0
        %3089 = vmatmul.mubr.f32.gmra.mrb[0].mxu0 %v3022
        %v3090 = vpop.f32.mrb[0].mxu0
        %v3091 = vadd.f32 0.0, %v3090
        %v3092 = vpop.f32.mrb[0].mxu0
        %3093 = vdwg.mxu0
        %v3095 = vsel %vm2102, %v2286, 0
        %3097 = vmatprep.subr.mxu0 0.0
        %3098 = vmatpush1.msra.mxu0 %v891
        %3099 = vmatprep.subr.mxu0 0.0
        %3100 = vmatpush1.msra.mxu0 %v894
        %3101 = vmatprep.subr.mxu0 0.0
        %3102 = vmatpush1.msra.mxu0 0.0
        %3103 = vmatprep.subr.mxu0 0.0
        %3104 = vmatpush1.msra.mxu0 0.0
        %3105 = vmatprep.subr.mxu0 0.0
        %3106 = vmatpush1.msra.mxu0 0.0
        %3107 = vmatprep.subr.mxu0 0.0
        %3108 = vmatpush1.msra.mxu0 0.0
        %3109 = vmatprep.subr.mxu0 0.0
        %3110 = vmatpush1.msra.mxu0 0.0
        %3111 = vmatprep.subr.mxu0 0.0
        %3112 = vmatpush1.msra.mxu0 0.0
        %3113 = vmatprep.subr.mxu0 0.0
        %3114 = vmatpush1.msra.mxu0 0.0
        %3115 = vmatprep.subr.mxu0 0.0
        %3116 = vmatpush1.msra.mxu0 0.0
        %3117 = vmatprep.subr.mxu0 0.0
        %3118 = vmatpush1.msra.mxu0 0.0
        %3119 = vmatprep.subr.mxu0 0.0
        %3120 = vmatpush1.msra.mxu0 0.0
        %3121 = vmatprep.subr.mxu0 0.0
        %3122 = vmatpush1.msra.mxu0 0.0
        %3123 = vmatprep.subr.mxu0 0.0
        %3124 = vmatpush1.msra.mxu0 0.0
        %3125 = vmatprep.subr.mxu0 0.0
        %3126 = vmatpush1.msra.mxu0 0.0
        %3127 = vmatprep.subr.mxu0 0.0
        %3128 = vmatpush1.msra.mxu0 0.0
        %3129 = vmatprep.subr.mxu0 0.0
        %3130 = vmatpush1.msra.mxu0 0.0
        %3131 = vmatprep.subr.mxu0 0.0
        %3132 = vmatpush1.msra.mxu0 0.0
        %3133 = vmatprep.subr.mxu0 0.0
        %3134 = vmatpush1.msra.mxu0 0.0
        %3135 = vmatprep.subr.mxu0 0.0
        %3136 = vmatpush1.msra.mxu0 0.0
        %3137 = vmatprep.subr.mxu0 0.0
        %3138 = vmatpush1.msra.mxu0 0.0
        %3139 = vmatprep.subr.mxu0 0.0
        %3140 = vmatpush1.msra.mxu0 0.0
        %3141 = vmatprep.subr.mxu0 0.0
        %3142 = vmatpush1.msra.mxu0 0.0
        %3143 = vmatprep.subr.mxu0 0.0
        %3144 = vmatpush1.msra.mxu0 0.0
        %3145 = vmatprep.subr.mxu0 0.0
        %3146 = vmatpush1.msra.mxu0 0.0
        %3147 = vmatprep.subr.mxu0 0.0
        %3148 = vmatpush1.msra.mxu0 0.0
        %3149 = vmatprep.subr.mxu0 0.0
        %3150 = vmatpush1.msra.mxu0 0.0
        %3151 = vmatprep.subr.mxu0 0.0
        %3152 = vmatpush1.msra.mxu0 0.0
        %3153 = vmatprep.subr.mxu0 0.0
        %3154 = vmatpush1.msra.mxu0 0.0
        %3155 = vmatprep.subr.mxu0 0.0
        %3156 = vmatpush1.msra.mxu0 0.0
        %3157 = vmatprep.subr.mxu0 0.0
        %3158 = vmatpush1.msra.mxu0 0.0
        %3159 = vmatprep.subr.mxu0 0.0
        %3160 = vmatpush1.msra.mxu0 0.0
        %3161 = vmatprep.mubr.f32.mxu0 0.0
        %3162 = vmatmul.mubr.f32.gmra.mrb[0].mxu0 %v3095
        %v3163 = vpop.f32.mrb[0].mxu0
        %v3164 = vadd.f32 0.0, %v3163
        %v3165 = vpop.f32.mrb[0].mxu0
        %3166 = vdwg.mxu0
        %v3168 = vsel %vm2102, %v2287, 0
        %3170 = vmatprep.subr.mxu0 0.0
        %3171 = vmatpush1.msra.mxu0 %v899
        %3172 = vmatprep.subr.mxu0 0.0
        %3173 = vmatpush1.msra.mxu0 %v902
        %3174 = vmatprep.subr.mxu0 0.0
        %3175 = vmatpush1.msra.mxu0 0.0
        %3176 = vmatprep.subr.mxu0 0.0
        %3177 = vmatpush1.msra.mxu0 0.0
        %3178 = vmatprep.subr.mxu0 0.0
        %3179 = vmatpush1.msra.mxu0 0.0
        %3180 = vmatprep.subr.mxu0 0.0
        %3181 = vmatpush1.msra.mxu0 0.0
        %3182 = vmatprep.subr.mxu0 0.0
        %3183 = vmatpush1.msra.mxu0 0.0
        %3184 = vmatprep.subr.mxu0 0.0
        %3185 = vmatpush1.msra.mxu0 0.0
        %3186 = vmatprep.subr.mxu0 0.0
        %3187 = vmatpush1.msra.mxu0 0.0
        %3188 = vmatprep.subr.mxu0 0.0
        %3189 = vmatpush1.msra.mxu0 0.0
        %3190 = vmatprep.subr.mxu0 0.0
        %3191 = vmatpush1.msra.mxu0 0.0
        %3192 = vmatprep.subr.mxu0 0.0
        %3193 = vmatpush1.msra.mxu0 0.0
        %3194 = vmatprep.subr.mxu0 0.0
        %3195 = vmatpush1.msra.mxu0 0.0
        %3196 = vmatprep.subr.mxu0 0.0
        %3197 = vmatpush1.msra.mxu0 0.0
        %3198 = vmatprep.subr.mxu0 0.0
        %3199 = vmatpush1.msra.mxu0 0.0
        %3200 = vmatprep.subr.mxu0 0.0
        %3201 = vmatpush1.msra.mxu0 0.0
        %3202 = vmatprep.subr.mxu0 0.0
        %3203 = vmatpush1.msra.mxu0 0.0
        %3204 = vmatprep.subr.mxu0 0.0
        %3205 = vmatpush1.msra.mxu0 0.0
        %3206 = vmatprep.subr.mxu0 0.0
        %3207 = vmatpush1.msra.mxu0 0.0
        %3208 = vmatprep.subr.mxu0 0.0
        %3209 = vmatpush1.msra.mxu0 0.0
        %3210 = vmatprep.subr.mxu0 0.0
        %3211 = vmatpush1.msra.mxu0 0.0
        %3212 = vmatprep.subr.mxu0 0.0
        %3213 = vmatpush1.msra.mxu0 0.0
        %3214 = vmatprep.subr.mxu0 0.0
        %3215 = vmatpush1.msra.mxu0 0.0
        %3216 = vmatprep.subr.mxu0 0.0
        %3217 = vmatpush1.msra.mxu0 0.0
        %3218 = vmatprep.subr.mxu0 0.0
        %3219 = vmatpush1.msra.mxu0 0.0
        %3220 = vmatprep.subr.mxu0 0.0
        %3221 = vmatpush1.msra.mxu0 0.0
        %3222 = vmatprep.subr.mxu0 0.0
        %3223 = vmatpush1.msra.mxu0 0.0
        %3224 = vmatprep.subr.mxu0 0.0
        %3225 = vmatpush1.msra.mxu0 0.0
        %3226 = vmatprep.subr.mxu0 0.0
        %3227 = vmatpush1.msra.mxu0 0.0
        %3228 = vmatprep.subr.mxu0 0.0
        %3229 = vmatpush1.msra.mxu0 0.0
        %3230 = vmatprep.subr.mxu0 0.0
        %3231 = vmatpush1.msra.mxu0 0.0
        %3232 = vmatprep.subr.mxu0 0.0
        %3233 = vmatpush1.msra.mxu0 0.0
        %3234 = vmatprep.mubr.f32.mxu0 0.0
        %3235 = vmatmul.mubr.f32.gmra.mrb[0].mxu0 %v3168
        %v3236 = vpop.f32.mrb[0].mxu0
        %v3237 = vadd.f32 0.0, %v3236
        %v3238 = vpop.f32.mrb[0].mxu0
        %3239 = vdwg.mxu0
        %v3241 = vsel %vm2102, %v2288, 0
        %3243 = vmatprep.subr.mxu0 0.0
        %3244 = vmatpush1.msra.mxu0 %v907
        %3245 = vmatprep.subr.mxu0 0.0
        %3246 = vmatpush1.msra.mxu0 %v910
        %3247 = vmatprep.subr.mxu0 0.0
        %3248 = vmatpush1.msra.mxu0 0.0
        %3249 = vmatprep.subr.mxu0 0.0
        %3250 = vmatpush1.msra.mxu0 0.0
        %3251 = vmatprep.subr.mxu0 0.0
        %3252 = vmatpush1.msra.mxu0 0.0
        %3253 = vmatprep.subr.mxu0 0.0
        %3254 = vmatpush1.msra.mxu0 0.0
        %3255 = vmatprep.subr.mxu0 0.0
        %3256 = vmatpush1.msra.mxu0 0.0
        %3257 = vmatprep.subr.mxu0 0.0
        %3258 = vmatpush1.msra.mxu0 0.0
        %3259 = vmatprep.subr.mxu0 0.0
        %3260 = vmatpush1.msra.mxu0 0.0
        %3261 = vmatprep.subr.mxu0 0.0
        %3262 = vmatpush1.msra.mxu0 0.0
        %3263 = vmatprep.subr.mxu0 0.0
        %3264 = vmatpush1.msra.mxu0 0.0
        %3265 = vmatprep.subr.mxu0 0.0
        %3266 = vmatpush1.msra.mxu0 0.0
        %3267 = vmatprep.subr.mxu0 0.0
        %3268 = vmatpush1.msra.mxu0 0.0
        %3269 = vmatprep.subr.mxu0 0.0
        %3270 = vmatpush1.msra.mxu0 0.0
        %3271 = vmatprep.subr.mxu0 0.0
        %3272 = vmatpush1.msra.mxu0 0.0
        %3273 = vmatprep.subr.mxu0 0.0
        %3274 = vmatpush1.msra.mxu0 0.0
        %3275 = vmatprep.subr.mxu0 0.0
        %3276 = vmatpush1.msra.mxu0 0.0
        %3277 = vmatprep.subr.mxu0 0.0
        %3278 = vmatpush1.msra.mxu0 0.0
        %3279 = vmatprep.subr.mxu0 0.0
        %3280 = vmatpush1.msra.mxu0 0.0
        %3281 = vmatprep.subr.mxu0 0.0
        %3282 = vmatpush1.msra.mxu0 0.0
        %3283 = vmatprep.subr.mxu0 0.0
        %3284 = vmatpush1.msra.mxu0 0.0
        %3285 = vmatprep.subr.mxu0 0.0
        %3286 = vmatpush1.msra.mxu0 0.0
        %3287 = vmatprep.subr.mxu0 0.0
        %3288 = vmatpush1.msra.mxu0 0.0
        %3289 = vmatprep.subr.mxu0 0.0
        %3290 = vmatpush1.msra.mxu0 0.0
        %3291 = vmatprep.subr.mxu0 0.0
        %3292 = vmatpush1.msra.mxu0 0.0
        %3293 = vmatprep.subr.mxu0 0.0
        %3294 = vmatpush1.msra.mxu0 0.0
        %3295 = vmatprep.subr.mxu0 0.0
        %3296 = vmatpush1.msra.mxu0 0.0
        %3297 = vmatprep.subr.mxu0 0.0
        %3298 = vmatpush1.msra.mxu0 0.0
        %3299 = vmatprep.subr.mxu0 0.0
        %3300 = vmatpush1.msra.mxu0 0.0
        %3301 = vmatprep.subr.mxu0 0.0
        %3302 = vmatpush1.msra.mxu0 0.0
        %3303 = vmatprep.subr.mxu0 0.0
        %3304 = vmatpush1.msra.mxu0 0.0
        %3305 = vmatprep.subr.mxu0 0.0
        %3306 = vmatpush1.msra.mxu0 0.0
        %3307 = vmatprep.mubr.f32.mxu0 0.0
        %3308 = vmatmul.mubr.f32.gmra.mrb[0].mxu0 %v3241
        %v3309 = vpop.f32.mrb[0].mxu0
        %v3310 = vadd.f32 0.0, %v3309
        %v3311 = vpop.f32.mrb[0].mxu0
        %3312 = vdwg.mxu0
        %v3314 = vsel %vm2102, %v2289, 0
        %3316 = vmatprep.subr.mxu0 0.0
        %3317 = vmatpush1.msra.mxu0 %v915
        %3318 = vmatprep.subr.mxu0 0.0
        %3319 = vmatpush1.msra.mxu0 %v918
        %3320 = vmatprep.subr.mxu0 0.0
        %3321 = vmatpush1.msra.mxu0 0.0
        %3322 = vmatprep.subr.mxu0 0.0
        %3323 = vmatpush1.msra.mxu0 0.0
        %3324 = vmatprep.subr.mxu0 0.0
        %3325 = vmatpush1.msra.mxu0 0.0
        %3326 = vmatprep.subr.mxu0 0.0
        %3327 = vmatpush1.msra.mxu0 0.0
        %3328 = vmatprep.subr.mxu0 0.0
        %3329 = vmatpush1.msra.mxu0 0.0
        %3330 = vmatprep.subr.mxu0 0.0
        %3331 = vmatpush1.msra.mxu0 0.0
        %3332 = vmatprep.subr.mxu0 0.0
        %3333 = vmatpush1.msra.mxu0 0.0
        %3334 = vmatprep.subr.mxu0 0.0
        %3335 = vmatpush1.msra.mxu0 0.0
        %3336 = vmatprep.subr.mxu0 0.0
        %3337 = vmatpush1.msra.mxu0 0.0
        %3338 = vmatprep.subr.mxu0 0.0
        %3339 = vmatpush1.msra.mxu0 0.0
        %3340 = vmatprep.subr.mxu0 0.0
        %3341 = vmatpush1.msra.mxu0 0.0
        %3342 = vmatprep.subr.mxu0 0.0
        %3343 = vmatpush1.msra.mxu0 0.0
        %3344 = vmatprep.subr.mxu0 0.0
        %3345 = vmatpush1.msra.mxu0 0.0
        %3346 = vmatprep.subr.mxu0 0.0
        %3347 = vmatpush1.msra.mxu0 0.0
        %3348 = vmatprep.subr.mxu0 0.0
        %3349 = vmatpush1.msra.mxu0 0.0
        %3350 = vmatprep.subr.mxu0 0.0
        %3351 = vmatpush1.msra.mxu0 0.0
        %3352 = vmatprep.subr.mxu0 0.0
        %3353 = vmatpush1.msra.mxu0 0.0
        %3354 = vmatprep.subr.mxu0 0.0
        %3355 = vmatpush1.msra.mxu0 0.0
        %3356 = vmatprep.subr.mxu0 0.0
        %3357 = vmatpush1.msra.mxu0 0.0
        %3358 = vmatprep.subr.mxu0 0.0
        %3359 = vmatpush1.msra.mxu0 0.0
        %3360 = vmatprep.subr.mxu0 0.0
        %3361 = vmatpush1.msra.mxu0 0.0
        %3362 = vmatprep.subr.mxu0 0.0
        %3363 = vmatpush1.msra.mxu0 0.0
        %3364 = vmatprep.subr.mxu0 0.0
        %3365 = vmatpush1.msra.mxu0 0.0
        %3366 = vmatprep.subr.mxu0 0.0
        %3367 = vmatpush1.msra.mxu0 0.0
        %3368 = vmatprep.subr.mxu0 0.0
        %3369 = vmatpush1.msra.mxu0 0.0
        %3370 = vmatprep.subr.mxu0 0.0
        %3371 = vmatpush1.msra.mxu0 0.0
        %3372 = vmatprep.subr.mxu0 0.0
        %3373 = vmatpush1.msra.mxu0 0.0
        %3374 = vmatprep.subr.mxu0 0.0
        %3375 = vmatpush1.msra.mxu0 0.0
        %3376 = vmatprep.subr.mxu0 0.0
        %3377 = vmatpush1.msra.mxu0 0.0
        %3378 = vmatprep.subr.mxu0 0.0
        %3379 = vmatpush1.msra.mxu0 0.0
        %3380 = vmatprep.mubr.f32.mxu0 0.0
        %3381 = vmatmul.mubr.f32.gmra.mrb[0].mxu0 %v3314
        %v3382 = vpop.f32.mrb[0].mxu0
        %v3383 = vadd.f32 0.0, %v3382
        %v3384 = vpop.f32.mrb[0].mxu0
        %3385 = vdwg.mxu0
        %v3387 = vsel %vm2102, %v2290, 0
        %3389 = vmatprep.subr.mxu0 0.0
        %3390 = vmatpush1.msra.mxu0 %v923
        %3391 = vmatprep.subr.mxu0 0.0
        %3392 = vmatpush1.msra.mxu0 %v926
        %3393 = vmatprep.subr.mxu0 0.0
        %3394 = vmatpush1.msra.mxu0 0.0
        %3395 = vmatprep.subr.mxu0 0.0
        %3396 = vmatpush1.msra.mxu0 0.0
        %3397 = vmatprep.subr.mxu0 0.0
        %3398 = vmatpush1.msra.mxu0 0.0
        %3399 = vmatprep.subr.mxu0 0.0
        %3400 = vmatpush1.msra.mxu0 0.0
        %3401 = vmatprep.subr.mxu0 0.0
        %3402 = vmatpush1.msra.mxu0 0.0
        %3403 = vmatprep.subr.mxu0 0.0
        %3404 = vmatpush1.msra.mxu0 0.0
        %3405 = vmatprep.subr.mxu0 0.0
        %3406 = vmatpush1.msra.mxu0 0.0
        %3407 = vmatprep.subr.mxu0 0.0
        %3408 = vmatpush1.msra.mxu0 0.0
        %3409 = vmatprep.subr.mxu0 0.0
        %3410 = vmatpush1.msra.mxu0 0.0
        %3411 = vmatprep.subr.mxu0 0.0
        %3412 = vmatpush1.msra.mxu0 0.0
        %3413 = vmatprep.subr.mxu0 0.0
        %3414 = vmatpush1.msra.mxu0 0.0
        %3415 = vmatprep.subr.mxu0 0.0
        %3416 = vmatpush1.msra.mxu0 0.0
        %3417 = vmatprep.subr.mxu0 0.0
        %3418 = vmatpush1.msra.mxu0 0.0
        %3419 = vmatprep.subr.mxu0 0.0
        %3420 = vmatpush1.msra.mxu0 0.0
        %3421 = vmatprep.subr.mxu0 0.0
        %3422 = vmatpush1.msra.mxu0 0.0
        %3423 = vmatprep.subr.mxu0 0.0
        %3424 = vmatpush1.msra.mxu0 0.0
        %3425 = vmatprep.subr.mxu0 0.0
        %3426 = vmatpush1.msra.mxu0 0.0
        %3427 = vmatprep.subr.mxu0 0.0
        %3428 = vmatpush1.msra.mxu0 0.0
        %3429 = vmatprep.subr.mxu0 0.0
        %3430 = vmatpush1.msra.mxu0 0.0
        %3431 = vmatprep.subr.mxu0 0.0
        %3432 = vmatpush1.msra.mxu0 0.0
        %3433 = vmatprep.subr.mxu0 0.0
        %3434 = vmatpush1.msra.mxu0 0.0
        %3435 = vmatprep.subr.mxu0 0.0
        %3436 = vmatpush1.msra.mxu0 0.0
        %3437 = vmatprep.subr.mxu0 0.0
        %3438 = vmatpush1.msra.mxu0 0.0
        %3439 = vmatprep.subr.mxu0 0.0
        %3440 = vmatpush1.msra.mxu0 0.0
        %3441 = vmatprep.subr.mxu0 0.0
        %3442 = vmatpush1.msra.mxu0 0.0
        %3443 = vmatprep.subr.mxu0 0.0
        %3444 = vmatpush1.msra.mxu0 0.0
        %3445 = vmatprep.subr.mxu0 0.0
        %3446 = vmatpush1.msra.mxu0 0.0
        %3447 = vmatprep.subr.mxu0 0.0
        %3448 = vmatpush1.msra.mxu0 0.0
        %3449 = vmatprep.subr.mxu0 0.0
        %3450 = vmatpush1.msra.mxu0 0.0
        %3451 = vmatprep.subr.mxu0 0.0
        %3452 = vmatpush1.msra.mxu0 0.0
        %3453 = vmatprep.mubr.f32.mxu0 0.0
        %3454 = vmatmul.mubr.f32.gmra.mrb[0].mxu0 %v3387
        %v3455 = vpop.f32.mrb[0].mxu0
        %v3456 = vadd.f32 0.0, %v3455
        %v3457 = vpop.f32.mrb[0].mxu0
        %3458 = vdwg.mxu0
        %v3459 = vunpack.c.l.bf16 %v397
        %v3460 = vunpack.c.l.bf16 %v398
        %v3461 = vunpack.c.l.bf16 %v399
        %v3462 = vunpack.c.l.bf16 %v400
        %v3463 = vunpack.c.l.bf16 %v401
        %v3464 = vunpack.c.l.bf16 %v402
        %v3465 = vunpack.c.l.bf16 %v403
        %v3466 = vunpack.c.l.bf16 %v404
        %v3467 = vunpack.c.l.bf16 %v405
        %v3468 = vunpack.c.l.bf16 %v406
        %v3469 = vunpack.c.l.bf16 %v407
        %v3470 = vunpack.c.l.bf16 %v408
        %v3471 = vunpack.c.l.bf16 %v409
        %v3472 = vunpack.c.l.bf16 %v410
        %v3473 = vunpack.c.l.bf16 %v411
        %v3474 = vunpack.c.l.bf16 %v412
        %v3491 = vrot.slane %v2434, 7
        %v3492 = vsel %vm2066, %v3491, %v2361
        %v3493 = vrot.slane %v2507, 6
        %v3494 = vsel %vm2069, %v3493, %v3492
        %v3495 = vrot.slane %v2580, 5
        %v3496 = vsel %vm2072, %v3495, %v3494
        %v3497 = vrot.slane %v2653, 4
        %v3498 = vsel %vm2075, %v3497, %v3496
        %v3499 = vrot.slane %v2726, 3
        %v3500 = vsel %vm2078, %v3499, %v3498
        %v3501 = vrot.slane %v2799, 2
        %v3502 = vsel %vm2081, %v3501, %v3500
        %v3503 = vrot.slane %v2872, 1
        %v3504 = vsel %vm2084, %v3503, %v3502
        %v3505 = vrot.slane %v3018, 7
        %v3506 = vsel %vm2066, %v3505, %v2945
        %v3507 = vrot.slane %v3091, 6
        %v3508 = vsel %vm2069, %v3507, %v3506
        %v3509 = vrot.slane %v3164, 5
        %v3510 = vsel %vm2072, %v3509, %v3508
        %v3511 = vrot.slane %v3237, 4
        %v3512 = vsel %vm2075, %v3511, %v3510
        %v3513 = vrot.slane %v3310, 3
        %v3514 = vsel %vm2078, %v3513, %v3512
        %v3515 = vrot.slane %v3383, 2
        %v3516 = vsel %vm2081, %v3515, %v3514
        %v3517 = vrot.slane %v3456, 1
        %v3518 = vsel %vm2084, %v3517, %v3516
        %3521 = vmatprep.subr.mxu0 0.0
        %3522 = vmatpush1.msra.mxu0 %v3459
        %3523 = vmatprep.subr.mxu0 0.0
        %3524 = vmatpush1.msra.mxu0 %v3460
        %3525 = vmatprep.subr.mxu0 0.0
        %3526 = vmatpush1.msra.mxu0 %v3461
        %3527 = vmatprep.subr.mxu0 0.0
        %3528 = vmatpush1.msra.mxu0 %v3462
        %3529 = vmatprep.subr.mxu0 0.0
        %3530 = vmatpush1.msra.mxu0 %v3463
        %3531 = vmatprep.subr.mxu0 0.0
        %3532 = vmatpush1.msra.mxu0 %v3464
        %3533 = vmatprep.subr.mxu0 0.0
        %3534 = vmatpush1.msra.mxu0 %v3465
        %3535 = vmatprep.subr.mxu0 0.0
        %3536 = vmatpush1.msra.mxu0 %v3466
        %3537 = vmatprep.subr.mxu0 0.0
        %3538 = vmatpush1.msra.mxu0 %v3467
        %3539 = vmatprep.subr.mxu0 0.0
        %3540 = vmatpush1.msra.mxu0 %v3468
        %3541 = vmatprep.subr.mxu0 0.0
        %3542 = vmatpush1.msra.mxu0 %v3469
        %3543 = vmatprep.subr.mxu0 0.0
        %3544 = vmatpush1.msra.mxu0 %v3470
        %3545 = vmatprep.subr.mxu0 0.0
        %3546 = vmatpush1.msra.mxu0 %v3471
        %3547 = vmatprep.subr.mxu0 0.0
        %3548 = vmatpush1.msra.mxu0 %v3472
        %3549 = vmatprep.subr.mxu0 0.0
        %3550 = vmatpush1.msra.mxu0 %v3473
        %3551 = vmatprep.subr.mxu0 0.0
        %3552 = vmatpush1.msra.mxu0 %v3474
        %3553 = vmatprep.subr.mxu0 0.0
        %3554 = vmatpush1.msra.mxu0 0.0
        %3555 = vmatprep.subr.mxu0 0.0
        %3556 = vmatpush1.msra.mxu0 0.0
        %3557 = vmatprep.subr.mxu0 0.0
        %3558 = vmatpush1.msra.mxu0 0.0
        %3559 = vmatprep.subr.mxu0 0.0
        %3560 = vmatpush1.msra.mxu0 0.0
        %3561 = vmatprep.subr.mxu0 0.0
        %3562 = vmatpush1.msra.mxu0 0.0
        %3563 = vmatprep.subr.mxu0 0.0
        %3564 = vmatpush1.msra.mxu0 0.0
        %3565 = vmatprep.subr.mxu0 0.0
        %3566 = vmatpush1.msra.mxu0 0.0
        %3567 = vmatprep.subr.mxu0 0.0
        %3568 = vmatpush1.msra.mxu0 0.0
        %3569 = vmatprep.subr.mxu0 0.0
        %3570 = vmatpush1.msra.mxu0 0.0
        %3571 = vmatprep.subr.mxu0 0.0
        %3572 = vmatpush1.msra.mxu0 0.0
        %3573 = vmatprep.subr.mxu0 0.0
        %3574 = vmatpush1.msra.mxu0 0.0
        %3575 = vmatprep.subr.mxu0 0.0
        %3576 = vmatpush1.msra.mxu0 0.0
        %3577 = vmatprep.subr.mxu0 0.0
        %3578 = vmatpush1.msra.mxu0 0.0
        %3579 = vmatprep.subr.mxu0 0.0
        %3580 = vmatpush1.msra.mxu0 0.0
        %3581 = vmatprep.subr.mxu0 0.0
        %3582 = vmatpush1.msra.mxu0 0.0
        %3583 = vmatprep.subr.mxu0 0.0
        %3584 = vmatpush1.msra.mxu0 0.0
        %3585 = vmatprep.mubr.f32.mxu0 0.0
        %3586 = vmatmul.mubr.f32.gmra.mrb[0].mxu0 %v3504
        %v3587 = vpop.f32.mrb[0].mxu0
        %v3588 = vadd.f32 0.0, %v3587
        %v3589 = vpop.f32.mrb[0].mxu0
        %3590 = vmatprep.mubr.f32.mxu0 0.0
        %3591 = vmatmul.mubr.f32.gmra.mrb[0].mxu0 %v3518
        %v3592 = vpop.f32.mrb[0].mxu0
        %v3593 = vadd.f32 0.0, %v3592
        %v3594 = vpop.f32.mrb[0].mxu0
        %3595 = vdwg.mxu0
        %3596 = vst [vmem:[%s326] sm:$0xff] %v3588
        %3597 = vst [vmem:[%s326 + $0x8] sm:$0xff] %v3593
        %s3598 = sand.u32 %s149, 1
        %s3599 = scalar_lea.sflag [#allocation4], %s3598
        %s3600 = sand.u32 %s149, 1
        %s3601 = smul.addr %s3600, 16
        %s3602 = scalar_lea.vmem [#allocation11], %s3601
        // Predicated region
        $region61: #{tpu_custom_call.1} parent=39 // pred_check
          %p3603 = pneg %p159
        $region62: #{tpu_custom_call.1} parent=39 // pred_check_branch
          %3605 = sbr.rel (%p3603) target = $region64
        $region63: #{tpu_custom_call.1} parent=39 // pred_region
          %s3606 = smul.u32 2, %s26
          %s3608 = ssub.s32 256, 256
          %3609 = vsyncadd %s3599, %s3608
          %s3610 = smul.addr %s3606, 128
          %s3611 = scalar_lea.hbm %s5, %s3610
          %s3612 = sshll.u32 %s3602, 4
          %s3613 = int_to_ptr.vmem [resolvable:$true] %s3612
          %3618 = dma.vmem_to_hbm [thread:$0]  %s3613, 256, %s3611, %s3599, 128, 128, 8
        $region64: #{tpu_custom_call.1} parent=39 // pred_fallthru
          _
      $region40: #{tpu_custom_call.1} parent=5 // pred_fallthru
        _
      %p3619 = scmp.le.s32.totalorder 2, %s21
      // Predicated region
      $region65: #{tpu_custom_call.1} parent=5 // pred_check
        %p3620 = pneg %p3619
      $region66: #{tpu_custom_call.1} parent=5 // pred_check_branch
        %3622 = sbr.rel (%p3620) target = $region68
      $region67: #{tpu_custom_call.1} parent=5 // pred_region
        %s3623 = ssub.s32 %s21, 2
        // Predicated region
        $region69: #{tpu_custom_call.1} parent=67 // pred_check
          %p3624 = pneg %p165
        $region70: #{tpu_custom_call.1} parent=67 // pred_check_branch
          %3626 = sbr.rel (%p3624) target = $region72
        $region71: #{tpu_custom_call.1} parent=67 // pred_region
          %s3627 = sand.u32 %s150, 1
          %s3628 = scalar_lea.sflag [#allocation4], %s3627
          %s3629 = sand.u32 %s150, 1
          %s3630 = smul.addr %s3629, 16
          %s3631 = scalar_lea.vmem [#allocation11], %s3630
          %3632 = dma.done %s3628, 256
        $region72: #{tpu_custom_call.1} parent=67 // pred_fallthru
          _
      $region68: #{tpu_custom_call.1} parent=5 // pred_fallthru
        _
    $region6: #{tpu_custom_call.1} parent=1 // loop_footer
      %s25 = sadd.s32 1, %s21
    $region7: #{tpu_custom_call.1} parent=1 // loop_footer_branch
      %20 = sbr.rel target = $region3
    $region8: #{tpu_custom_call.1} parent=1 // loop_exit
      _
    %3633 = vsyncpa [#allocation3], 1
    %s3634 = scalar_lea.sflag [#allocation3], 1
    %3635 = vsyncpa %s3634, 1
    %3636 = vsyncpa [#allocation6], 1
    %s3637 = scalar_lea.sflag [#allocation6], 1
    %3638 = vsyncpa %s3637, 1
    %3639 = vsyncpa [#allocation9], 1
    %3640 = vsyncpa [#allocation4], 1
    %s3641 = scalar_lea.sflag [#allocation4], 1
    %3642 = vsyncpa %s3641, 1

</llo_original>
